<compile_context>
chip_gen: v5e
topology: v5e:2x2
jax: 0.10.0
libtpu: 0.0.40
codegen_flags: <defaults>
</compile_context>

<pallas_src>
import math

import jax
import jax.numpy as jnp
from jax.experimental import pallas as pl
from jax.experimental.pallas import tpu as pltpu  # noqa: F401  (TPU backend)

# ----------------------------- small config ---------------------------------
B = 2            # batch
S = 8            # sequence length
F_IN = 16        # input_dim
D = 32           # d_model
H = 4            # n_heads
HD = D // H      # head_dim
L = 2            # num_layers
D_FF = 64        # dim_feedforward
MAX_REL = 8      # max_relative_position
HORIZONS = (1, 5, 10)
NH = len(HORIZONS)
D_HALF = D // 2
OUT = 1          # output_dim
NEG = -1.0e9
EPS = 1e-5       # PyTorch LayerNorm default

BS = B * S       # folded rows of the residual stream
HBS = H * BS     # folded (head, batch, key_pos) key columns
GB = 8           # global-attention rows (B real + padding -> dense 8-sublane tiles)
NHD = NH * D_HALF

# --------------------- packed-buffer row layouts (static) --------------------
# pack128: [PK_ROWS, 128] f32 -- every bias / LayerNorm vector is one row,
# plus the (lane-padded) final block-diagonal head weight.
PK_IN_B, PK_IN_LN_G, PK_IN_LN_B = 0, 1, 2
PK_BQKV = 3                  # + l                      (width 3D)
PK_LYR = 5                   # + 6*l + j ; j = n1_g,n1_b,attn_out_b,n2_g,n2_b,ff2_b
PK_BFF1 = 17                 # + l                      (width D_FF)
PK_G_IN_B = 19               # fused global q/k/v bias  (width 3D)
PK_G_OUT_B = 20              # global out-proj bias     (width D)
PK_H1_B, PK_H_LN_G, PK_H_LN_B = 21, 22, 23              # (width NHD)
PK_HB2 = 24                  # final bias, lane-padded  (width 128)
PK_HW2 = 32                  # rows 32..79: [NHD, 128] block-diag final weight
PK_ROWS = 80

# cmask: [CM_ROWS, 64] f32 -- all constant selection / mask matrices.
CM_REP = 0                   # rep_rows  [HBS, BS]
CM_HSEL2 = 64                # head_sel2 [HBS, 2D]
CM_BLOCK = 128               # blockmat  [HBS, HBS]
CM_AMASK = 192               # add_mask  [BS, HBS]
CM_GMASK = 208               # gmask     [GB, HBS]
CM_SLAST = 216               # sel_last  [GB, BS]
CM_SEG = 224                 # segmat    [NHD, NHD]
CM_RELE = 272                # relE      [H*S, HBS]
CM_PE = 304                  # pos. enc. [BS, D]
CM_ROWS = 320

# w32 / w96 / w64: width-grouped weight stacks.
W32_INW = 0                  # [F_IN, D]
W32_WO = 16                  # + D*l      [D, D]
W32_FF2 = 80                 # + D_FF*l   [D_FF, D]
W32_GWO = 208                # [D, D]
W32_REL = 240                # + S*D*l    [S*D, H*S]
W32_ROWS = 752

W96_QKV = 0                  # + D*l      [D, 3D]
W96_G = 64                   # [D, 3D] fused global Wq|Wk|Wv
W96_ROWS = 96

W64_FF1 = 0                  # + D*l      [D, D_FF]
W64_HW1 = 64                 # [D, NHD]
W64_ROWS = 96


# ----------------------------- in-kernel helpers -----------------------------
def _layernorm(x, g, b):
    mu = jnp.mean(x, axis=-1, keepdims=True)
    var = jnp.mean((x - mu) ** 2, axis=-1, keepdims=True)
    return (x - mu) * jax.lax.rsqrt(var + EPS) * g + b


def _gelu(x):
    # Exact nn.GELU via Abramowitz & Stegun 7.1.26 erf polynomial (~1.5e-7).
    # TODO(synk): Mosaic has no lax.erf lowering; polynomial reproduces erf.
    a1, a2, a3, a4, a5 = (0.254829592, -0.284496736, 1.421413741,
                          -1.453152027, 1.061405429)
    p = 0.3275911
    z = x * 0.7071067811865476
    az = jnp.abs(z)
    t = pl.reciprocal(1.0 + p * az, approx=True)      # EUP slot, off the VALU
    poly = ((((a5 * t + a4) * t + a3) * t + a2) * t + a1) * t
    y = 1.0 - poly * jnp.exp(-az * az)
    erf = jnp.where(z >= 0, y, -y)
    return 0.5 * x * (1.0 + erf)


# --------------------------------- kernel ------------------------------------
def _model_kernel(x_ref, pack_ref, cm_ref, qsel_ref, w32_ref, w96_ref, w64_ref,
                  out_ref):
    f32 = jnp.float32
    scale = 1.0 / math.sqrt(HD)

    def vec(row, width):
        return pack_ref[row:row + 1, 0:width]                      # [1, width]

    def folded_attention(q, kv, extra, mask):
        """Multi-head attention, heads folded into (head,batch,pos) key columns.

        q: [R, D]; kv: [BS, 2D] packed [K|V]; `mask` keeps same-batch (and
        causal) entries, softmax normalizes per head block with one matmul
        against a block-indicator matrix.
        """
        rep_rows = cm_ref[CM_REP:CM_REP + HBS, 0:BS]
        head_sel2 = cm_ref[CM_HSEL2:CM_HSEL2 + HBS, 0:2 * D]
        blockmat = cm_ref[CM_BLOCK:CM_BLOCK + HBS, 0:HBS]

        kv_blk = jnp.dot(rep_rows, kv, preferred_element_type=f32) * head_sel2
        k_blk = kv_blk[:, 0:D]
        v_blk = kv_blk[:, D:2 * D]
        sc = jax.lax.dot_general(q, k_blk, (((1,), (1,)), ((), ())),
                                 preferred_element_type=f32) * scale
        sc = sc + extra + mask                                      # [R, HBS]
        # per-head-block max -> segmented softmax stays valid even if one
        # head's scores dwarf another's (no cross-head underflow collapse)
        m_full = 0.0
        for hh in range(H):
            ind = blockmat[hh * BS:hh * BS + 1, :]                  # [1, HBS]
            m_h = jnp.max(jnp.where(ind > 0.0, sc, NEG), axis=-1, keepdims=True)
            m_full = m_full + m_h * ind
        e = jnp.exp(sc - m_full)
        denom = jnp.dot(e, blockmat, preferred_element_type=f32)    # per-head sums
        p = e / denom                                               # exact softmax
        return jnp.dot(p, v_blk, preferred_element_type=f32)        # [R, D]

    # ---- input projection (Linear + LayerNorm) + sinusoidal pos. encoding ----
    x = x_ref[...]                                                  # [BS, F_IN]
    h = jnp.dot(x, w32_ref[W32_INW:W32_INW + F_IN, :],
                preferred_element_type=f32) + vec(PK_IN_B, D)
    h = _layernorm(h, vec(PK_IN_LN_G, D), vec(PK_IN_LN_B, D))
    h = h + cm_ref[CM_PE:CM_PE + BS, 0:D]

    # ---- transformer blocks (pre-norm, residual; dropout == identity) ----
    qsel = qsel_ref[...]                                            # [BS, S*D]
    relE = cm_ref[CM_RELE:CM_RELE + H * S, 0:HBS]                   # [H*S, HBS]
    for l in range(L):
        r = PK_LYR + 6 * l
        hn = _layernorm(h, vec(r + 0, D), vec(r + 1, D))
        qkv = jnp.dot(hn, w96_ref[W96_QKV + D * l:W96_QKV + D * (l + 1), :],
                      preferred_element_type=f32) + vec(PK_BQKV + l, 3 * D)
        q = qkv[:, 0:D]
        kv = qkv[:, D:3 * D]
        # relative-position scores (Shaw-style, unscaled like the PyTorch module):
        # lane-replicate q, mask to its own sequence position, one matmul against
        # the [S*D, H*S] rel operand, one tiny expansion to (head,batch,pos).
        qbd = jnp.concatenate([q] * S, axis=-1) * qsel               # [BS, S*D]
        rel_s = jnp.dot(qbd,
                        w32_ref[W32_REL + S * D * l:W32_REL + S * D * (l + 1), :],
                        preferred_element_type=f32)                  # [BS, H*S]
        rel = jnp.dot(rel_s, relE, preferred_element_type=f32)       # [BS, HBS]

        ctx = folded_attention(q, kv, rel,
                               cm_ref[CM_AMASK:CM_AMASK + BS, 0:HBS])
        attn = jnp.dot(ctx, w32_ref[W32_WO + D * l:W32_WO + D * (l + 1), :],
                       preferred_element_type=f32) + vec(r + 2, D)
        h = h + attn

        hn = _layernorm(h, vec(r + 3, D), vec(r + 4, D))
        ff = jnp.dot(hn, w64_ref[W64_FF1 + D * l:W64_FF1 + D * (l + 1), :],
                     preferred_element_type=f32) + vec(PK_BFF1 + l, D_FF)
        ff = _gelu(ff)
        ff = jnp.dot(ff, w32_ref[W32_FF2 + D_FF * l:W32_FF2 + D_FF * (l + 1), :],
                     preferred_element_type=f32) + vec(r + 5, D)
        h = h + ff

    # ---- global attention: query = last timestep per batch, K/V = full seq ----
    # One fused h @ [Wq|Wk|Wv] matmul; Q rows picked afterwards with sel_last.
    g_all = jnp.dot(h, w96_ref[W96_G:W96_G + D, :],
                    preferred_element_type=f32) + vec(PK_G_IN_B, 3 * D)  # [BS, 3D]
    sel_last = cm_ref[CM_SLAST:CM_SLAST + GB, 0:BS]
    gq = jnp.dot(sel_last, g_all[:, 0:D], preferred_element_type=f32)    # [GB, D]
    gctx = folded_attention(gq, g_all[:, D:3 * D], 0.0,
                            cm_ref[CM_GMASK:CM_GMASK + GB, 0:HBS])       # [GB, D]
    gctx = jnp.dot(gctx, w32_ref[W32_GWO:W32_GWO + D, :],
                   preferred_element_type=f32) + vec(PK_G_OUT_B, D)

    # ---- forecast heads (fused): Linear -> per-head LayerNorm -> ReLU -> Linear
    t = jnp.dot(gctx, w64_ref[W64_HW1:W64_HW1 + D, 0:NHD],
                preferred_element_type=f32) + vec(PK_H1_B, NHD)          # [GB, NHD]
    segmat = cm_ref[CM_SEG:CM_SEG + NHD, 0:NHD]
    inv_dh = 1.0 / D_HALF
    mu = jnp.dot(t, segmat, preferred_element_type=f32) * inv_dh
    xc = t - mu
    var = jnp.dot(xc * xc, segmat, preferred_element_type=f32) * inv_dh
    tn = xc * jax.lax.rsqrt(var + EPS) * vec(PK_H_LN_G, NHD) + vec(PK_H_LN_B, NHD)
    tn = jnp.maximum(tn, 0.0)
    # final block-diagonal linear, padded so the store is a dense [GB, 128] tile
    out_ref[...] = jnp.dot(tn, pack_ref[PK_HW2:PK_HW2 + NHD, :],
                           preferred_element_type=f32) + vec(PK_HB2, 128)


# ------------------------------ wrapper / glue --------------------------------
@jax.jit
def forward(x, params):
    x2 = x.reshape(BS, F_IN)
    # No grid: single program, every (tiny) operand lives whole in VMEM.
    out = pl.pallas_call(
        _model_kernel,
        out_shape=jax.ShapeDtypeStruct((GB, 128), jnp.float32),
    )(x2, *params)
    out = out[:B, :NH]
    return {hz: out[:, i:i + 1] for i, hz in enumerate(HORIZONS)}


def init_params(key):
    """Deterministic synthetic parameters, packed into a handful of buffers."""
    keys = iter(jax.random.split(key, 24))
    f32 = jnp.float32

    def xavier(shape, gain=1.0):
        fan_in, fan_out = shape[-2], shape[-1]
        sc = gain * math.sqrt(2.0 / (fan_in + fan_out))
        return sc * jax.random.normal(next(keys), shape, dtype=f32)

    # --- raw module weights ---
    inw = xavier((F_IN, D))
    qw, kw, vw = xavier((L, D, D)), xavier((L, D, D)), xavier((L, D, D))
    wqkv = jnp.concatenate([qw, kw, vw], axis=-1)                   # [L, D, 3D]
    wo = xavier((L, D, D))
    wff1 = xavier((L, D, D_FF))
    wff2 = xavier((L, D_FF, D))
    rel_enc = xavier((L, 2 * MAX_REL + 1, HD))
    gwq, gwk, gwv = xavier((D, D)), xavier((D, D)), xavier((D, D))
    gw_all = jnp.concatenate([gwq, gwk, gwv], axis=-1)              # [D, 3D]
    gwo = xavier((D, D))
    h1w = xavier((NH, D, D_HALF))
    hw1 = jnp.concatenate([h1w[i] for i in range(NH)], axis=-1)     # [D, NHD]
    h2w = xavier((NH, D_HALF, OUT), gain=0.01)
    hw2bd = (h2w[:, :, 0][:, :, None] *
             jnp.eye(NH, dtype=f32)[:, None, :]).reshape(NHD, NH)   # [NHD, NH]

    # --- relative-position operand [L, S*D, H*S] (no batch broadcast) ---
    idx = jnp.clip(jnp.arange(S)[None, :] - jnp.arange(S)[:, None],
                   -MAX_REL, MAX_REL) + MAX_REL                     # [i, j]
    rel_tab = rel_enc[:, idx, :]                                    # [L, i, j, HD]
    rt = jnp.transpose(rel_tab, (0, 1, 3, 2))                       # [L, i, hd, j]
    rt6 = rt[:, :, None, :, None, :]                                # [L,i,1,hd,1,j]
    eye_h6 = jnp.eye(H, dtype=f32)[None, None, :, None, :, None]
    relsmall = (rt6 * eye_h6).reshape(L, S * D, H * S)              # [L, 256, 32]

    # --- sinusoidal positional encoding folded over batch rows ---
    pos = jnp.arange(S, dtype=f32)[:, None]
    div = jnp.exp(jnp.arange(0, D, 2, dtype=f32) * (-math.log(10000.0) / D))
    pe = jnp.zeros((S, D), f32)
    pe = pe.at[:, 0::2].set(jnp.sin(pos * div))
    pe = pe.at[:, 1::2].set(jnp.cos(pos * div))
    pe_folded = jnp.tile(pe, (B, 1))                                # [BS, D]

    # --- constant selection / mask matrices ---
    cols = jnp.arange(HBS)
    c_h, c_b, c_j = cols // BS, (cols % BS) // S, cols % S
    rows = jnp.arange(BS)
    r_b, r_i = rows // S, rows % S

    qsel = (r_i[:, None] == (jnp.arange(S * D) // D)[None, :]).astype(f32)
    rep_rows = jnp.tile(jnp.eye(BS, dtype=f32), (H, 1))             # [HBS, BS]
    head_sel = (c_h[:, None] == (jnp.arange(D) // HD)[None, :]).astype(f32)
    head_sel2 = jnp.concatenate([head_sel, head_sel], axis=-1)      # [HBS, 2D]
    blockmat = (c_h[:, None] == c_h[None, :]).astype(f32)           # [HBS, HBS]
    ok = (r_b[:, None] == c_b[None, :]) & (r_i[:, None] >= c_j[None, :])
    add_mask = jnp.where(ok, 0.0, NEG).astype(f32)                  # [BS, HBS]
    g_b = jnp.minimum(jnp.arange(GB), B - 1)                        # padded rows -> batch 0
    gmask = jnp.where(g_b[:, None] == c_b[None, :], 0.0, NEG).astype(f32)
    sel_last = (jnp.arange(BS)[None, :] ==
                (g_b * S + (S - 1))[:, None]).astype(f32)           # [GB, BS]
    segmat = jnp.kron(jnp.eye(NH, dtype=f32),
                      jnp.ones((D_HALF, D_HALF), f32))              # [NHD, NHD]
    rels = jnp.arange(H * S)
    relE = ((rels[:, None] // S == c_h[None, :]) &
            (rels[:, None] % S == c_j[None, :])).astype(f32)        # [H*S, HBS]

    # --- pack into a handful of DMA-friendly buffers ---
    def put(buf, row, arr):
        arr = jnp.asarray(arr, f32)
        if arr.ndim == 1:
            arr = arr[None, :]
        return buf.at[row:row + arr.shape[0], 0:arr.shape[1]].set(arr)

    pack = jnp.zeros((PK_ROWS, 128), f32)          # all Linear/LN biases are zero rows
    pack = put(pack, PK_IN_LN_G, jnp.ones((D,), f32))
    for l in range(L):
        pack = put(pack, PK_LYR + 6 * l + 0, jnp.ones((D,), f32))   # norm1 gamma
        pack = put(pack, PK_LYR + 6 * l + 3, jnp.ones((D,), f32))   # norm2 gamma
    pack = put(pack, PK_H_LN_G, jnp.ones((NHD,), f32))
    pack = put(pack, PK_HW2, jnp.pad(hw2bd, ((0, 0), (0, 128 - NH))))

    cm = jnp.zeros((CM_ROWS, 64), f32)
    cm = put(cm, CM_REP, rep_rows)
    cm = put(cm, CM_HSEL2, head_sel2)
    cm = put(cm, CM_BLOCK, blockmat)
    cm = put(cm, CM_AMASK, add_mask)
    cm = put(cm, CM_GMASK, gmask)
    cm = put(cm, CM_SLAST, sel_last)
    cm = put(cm, CM_SEG, segmat)
    cm = put(cm, CM_RELE, relE)
    cm = put(cm, CM_PE, pe_folded)

    w32 = jnp.zeros((W32_ROWS, D), f32)
    w32 = put(w32, W32_INW, inw)
    w32 = put(w32, W32_GWO, gwo)
    for l in range(L):
        w32 = put(w32, W32_WO + D * l, wo[l])
        w32 = put(w32, W32_FF2 + D_FF * l, wff2[l])
        w32 = put(w32, W32_REL + S * D * l, relsmall[l])

    w96 = jnp.zeros((W96_ROWS, 3 * D), f32)
    for l in range(L):
        w96 = put(w96, W96_QKV + D * l, wqkv[l])
    w96 = put(w96, W96_G, gw_all)

    w64 = jnp.zeros((W64_ROWS, D_FF), f32)
    for l in range(L):
        w64 = put(w64, W64_FF1 + D * l, wff1[l])
    w64 = put(w64, W64_HW1, hw1)

    return (pack, cm, qsel, w32, w96, w64)


if __name__ == "__main__":
    key = jax.random.PRNGKey(0)
    kx, kp = jax.random.split(key)
    x = jax.random.normal(kx, (B, S, F_IN), dtype=jnp.float32)
    params = init_params(kp)

    preds = forward(x, params)
    preds = jax.block_until_ready(preds)

    for hz in HORIZONS:
        assert preds[hz].shape == (B, OUT), preds[hz].shape
        assert bool(jnp.all(jnp.isfinite(preds[hz])))
    print("KERNEL_OK")
</pallas_src>

<mosaic_0001>
module attributes {stable_mosaic.version = 11 : i64} {
  func.func @_model_kernel(%arg0: memref<16x16xf32, #tpu.memory_space<vmem>>, %arg1: memref<80x128xf32, #tpu.memory_space<vmem>>, %arg2: memref<320x64xf32, #tpu.memory_space<vmem>>, %arg3: memref<16x256xf32, #tpu.memory_space<vmem>>, %arg4: memref<752x32xf32, #tpu.memory_space<vmem>>, %arg5: memref<96x96xf32, #tpu.memory_space<vmem>>, %arg6: memref<96x64xf32, #tpu.memory_space<vmem>>, %arg7: memref<8x128xf32, #tpu.memory_space<vmem>>) attributes {dimension_semantics = [], scalar_prefetch = 0 : i64, scratch_operands = 0 : i64, tpu.core_type = #tpu.core_type<tc>} {
    %c0 = arith.constant 0 : index
    %c0_0 = arith.constant 0 : index
    %0 = vector.load %arg0[%c0, %c0_0] : memref<16x16xf32, #tpu.memory_space<vmem>>, vector<16x16xf32>
    %c0_1 = arith.constant 0 : index
    %c0_2 = arith.constant 0 : index
    %1 = vector.load %arg4[%c0_1, %c0_2] : memref<752x32xf32, #tpu.memory_space<vmem>>, vector<16x32xf32>
    %cst = arith.constant dense<0.000000e+00> : vector<16x32xf32>
    %2 = tpu.matmul %0, %1, %cst {dimension_numbers = #tpu.dot_dimension_numbers<[1], [0], [0], [1], [0, 0, 1, 1], [], []>} : vector<16x16xf32>, vector<16x32xf32>, vector<16x32xf32> -> vector<16x32xf32>
    %c0_3 = arith.constant 0 : index
    %c0_4 = arith.constant 0 : index
    %3 = vector.load %arg1[%c0_3, %c0_4] : memref<80x128xf32, #tpu.memory_space<vmem>>, vector<1x32xf32>
    %4 = vector.broadcast %3 : vector<1x32xf32> to vector<16x32xf32>
    %5 = arith.addf %2, %4 : vector<16x32xf32>
    %c1 = arith.constant 1 : index
    %c0_5 = arith.constant 0 : index
    %6 = vector.load %arg1[%c1, %c0_5] : memref<80x128xf32, #tpu.memory_space<vmem>>, vector<1x32xf32>
    %c2 = arith.constant 2 : index
    %c0_6 = arith.constant 0 : index
    %7 = vector.load %arg1[%c2, %c0_6] : memref<80x128xf32, #tpu.memory_space<vmem>>, vector<1x32xf32>
    %cst_7 = arith.constant dense<0.000000e+00> : vector<16xf32>
    %8 = vector.multi_reduction <add>, %5, %cst_7 [1] : vector<16x32xf32> to vector<16xf32>
    %9 = vector.shape_cast %8 : vector<16xf32> to vector<16x1xf32>
    %cst_8 = arith.constant 3.200000e+01 : f32
    %10 = vector.broadcast %cst_8 : f32 to vector<16x1xf32>
    %11 = arith.divf %9, %10 : vector<16x1xf32>
    %12 = vector.broadcast %11 : vector<16x1xf32> to vector<16x32xf32>
    %13 = arith.subf %5, %12 : vector<16x32xf32>
    %14 = arith.mulf %13, %13 : vector<16x32xf32>
    %cst_9 = arith.constant dense<0.000000e+00> : vector<16xf32>
    %15 = vector.multi_reduction <add>, %14, %cst_9 [1] : vector<16x32xf32> to vector<16xf32>
    %16 = vector.shape_cast %15 : vector<16xf32> to vector<16x1xf32>
    %cst_10 = arith.constant 3.200000e+01 : f32
    %17 = vector.broadcast %cst_10 : f32 to vector<16x1xf32>
    %18 = arith.divf %16, %17 : vector<16x1xf32>
    %19 = vector.broadcast %11 : vector<16x1xf32> to vector<16x32xf32>
    %20 = arith.subf %5, %19 : vector<16x32xf32>
    %cst_11 = arith.constant 9.99999974E-6 : f32
    %21 = vector.broadcast %cst_11 : f32 to vector<16x1xf32>
    %22 = arith.addf %18, %21 : vector<16x1xf32>
    %23 = math.rsqrt %22 : vector<16x1xf32>
    %24 = vector.broadcast %23 : vector<16x1xf32> to vector<16x32xf32>
    %25 = arith.mulf %20, %24 : vector<16x32xf32>
    %26 = vector.broadcast %6 : vector<1x32xf32> to vector<16x32xf32>
    %27 = arith.mulf %25, %26 : vector<16x32xf32>
    %28 = vector.broadcast %7 : vector<1x32xf32> to vector<16x32xf32>
    %29 = arith.addf %27, %28 : vector<16x32xf32>
    %c304 = arith.constant 304 : index
    %c0_12 = arith.constant 0 : index
    %30 = vector.load %arg2[%c304, %c0_12] : memref<320x64xf32, #tpu.memory_space<vmem>>, vector<16x32xf32>
    %31 = arith.addf %29, %30 : vector<16x32xf32>
    %c0_13 = arith.constant 0 : index
    %c0_14 = arith.constant 0 : index
    %32 = vector.load %arg3[%c0_13, %c0_14] : memref<16x256xf32, #tpu.memory_space<vmem>>, vector<16x256xf32>
    %c272 = arith.constant 272 : index
    %c0_15 = arith.constant 0 : index
    %33 = vector.load %arg2[%c272, %c0_15] : memref<320x64xf32, #tpu.memory_space<vmem>>, vector<32x64xf32>
    %c5 = arith.constant 5 : index
    %c0_16 = arith.constant 0 : index
    %34 = vector.load %arg1[%c5, %c0_16] : memref<80x128xf32, #tpu.memory_space<vmem>>, vector<1x32xf32>
    %c6 = arith.constant 6 : index
    %c0_17 = arith.constant 0 : index
    %35 = vector.load %arg1[%c6, %c0_17] : memref<80x128xf32, #tpu.memory_space<vmem>>, vector<1x32xf32>
    %cst_18 = arith.constant dense<0.000000e+00> : vector<16xf32>
    %36 = vector.multi_reduction <add>, %31, %cst_18 [1] : vector<16x32xf32> to vector<16xf32>
    %37 = vector.shape_cast %36 : vector<16xf32> to vector<16x1xf32>
    %cst_19 = arith.constant 3.200000e+01 : f32
    %38 = vector.broadcast %cst_19 : f32 to vector<16x1xf32>
    %39 = arith.divf %37, %38 : vector<16x1xf32>
    %40 = vector.broadcast %39 : vector<16x1xf32> to vector<16x32xf32>
    %41 = arith.subf %31, %40 : vector<16x32xf32>
    %42 = arith.mulf %41, %41 : vector<16x32xf32>
    %cst_20 = arith.constant dense<0.000000e+00> : vector<16xf32>
    %43 = vector.multi_reduction <add>, %42, %cst_20 [1] : vector<16x32xf32> to vector<16xf32>
    %44 = vector.shape_cast %43 : vector<16xf32> to vector<16x1xf32>
    %cst_21 = arith.constant 3.200000e+01 : f32
    %45 = vector.broadcast %cst_21 : f32 to vector<16x1xf32>
    %46 = arith.divf %44, %45 : vector<16x1xf32>
    %47 = vector.broadcast %39 : vector<16x1xf32> to vector<16x32xf32>
    %48 = arith.subf %31, %47 : vector<16x32xf32>
    %cst_22 = arith.constant 9.99999974E-6 : f32
    %49 = vector.broadcast %cst_22 : f32 to vector<16x1xf32>
    %50 = arith.addf %46, %49 : vector<16x1xf32>
    %51 = math.rsqrt %50 : vector<16x1xf32>
    %52 = vector.broadcast %51 : vector<16x1xf32> to vector<16x32xf32>
    %53 = arith.mulf %48, %52 : vector<16x32xf32>
    %54 = vector.broadcast %34 : vector<1x32xf32> to vector<16x32xf32>
    %55 = arith.mulf %53, %54 : vector<16x32xf32>
    %56 = vector.broadcast %35 : vector<1x32xf32> to vector<16x32xf32>
    %57 = arith.addf %55, %56 : vector<16x32xf32>
    %c0_23 = arith.constant 0 : index
    %c0_24 = arith.constant 0 : index
    %58 = vector.load %arg5[%c0_23, %c0_24] : memref<96x96xf32, #tpu.memory_space<vmem>>, vector<32x96xf32>
    %cst_25 = arith.constant dense<0.000000e+00> : vector<16x96xf32>
    %59 = tpu.matmul %57, %58, %cst_25 {dimension_numbers = #tpu.dot_dimension_numbers<[1], [0], [0], [1], [0, 0, 1, 1], [], []>} : vector<16x32xf32>, vector<32x96xf32>, vector<16x96xf32> -> vector<16x96xf32>
    %c3 = arith.constant 3 : index
    %c0_26 = arith.constant 0 : index
    %60 = vector.load %arg1[%c3, %c0_26] : memref<80x128xf32, #tpu.memory_space<vmem>>, vector<1x96xf32>
    %61 = vector.broadcast %60 : vector<1x96xf32> to vector<16x96xf32>
    %62 = arith.addf %59, %61 : vector<16x96xf32>
    %63 = vector.extract_strided_slice %62 {offsets = [0, 0], sizes = [16, 32], strides = [1, 1]} : vector<16x96xf32> to vector<16x32xf32>
    %64 = vector.extract_strided_slice %62 {offsets = [0, 32], sizes = [16, 64], strides = [1, 1]} : vector<16x96xf32> to vector<16x64xf32>
    %65 = tpu.concatenate %63, %63, %63, %63, %63, %63, %63, %63 in 1 : vector<16x32xf32>, vector<16x32xf32>, vector<16x32xf32>, vector<16x32xf32>, vector<16x32xf32>, vector<16x32xf32>, vector<16x32xf32>, vector<16x32xf32> -> vector<16x256xf32>
    %66 = arith.mulf %65, %32 : vector<16x256xf32>
    %c240 = arith.constant 240 : index
    %c0_27 = arith.constant 0 : index
    %67 = vector.load %arg4[%c240, %c0_27] : memref<752x32xf32, #tpu.memory_space<vmem>>, vector<256x32xf32>
    %cst_28 = arith.constant dense<0.000000e+00> : vector<16x32xf32>
    %68 = tpu.matmul %66, %67, %cst_28 {dimension_numbers = #tpu.dot_dimension_numbers<[1], [0], [0], [1], [0, 0, 1, 1], [], []>} : vector<16x256xf32>, vector<256x32xf32>, vector<16x32xf32> -> vector<16x32xf32>
    %cst_29 = arith.constant dense<0.000000e+00> : vector<16x64xf32>
    %69 = tpu.matmul %68, %33, %cst_29 {dimension_numbers = #tpu.dot_dimension_numbers<[1], [0], [0], [1], [0, 0, 1, 1], [], []>} : vector<16x32xf32>, vector<32x64xf32>, vector<16x64xf32> -> vector<16x64xf32>
    %c192 = arith.constant 192 : index
    %c0_30 = arith.constant 0 : index
    %70 = vector.load %arg2[%c192, %c0_30] : memref<320x64xf32, #tpu.memory_space<vmem>>, vector<16x64xf32>
    %c0_31 = arith.constant 0 : index
    %c0_32 = arith.constant 0 : index
    %71 = vector.load %arg2[%c0_31, %c0_32] : memref<320x64xf32, #tpu.memory_space<vmem>>, vector<64x16xf32>
    %c64 = arith.constant 64 : index
    %c0_33 = arith.constant 0 : index
    %72 = vector.load %arg2[%c64, %c0_33] : memref<320x64xf32, #tpu.memory_space<vmem>>, vector<64x64xf32>
    %c128 = arith.constant 128 : index
    %c0_34 = arith.constant 0 : index
    %73 = vector.load %arg2[%c128, %c0_34] : memref<320x64xf32, #tpu.memory_space<vmem>>, vector<64x64xf32>
    %cst_35 = arith.constant dense<0.000000e+00> : vector<64x64xf32>
    %74 = tpu.matmul %71, %64, %cst_35 {dimension_numbers = #tpu.dot_dimension_numbers<[1], [0], [0], [1], [0, 0, 1, 1], [], []>} : vector<64x16xf32>, vector<16x64xf32>, vector<64x64xf32> -> vector<64x64xf32>
    %75 = arith.mulf %74, %72 : vector<64x64xf32>
    %76 = vector.extract_strided_slice %75 {offsets = [0, 0], sizes = [64, 32], strides = [1, 1]} : vector<64x64xf32> to vector<64x32xf32>
    %77 = vector.extract_strided_slice %75 {offsets = [0, 32], sizes = [64, 32], strides = [1, 1]} : vector<64x64xf32> to vector<64x32xf32>
    %cst_36 = arith.constant dense<0.000000e+00> : vector<16x64xf32>
    %78 = tpu.matmul %63, %76, %cst_36 {dimension_numbers = #tpu.dot_dimension_numbers<[1], [1], [0], [0], [0, 0, 1, 0], [], []>} : vector<16x32xf32>, vector<64x32xf32>, vector<16x64xf32> -> vector<16x64xf32>
    %cst_37 = arith.constant 0.353553385 : f32
    %79 = vector.broadcast %cst_37 : f32 to vector<16x64xf32>
    %80 = arith.mulf %78, %79 : vector<16x64xf32>
    %81 = arith.addf %80, %69 : vector<16x64xf32>
    %82 = arith.addf %81, %70 : vector<16x64xf32>
    %83 = vector.extract_strided_slice %73 {offsets = [0, 0], sizes = [1, 64], strides = [1, 1]} : vector<64x64xf32> to vector<1x64xf32>
    %cst_38 = arith.constant 0.000000e+00 : f32
    %84 = vector.broadcast %cst_38 : f32 to vector<1x64xf32>
    %85 = arith.cmpf ogt, %83, %84 : vector<1x64xf32>
    %cst_39 = arith.constant -1.000000e+09 : f32
    %86 = vector.shape_cast %85 : vector<1x64xi1> to vector<1x64xi1>
    %87 = vector.broadcast %86 : vector<1x64xi1> to vector<16x64xi1>
    %88 = vector.broadcast %cst_39 : f32 to vector<16x64xf32>
    %89 = arith.select %87, %82, %88 : vector<16x64xi1>, vector<16x64xf32>
    %cst_40 = arith.constant dense<0xFF800000> : vector<16xf32>
    %90 = vector.multi_reduction <maximumf>, %89, %cst_40 [1] : vector<16x64xf32> to vector<16xf32>
    %91 = vector.shape_cast %90 : vector<16xf32> to vector<16x1xf32>
    %92 = vector.broadcast %91 : vector<16x1xf32> to vector<16x64xf32>
    %93 = vector.broadcast %83 : vector<1x64xf32> to vector<16x64xf32>
    %94 = arith.mulf %92, %93 : vector<16x64xf32>
    %cst_41 = arith.constant 0.000000e+00 : f32
    %95 = vector.broadcast %cst_41 : f32 to vector<16x64xf32>
    %96 = arith.addf %95, %94 : vector<16x64xf32>
    %97 = vector.extract_strided_slice %73 {offsets = [16, 0], sizes = [1, 64], strides = [1, 1]} : vector<64x64xf32> to vector<1x64xf32>
    %cst_42 = arith.constant 0.000000e+00 : f32
    %98 = vector.broadcast %cst_42 : f32 to vector<1x64xf32>
    %99 = arith.cmpf ogt, %97, %98 : vector<1x64xf32>
    %cst_43 = arith.constant -1.000000e+09 : f32
    %100 = vector.shape_cast %99 : vector<1x64xi1> to vector<1x64xi1>
    %101 = vector.broadcast %100 : vector<1x64xi1> to vector<16x64xi1>
    %102 = vector.broadcast %cst_43 : f32 to vector<16x64xf32>
    %103 = arith.select %101, %82, %102 : vector<16x64xi1>, vector<16x64xf32>
    %cst_44 = arith.constant dense<0xFF800000> : vector<16xf32>
    %104 = vector.multi_reduction <maximumf>, %103, %cst_44 [1] : vector<16x64xf32> to vector<16xf32>
    %105 = vector.shape_cast %104 : vector<16xf32> to vector<16x1xf32>
    %106 = vector.broadcast %105 : vector<16x1xf32> to vector<16x64xf32>
    %107 = vector.broadcast %97 : vector<1x64xf32> to vector<16x64xf32>
    %108 = arith.mulf %106, %107 : vector<16x64xf32>
    %109 = arith.addf %96, %108 : vector<16x64xf32>
    %110 = vector.extract_strided_slice %73 {offsets = [32, 0], sizes = [1, 64], strides = [1, 1]} : vector<64x64xf32> to vector<1x64xf32>
    %cst_45 = arith.constant 0.000000e+00 : f32
    %111 = vector.broadcast %cst_45 : f32 to vector<1x64xf32>
    %112 = arith.cmpf ogt, %110, %111 : vector<1x64xf32>
    %cst_46 = arith.constant -1.000000e+09 : f32
    %113 = vector.shape_cast %112 : vector<1x64xi1> to vector<1x64xi1>
    %114 = vector.broadcast %113 : vector<1x64xi1> to vector<16x64xi1>
    %115 = vector.broadcast %cst_46 : f32 to vector<16x64xf32>
    %116 = arith.select %114, %82, %115 : vector<16x64xi1>, vector<16x64xf32>
    %cst_47 = arith.constant dense<0xFF800000> : vector<16xf32>
    %117 = vector.multi_reduction <maximumf>, %116, %cst_47 [1] : vector<16x64xf32> to vector<16xf32>
    %118 = vector.shape_cast %117 : vector<16xf32> to vector<16x1xf32>
    %119 = vector.broadcast %118 : vector<16x1xf32> to vector<16x64xf32>
    %120 = vector.broadcast %110 : vector<1x64xf32> to vector<16x64xf32>
    %121 = arith.mulf %119, %120 : vector<16x64xf32>
    %122 = arith.addf %109, %121 : vector<16x64xf32>
    %123 = vector.extract_strided_slice %73 {offsets = [48, 0], sizes = [1, 64], strides = [1, 1]} : vector<64x64xf32> to vector<1x64xf32>
    %cst_48 = arith.constant 0.000000e+00 : f32
    %124 = vector.broadcast %cst_48 : f32 to vector<1x64xf32>
    %125 = arith.cmpf ogt, %123, %124 : vector<1x64xf32>
    %cst_49 = arith.constant -1.000000e+09 : f32
    %126 = vector.shape_cast %125 : vector<1x64xi1> to vector<1x64xi1>
    %127 = vector.broadcast %126 : vector<1x64xi1> to vector<16x64xi1>
    %128 = vector.broadcast %cst_49 : f32 to vector<16x64xf32>
    %129 = arith.select %127, %82, %128 : vector<16x64xi1>, vector<16x64xf32>
    %cst_50 = arith.constant dense<0xFF800000> : vector<16xf32>
    %130 = vector.multi_reduction <maximumf>, %129, %cst_50 [1] : vector<16x64xf32> to vector<16xf32>
    %131 = vector.shape_cast %130 : vector<16xf32> to vector<16x1xf32>
    %132 = vector.broadcast %131 : vector<16x1xf32> to vector<16x64xf32>
    %133 = vector.broadcast %123 : vector<1x64xf32> to vector<16x64xf32>
    %134 = arith.mulf %132, %133 : vector<16x64xf32>
    %135 = arith.addf %122, %134 : vector<16x64xf32>
    %136 = arith.subf %82, %135 : vector<16x64xf32>
    %137 = math.exp %136 : vector<16x64xf32>
    %cst_51 = arith.constant dense<0.000000e+00> : vector<16x64xf32>
    %138 = tpu.matmul %137, %73, %cst_51 {dimension_numbers = #tpu.dot_dimension_numbers<[1], [0], [0], [1], [0, 0, 1, 1], [], []>} : vector<16x64xf32>, vector<64x64xf32>, vector<16x64xf32> -> vector<16x64xf32>
    %139 = arith.divf %137, %138 : vector<16x64xf32>
    %cst_52 = arith.constant dense<0.000000e+00> : vector<16x32xf32>
    %140 = tpu.matmul %139, %77, %cst_52 {dimension_numbers = #tpu.dot_dimension_numbers<[1], [0], [0], [1], [0, 0, 1, 1], [], []>} : vector<16x64xf32>, vector<64x32xf32>, vector<16x32xf32> -> vector<16x32xf32>
    %c16 = arith.constant 16 : index
    %c0_53 = arith.constant 0 : index
    %141 = vector.load %arg4[%c16, %c0_53] : memref<752x32xf32, #tpu.memory_space<vmem>>, vector<32x32xf32>
    %cst_54 = arith.constant dense<0.000000e+00> : vector<16x32xf32>
    %142 = tpu.matmul %140, %141, %cst_54 {dimension_numbers = #tpu.dot_dimension_numbers<[1], [0], [0], [1], [0, 0, 1, 1], [], []>} : vector<16x32xf32>, vector<32x32xf32>, vector<16x32xf32> -> vector<16x32xf32>
    %c7 = arith.constant 7 : index
    %c0_55 = arith.constant 0 : index
    %143 = vector.load %arg1[%c7, %c0_55] : memref<80x128xf32, #tpu.memory_space<vmem>>, vector<1x32xf32>
    %144 = vector.broadcast %143 : vector<1x32xf32> to vector<16x32xf32>
    %145 = arith.addf %142, %144 : vector<16x32xf32>
    %146 = arith.addf %31, %145 : vector<16x32xf32>
    %c8 = arith.constant 8 : index
    %c0_56 = arith.constant 0 : index
    %147 = vector.load %arg1[%c8, %c0_56] : memref<80x128xf32, #tpu.memory_space<vmem>>, vector<1x32xf32>
    %c9 = arith.constant 9 : index
    %c0_57 = arith.constant 0 : index
    %148 = vector.load %arg1[%c9, %c0_57] : memref<80x128xf32, #tpu.memory_space<vmem>>, vector<1x32xf32>
    %cst_58 = arith.constant dense<0.000000e+00> : vector<16xf32>
    %149 = vector.multi_reduction <add>, %146, %cst_58 [1] : vector<16x32xf32> to vector<16xf32>
    %150 = vector.shape_cast %149 : vector<16xf32> to vector<16x1xf32>
    %cst_59 = arith.constant 3.200000e+01 : f32
    %151 = vector.broadcast %cst_59 : f32 to vector<16x1xf32>
    %152 = arith.divf %150, %151 : vector<16x1xf32>
    %153 = vector.broadcast %152 : vector<16x1xf32> to vector<16x32xf32>
    %154 = arith.subf %146, %153 : vector<16x32xf32>
    %155 = arith.mulf %154, %154 : vector<16x32xf32>
    %cst_60 = arith.constant dense<0.000000e+00> : vector<16xf32>
    %156 = vector.multi_reduction <add>, %155, %cst_60 [1] : vector<16x32xf32> to vector<16xf32>
    %157 = vector.shape_cast %156 : vector<16xf32> to vector<16x1xf32>
    %cst_61 = arith.constant 3.200000e+01 : f32
    %158 = vector.broadcast %cst_61 : f32 to vector<16x1xf32>
    %159 = arith.divf %157, %158 : vector<16x1xf32>
    %160 = vector.broadcast %152 : vector<16x1xf32> to vector<16x32xf32>
    %161 = arith.subf %146, %160 : vector<16x32xf32>
    %cst_62 = arith.constant 9.99999974E-6 : f32
    %162 = vector.broadcast %cst_62 : f32 to vector<16x1xf32>
    %163 = arith.addf %159, %162 : vector<16x1xf32>
    %164 = math.rsqrt %163 : vector<16x1xf32>
    %165 = vector.broadcast %164 : vector<16x1xf32> to vector<16x32xf32>
    %166 = arith.mulf %161, %165 : vector<16x32xf32>
    %167 = vector.broadcast %147 : vector<1x32xf32> to vector<16x32xf32>
    %168 = arith.mulf %166, %167 : vector<16x32xf32>
    %169 = vector.broadcast %148 : vector<1x32xf32> to vector<16x32xf32>
    %170 = arith.addf %168, %169 : vector<16x32xf32>
    %c0_63 = arith.constant 0 : index
    %c0_64 = arith.constant 0 : index
    %171 = vector.load %arg6[%c0_63, %c0_64] : memref<96x64xf32, #tpu.memory_space<vmem>>, vector<32x64xf32>
    %cst_65 = arith.constant dense<0.000000e+00> : vector<16x64xf32>
    %172 = tpu.matmul %170, %171, %cst_65 {dimension_numbers = #tpu.dot_dimension_numbers<[1], [0], [0], [1], [0, 0, 1, 1], [], []>} : vector<16x32xf32>, vector<32x64xf32>, vector<16x64xf32> -> vector<16x64xf32>
    %c17 = arith.constant 17 : index
    %c0_66 = arith.constant 0 : index
    %173 = vector.load %arg1[%c17, %c0_66] : memref<80x128xf32, #tpu.memory_space<vmem>>, vector<1x64xf32>
    %174 = vector.broadcast %173 : vector<1x64xf32> to vector<16x64xf32>
    %175 = arith.addf %172, %174 : vector<16x64xf32>
    %cst_67 = arith.constant 0.707106769 : f32
    %176 = vector.broadcast %cst_67 : f32 to vector<16x64xf32>
    %177 = arith.mulf %175, %176 : vector<16x64xf32>
    %178 = math.absf %177 : vector<16x64xf32>
    %cst_68 = arith.constant 0.327591091 : f32
    %179 = vector.broadcast %cst_68 : f32 to vector<16x64xf32>
    %180 = arith.mulf %179, %178 : vector<16x64xf32>
    %cst_69 = arith.constant 1.000000e+00 : f32
    %181 = vector.broadcast %cst_69 : f32 to vector<16x64xf32>
    %182 = arith.addf %181, %180 : vector<16x64xf32>
    %183 = tpu.reciprocal %182 {approx = true} : vector<16x64xf32> -> vector<16x64xf32>
    %cst_70 = arith.constant 1.06140542 : f32
    %184 = vector.broadcast %cst_70 : f32 to vector<16x64xf32>
    %185 = arith.mulf %184, %183 : vector<16x64xf32>
    %cst_71 = arith.constant -1.45315206 : f32
    %186 = vector.broadcast %cst_71 : f32 to vector<16x64xf32>
    %187 = arith.addf %185, %186 : vector<16x64xf32>
    %188 = arith.mulf %187, %183 : vector<16x64xf32>
    %cst_72 = arith.constant 1.42141378 : f32
    %189 = vector.broadcast %cst_72 : f32 to vector<16x64xf32>
    %190 = arith.addf %188, %189 : vector<16x64xf32>
    %191 = arith.mulf %190, %183 : vector<16x64xf32>
    %cst_73 = arith.constant -0.284496725 : f32
    %192 = vector.broadcast %cst_73 : f32 to vector<16x64xf32>
    %193 = arith.addf %191, %192 : vector<16x64xf32>
    %194 = arith.mulf %193, %183 : vector<16x64xf32>
    %cst_74 = arith.constant 0.254829586 : f32
    %195 = vector.broadcast %cst_74 : f32 to vector<16x64xf32>
    %196 = arith.addf %194, %195 : vector<16x64xf32>
    %197 = arith.mulf %196, %183 : vector<16x64xf32>
    %cst_75 = arith.constant 0.000000e+00 : f32
    %198 = vector.broadcast %cst_75 : f32 to vector<16x64xf32>
    %199 = arith.subf %198, %178 : vector<16x64xf32>
    %200 = arith.mulf %199, %178 : vector<16x64xf32>
    %201 = math.exp %200 : vector<16x64xf32>
    %202 = arith.mulf %197, %201 : vector<16x64xf32>
    %cst_76 = arith.constant 1.000000e+00 : f32
    %203 = vector.broadcast %cst_76 : f32 to vector<16x64xf32>
    %204 = arith.subf %203, %202 : vector<16x64xf32>
    %cst_77 = arith.constant 0.000000e+00 : f32
    %205 = vector.broadcast %cst_77 : f32 to vector<16x64xf32>
    %206 = arith.cmpf oge, %177, %205 : vector<16x64xf32>
    %cst_78 = arith.constant 0.000000e+00 : f32
    %207 = vector.broadcast %cst_78 : f32 to vector<16x64xf32>
    %208 = arith.subf %207, %204 : vector<16x64xf32>
    %209 = arith.select %206, %204, %208 : vector<16x64xi1>, vector<16x64xf32>
    %cst_79 = arith.constant 5.000000e-01 : f32
    %210 = vector.broadcast %cst_79 : f32 to vector<16x64xf32>
    %211 = arith.mulf %210, %175 : vector<16x64xf32>
    %cst_80 = arith.constant 1.000000e+00 : f32
    %212 = vector.broadcast %cst_80 : f32 to vector<16x64xf32>
    %213 = arith.addf %212, %209 : vector<16x64xf32>
    %214 = arith.mulf %211, %213 : vector<16x64xf32>
    %c80 = arith.constant 80 : index
    %c0_81 = arith.constant 0 : index
    %215 = vector.load %arg4[%c80, %c0_81] : memref<752x32xf32, #tpu.memory_space<vmem>>, vector<64x32xf32>
    %cst_82 = arith.constant dense<0.000000e+00> : vector<16x32xf32>
    %216 = tpu.matmul %214, %215, %cst_82 {dimension_numbers = #tpu.dot_dimension_numbers<[1], [0], [0], [1], [0, 0, 1, 1], [], []>} : vector<16x64xf32>, vector<64x32xf32>, vector<16x32xf32> -> vector<16x32xf32>
    %c10 = arith.constant 10 : index
    %c0_83 = arith.constant 0 : index
    %217 = vector.load %arg1[%c10, %c0_83] : memref<80x128xf32, #tpu.memory_space<vmem>>, vector<1x32xf32>
    %218 = vector.broadcast %217 : vector<1x32xf32> to vector<16x32xf32>
    %219 = arith.addf %216, %218 : vector<16x32xf32>
    %220 = arith.addf %146, %219 : vector<16x32xf32>
    %c11 = arith.constant 11 : index
    %c0_84 = arith.constant 0 : index
    %221 = vector.load %arg1[%c11, %c0_84] : memref<80x128xf32, #tpu.memory_space<vmem>>, vector<1x32xf32>
    %c12 = arith.constant 12 : index
    %c0_85 = arith.constant 0 : index
    %222 = vector.load %arg1[%c12, %c0_85] : memref<80x128xf32, #tpu.memory_space<vmem>>, vector<1x32xf32>
    %cst_86 = arith.constant dense<0.000000e+00> : vector<16xf32>
    %223 = vector.multi_reduction <add>, %220, %cst_86 [1] : vector<16x32xf32> to vector<16xf32>
    %224 = vector.shape_cast %223 : vector<16xf32> to vector<16x1xf32>
    %cst_87 = arith.constant 3.200000e+01 : f32
    %225 = vector.broadcast %cst_87 : f32 to vector<16x1xf32>
    %226 = arith.divf %224, %225 : vector<16x1xf32>
    %227 = vector.broadcast %226 : vector<16x1xf32> to vector<16x32xf32>
    %228 = arith.subf %220, %227 : vector<16x32xf32>
    %229 = arith.mulf %228, %228 : vector<16x32xf32>
    %cst_88 = arith.constant dense<0.000000e+00> : vector<16xf32>
    %230 = vector.multi_reduction <add>, %229, %cst_88 [1] : vector<16x32xf32> to vector<16xf32>
    %231 = vector.shape_cast %230 : vector<16xf32> to vector<16x1xf32>
    %cst_89 = arith.constant 3.200000e+01 : f32
    %232 = vector.broadcast %cst_89 : f32 to vector<16x1xf32>
    %233 = arith.divf %231, %232 : vector<16x1xf32>
    %234 = vector.broadcast %226 : vector<16x1xf32> to vector<16x32xf32>
    %235 = arith.subf %220, %234 : vector<16x32xf32>
    %cst_90 = arith.constant 9.99999974E-6 : f32
    %236 = vector.broadcast %cst_90 : f32 to vector<16x1xf32>
    %237 = arith.addf %233, %236 : vector<16x1xf32>
    %238 = math.rsqrt %237 : vector<16x1xf32>
    %239 = vector.broadcast %238 : vector<16x1xf32> to vector<16x32xf32>
    %240 = arith.mulf %235, %239 : vector<16x32xf32>
    %241 = vector.broadcast %221 : vector<1x32xf32> to vector<16x32xf32>
    %242 = arith.mulf %240, %241 : vector<16x32xf32>
    %243 = vector.broadcast %222 : vector<1x32xf32> to vector<16x32xf32>
    %244 = arith.addf %242, %243 : vector<16x32xf32>
    %c32 = arith.constant 32 : index
    %c0_91 = arith.constant 0 : index
    %245 = vector.load %arg5[%c32, %c0_91] : memref<96x96xf32, #tpu.memory_space<vmem>>, vector<32x96xf32>
    %cst_92 = arith.constant dense<0.000000e+00> : vector<16x96xf32>
    %246 = tpu.matmul %244, %245, %cst_92 {dimension_numbers = #tpu.dot_dimension_numbers<[1], [0], [0], [1], [0, 0, 1, 1], [], []>} : vector<16x32xf32>, vector<32x96xf32>, vector<16x96xf32> -> vector<16x96xf32>
    %c4 = arith.constant 4 : index
    %c0_93 = arith.constant 0 : index
    %247 = vector.load %arg1[%c4, %c0_93] : memref<80x128xf32, #tpu.memory_space<vmem>>, vector<1x96xf32>
    %248 = vector.broadcast %247 : vector<1x96xf32> to vector<16x96xf32>
    %249 = arith.addf %246, %248 : vector<16x96xf32>
    %250 = vector.extract_strided_slice %249 {offsets = [0, 0], sizes = [16, 32], strides = [1, 1]} : vector<16x96xf32> to vector<16x32xf32>
    %251 = vector.extract_strided_slice %249 {offsets = [0, 32], sizes = [16, 64], strides = [1, 1]} : vector<16x96xf32> to vector<16x64xf32>
    %252 = tpu.concatenate %250, %250, %250, %250, %250, %250, %250, %250 in 1 : vector<16x32xf32>, vector<16x32xf32>, vector<16x32xf32>, vector<16x32xf32>, vector<16x32xf32>, vector<16x32xf32>, vector<16x32xf32>, vector<16x32xf32> -> vector<16x256xf32>
    %253 = arith.mulf %252, %32 : vector<16x256xf32>
    %c496 = arith.constant 496 : index
    %c0_94 = arith.constant 0 : index
    %254 = vector.load %arg4[%c496, %c0_94] : memref<752x32xf32, #tpu.memory_space<vmem>>, vector<256x32xf32>
    %cst_95 = arith.constant dense<0.000000e+00> : vector<16x32xf32>
    %255 = tpu.matmul %253, %254, %cst_95 {dimension_numbers = #tpu.dot_dimension_numbers<[1], [0], [0], [1], [0, 0, 1, 1], [], []>} : vector<16x256xf32>, vector<256x32xf32>, vector<16x32xf32> -> vector<16x32xf32>
    %cst_96 = arith.constant dense<0.000000e+00> : vector<16x64xf32>
    %256 = tpu.matmul %255, %33, %cst_96 {dimension_numbers = #tpu.dot_dimension_numbers<[1], [0], [0], [1], [0, 0, 1, 1], [], []>} : vector<16x32xf32>, vector<32x64xf32>, vector<16x64xf32> -> vector<16x64xf32>
    %c192_97 = arith.constant 192 : index
    %c0_98 = arith.constant 0 : index
    %257 = vector.load %arg2[%c192_97, %c0_98] : memref<320x64xf32, #tpu.memory_space<vmem>>, vector<16x64xf32>
    %c0_99 = arith.constant 0 : index
    %c0_100 = arith.constant 0 : index
    %258 = vector.load %arg2[%c0_99, %c0_100] : memref<320x64xf32, #tpu.memory_space<vmem>>, vector<64x16xf32>
    %c64_101 = arith.constant 64 : index
    %c0_102 = arith.constant 0 : index
    %259 = vector.load %arg2[%c64_101, %c0_102] : memref<320x64xf32, #tpu.memory_space<vmem>>, vector<64x64xf32>
    %c128_103 = arith.constant 128 : index
    %c0_104 = arith.constant 0 : index
    %260 = vector.load %arg2[%c128_103, %c0_104] : memref<320x64xf32, #tpu.memory_space<vmem>>, vector<64x64xf32>
    %cst_105 = arith.constant dense<0.000000e+00> : vector<64x64xf32>
    %261 = tpu.matmul %258, %251, %cst_105 {dimension_numbers = #tpu.dot_dimension_numbers<[1], [0], [0], [1], [0, 0, 1, 1], [], []>} : vector<64x16xf32>, vector<16x64xf32>, vector<64x64xf32> -> vector<64x64xf32>
    %262 = arith.mulf %261, %259 : vector<64x64xf32>
    %263 = vector.extract_strided_slice %262 {offsets = [0, 0], sizes = [64, 32], strides = [1, 1]} : vector<64x64xf32> to vector<64x32xf32>
    %264 = vector.extract_strided_slice %262 {offsets = [0, 32], sizes = [64, 32], strides = [1, 1]} : vector<64x64xf32> to vector<64x32xf32>
    %cst_106 = arith.constant dense<0.000000e+00> : vector<16x64xf32>
    %265 = tpu.matmul %250, %263, %cst_106 {dimension_numbers = #tpu.dot_dimension_numbers<[1], [1], [0], [0], [0, 0, 1, 0], [], []>} : vector<16x32xf32>, vector<64x32xf32>, vector<16x64xf32> -> vector<16x64xf32>
    %cst_107 = arith.constant 0.353553385 : f32
    %266 = vector.broadcast %cst_107 : f32 to vector<16x64xf32>
    %267 = arith.mulf %265, %266 : vector<16x64xf32>
    %268 = arith.addf %267, %256 : vector<16x64xf32>
    %269 = arith.addf %268, %257 : vector<16x64xf32>
    %270 = vector.extract_strided_slice %260 {offsets = [0, 0], sizes = [1, 64], strides = [1, 1]} : vector<64x64xf32> to vector<1x64xf32>
    %cst_108 = arith.constant 0.000000e+00 : f32
    %271 = vector.broadcast %cst_108 : f32 to vector<1x64xf32>
    %272 = arith.cmpf ogt, %270, %271 : vector<1x64xf32>
    %cst_109 = arith.constant -1.000000e+09 : f32
    %273 = vector.shape_cast %272 : vector<1x64xi1> to vector<1x64xi1>
    %274 = vector.broadcast %273 : vector<1x64xi1> to vector<16x64xi1>
    %275 = vector.broadcast %cst_109 : f32 to vector<16x64xf32>
    %276 = arith.select %274, %269, %275 : vector<16x64xi1>, vector<16x64xf32>
    %cst_110 = arith.constant dense<0xFF800000> : vector<16xf32>
    %277 = vector.multi_reduction <maximumf>, %276, %cst_110 [1] : vector<16x64xf32> to vector<16xf32>
    %278 = vector.shape_cast %277 : vector<16xf32> to vector<16x1xf32>
    %279 = vector.broadcast %278 : vector<16x1xf32> to vector<16x64xf32>
    %280 = vector.broadcast %270 : vector<1x64xf32> to vector<16x64xf32>
    %281 = arith.mulf %279, %280 : vector<16x64xf32>
    %cst_111 = arith.constant 0.000000e+00 : f32
    %282 = vector.broadcast %cst_111 : f32 to vector<16x64xf32>
    %283 = arith.addf %282, %281 : vector<16x64xf32>
    %284 = vector.extract_strided_slice %260 {offsets = [16, 0], sizes = [1, 64], strides = [1, 1]} : vector<64x64xf32> to vector<1x64xf32>
    %cst_112 = arith.constant 0.000000e+00 : f32
    %285 = vector.broadcast %cst_112 : f32 to vector<1x64xf32>
    %286 = arith.cmpf ogt, %284, %285 : vector<1x64xf32>
    %cst_113 = arith.constant -1.000000e+09 : f32
    %287 = vector.shape_cast %286 : vector<1x64xi1> to vector<1x64xi1>
    %288 = vector.broadcast %287 : vector<1x64xi1> to vector<16x64xi1>
    %289 = vector.broadcast %cst_113 : f32 to vector<16x64xf32>
    %290 = arith.select %288, %269, %289 : vector<16x64xi1>, vector<16x64xf32>
    %cst_114 = arith.constant dense<0xFF800000> : vector<16xf32>
    %291 = vector.multi_reduction <maximumf>, %290, %cst_114 [1] : vector<16x64xf32> to vector<16xf32>
    %292 = vector.shape_cast %291 : vector<16xf32> to vector<16x1xf32>
    %293 = vector.broadcast %292 : vector<16x1xf32> to vector<16x64xf32>
    %294 = vector.broadcast %284 : vector<1x64xf32> to vector<16x64xf32>
    %295 = arith.mulf %293, %294 : vector<16x64xf32>
    %296 = arith.addf %283, %295 : vector<16x64xf32>
    %297 = vector.extract_strided_slice %260 {offsets = [32, 0], sizes = [1, 64], strides = [1, 1]} : vector<64x64xf32> to vector<1x64xf32>
    %cst_115 = arith.constant 0.000000e+00 : f32
    %298 = vector.broadcast %cst_115 : f32 to vector<1x64xf32>
    %299 = arith.cmpf ogt, %297, %298 : vector<1x64xf32>
    %cst_116 = arith.constant -1.000000e+09 : f32
    %300 = vector.shape_cast %299 : vector<1x64xi1> to vector<1x64xi1>
    %301 = vector.broadcast %300 : vector<1x64xi1> to vector<16x64xi1>
    %302 = vector.broadcast %cst_116 : f32 to vector<16x64xf32>
    %303 = arith.select %301, %269, %302 : vector<16x64xi1>, vector<16x64xf32>
    %cst_117 = arith.constant dense<0xFF800000> : vector<16xf32>
    %304 = vector.multi_reduction <maximumf>, %303, %cst_117 [1] : vector<16x64xf32> to vector<16xf32>
    %305 = vector.shape_cast %304 : vector<16xf32> to vector<16x1xf32>
    %306 = vector.broadcast %305 : vector<16x1xf32> to vector<16x64xf32>
    %307 = vector.broadcast %297 : vector<1x64xf32> to vector<16x64xf32>
    %308 = arith.mulf %306, %307 : vector<16x64xf32>
    %309 = arith.addf %296, %308 : vector<16x64xf32>
    %310 = vector.extract_strided_slice %260 {offsets = [48, 0], sizes = [1, 64], strides = [1, 1]} : vector<64x64xf32> to vector<1x64xf32>
    %cst_118 = arith.constant 0.000000e+00 : f32
    %311 = vector.broadcast %cst_118 : f32 to vector<1x64xf32>
    %312 = arith.cmpf ogt, %310, %311 : vector<1x64xf32>
    %cst_119 = arith.constant -1.000000e+09 : f32
    %313 = vector.shape_cast %312 : vector<1x64xi1> to vector<1x64xi1>
    %314 = vector.broadcast %313 : vector<1x64xi1> to vector<16x64xi1>
    %315 = vector.broadcast %cst_119 : f32 to vector<16x64xf32>
    %316 = arith.select %314, %269, %315 : vector<16x64xi1>, vector<16x64xf32>
    %cst_120 = arith.constant dense<0xFF800000> : vector<16xf32>
    %317 = vector.multi_reduction <maximumf>, %316, %cst_120 [1] : vector<16x64xf32> to vector<16xf32>
    %318 = vector.shape_cast %317 : vector<16xf32> to vector<16x1xf32>
    %319 = vector.broadcast %318 : vector<16x1xf32> to vector<16x64xf32>
    %320 = vector.broadcast %310 : vector<1x64xf32> to vector<16x64xf32>
    %321 = arith.mulf %319, %320 : vector<16x64xf32>
    %322 = arith.addf %309, %321 : vector<16x64xf32>
    %323 = arith.subf %269, %322 : vector<16x64xf32>
    %324 = math.exp %323 : vector<16x64xf32>
    %cst_121 = arith.constant dense<0.000000e+00> : vector<16x64xf32>
    %325 = tpu.matmul %324, %260, %cst_121 {dimension_numbers = #tpu.dot_dimension_numbers<[1], [0], [0], [1], [0, 0, 1, 1], [], []>} : vector<16x64xf32>, vector<64x64xf32>, vector<16x64xf32> -> vector<16x64xf32>
    %326 = arith.divf %324, %325 : vector<16x64xf32>
    %cst_122 = arith.constant dense<0.000000e+00> : vector<16x32xf32>
    %327 = tpu.matmul %326, %264, %cst_122 {dimension_numbers = #tpu.dot_dimension_numbers<[1], [0], [0], [1], [0, 0, 1, 1], [], []>} : vector<16x64xf32>, vector<64x32xf32>, vector<16x32xf32> -> vector<16x32xf32>
    %c48 = arith.constant 48 : index
    %c0_123 = arith.constant 0 : index
    %328 = vector.load %arg4[%c48, %c0_123] : memref<752x32xf32, #tpu.memory_space<vmem>>, vector<32x32xf32>
    %cst_124 = arith.constant dense<0.000000e+00> : vector<16x32xf32>
    %329 = tpu.matmul %327, %328, %cst_124 {dimension_numbers = #tpu.dot_dimension_numbers<[1], [0], [0], [1], [0, 0, 1, 1], [], []>} : vector<16x32xf32>, vector<32x32xf32>, vector<16x32xf32> -> vector<16x32xf32>
    %c13 = arith.constant 13 : index
    %c0_125 = arith.constant 0 : index
    %330 = vector.load %arg1[%c13, %c0_125] : memref<80x128xf32, #tpu.memory_space<vmem>>, vector<1x32xf32>
    %331 = vector.broadcast %330 : vector<1x32xf32> to vector<16x32xf32>
    %332 = arith.addf %329, %331 : vector<16x32xf32>
    %333 = arith.addf %220, %332 : vector<16x32xf32>
    %c14 = arith.constant 14 : index
    %c0_126 = arith.constant 0 : index
    %334 = vector.load %arg1[%c14, %c0_126] : memref<80x128xf32, #tpu.memory_space<vmem>>, vector<1x32xf32>
    %c15 = arith.constant 15 : index
    %c0_127 = arith.constant 0 : index
    %335 = vector.load %arg1[%c15, %c0_127] : memref<80x128xf32, #tpu.memory_space<vmem>>, vector<1x32xf32>
    %cst_128 = arith.constant dense<0.000000e+00> : vector<16xf32>
    %336 = vector.multi_reduction <add>, %333, %cst_128 [1] : vector<16x32xf32> to vector<16xf32>
    %337 = vector.shape_cast %336 : vector<16xf32> to vector<16x1xf32>
    %cst_129 = arith.constant 3.200000e+01 : f32
    %338 = vector.broadcast %cst_129 : f32 to vector<16x1xf32>
    %339 = arith.divf %337, %338 : vector<16x1xf32>
    %340 = vector.broadcast %339 : vector<16x1xf32> to vector<16x32xf32>
    %341 = arith.subf %333, %340 : vector<16x32xf32>
    %342 = arith.mulf %341, %341 : vector<16x32xf32>
    %cst_130 = arith.constant dense<0.000000e+00> : vector<16xf32>
    %343 = vector.multi_reduction <add>, %342, %cst_130 [1] : vector<16x32xf32> to vector<16xf32>
    %344 = vector.shape_cast %343 : vector<16xf32> to vector<16x1xf32>
    %cst_131 = arith.constant 3.200000e+01 : f32
    %345 = vector.broadcast %cst_131 : f32 to vector<16x1xf32>
    %346 = arith.divf %344, %345 : vector<16x1xf32>
    %347 = vector.broadcast %339 : vector<16x1xf32> to vector<16x32xf32>
    %348 = arith.subf %333, %347 : vector<16x32xf32>
    %cst_132 = arith.constant 9.99999974E-6 : f32
    %349 = vector.broadcast %cst_132 : f32 to vector<16x1xf32>
    %350 = arith.addf %346, %349 : vector<16x1xf32>
    %351 = math.rsqrt %350 : vector<16x1xf32>
    %352 = vector.broadcast %351 : vector<16x1xf32> to vector<16x32xf32>
    %353 = arith.mulf %348, %352 : vector<16x32xf32>
    %354 = vector.broadcast %334 : vector<1x32xf32> to vector<16x32xf32>
    %355 = arith.mulf %353, %354 : vector<16x32xf32>
    %356 = vector.broadcast %335 : vector<1x32xf32> to vector<16x32xf32>
    %357 = arith.addf %355, %356 : vector<16x32xf32>
    %c32_133 = arith.constant 32 : index
    %c0_134 = arith.constant 0 : index
    %358 = vector.load %arg6[%c32_133, %c0_134] : memref<96x64xf32, #tpu.memory_space<vmem>>, vector<32x64xf32>
    %cst_135 = arith.constant dense<0.000000e+00> : vector<16x64xf32>
    %359 = tpu.matmul %357, %358, %cst_135 {dimension_numbers = #tpu.dot_dimension_numbers<[1], [0], [0], [1], [0, 0, 1, 1], [], []>} : vector<16x32xf32>, vector<32x64xf32>, vector<16x64xf32> -> vector<16x64xf32>
    %c18 = arith.constant 18 : index
    %c0_136 = arith.constant 0 : index
    %360 = vector.load %arg1[%c18, %c0_136] : memref<80x128xf32, #tpu.memory_space<vmem>>, vector<1x64xf32>
    %361 = vector.broadcast %360 : vector<1x64xf32> to vector<16x64xf32>
    %362 = arith.addf %359, %361 : vector<16x64xf32>
    %cst_137 = arith.constant 0.707106769 : f32
    %363 = vector.broadcast %cst_137 : f32 to vector<16x64xf32>
    %364 = arith.mulf %362, %363 : vector<16x64xf32>
    %365 = math.absf %364 : vector<16x64xf32>
    %cst_138 = arith.constant 0.327591091 : f32
    %366 = vector.broadcast %cst_138 : f32 to vector<16x64xf32>
    %367 = arith.mulf %366, %365 : vector<16x64xf32>
    %cst_139 = arith.constant 1.000000e+00 : f32
    %368 = vector.broadcast %cst_139 : f32 to vector<16x64xf32>
    %369 = arith.addf %368, %367 : vector<16x64xf32>
    %370 = tpu.reciprocal %369 {approx = true} : vector<16x64xf32> -> vector<16x64xf32>
    %cst_140 = arith.constant 1.06140542 : f32
    %371 = vector.broadcast %cst_140 : f32 to vector<16x64xf32>
    %372 = arith.mulf %371, %370 : vector<16x64xf32>
    %cst_141 = arith.constant -1.45315206 : f32
    %373 = vector.broadcast %cst_141 : f32 to vector<16x64xf32>
    %374 = arith.addf %372, %373 : vector<16x64xf32>
    %375 = arith.mulf %374, %370 : vector<16x64xf32>
    %cst_142 = arith.constant 1.42141378 : f32
    %376 = vector.broadcast %cst_142 : f32 to vector<16x64xf32>
    %377 = arith.addf %375, %376 : vector<16x64xf32>
    %378 = arith.mulf %377, %370 : vector<16x64xf32>
    %cst_143 = arith.constant -0.284496725 : f32
    %379 = vector.broadcast %cst_143 : f32 to vector<16x64xf32>
    %380 = arith.addf %378, %379 : vector<16x64xf32>
    %381 = arith.mulf %380, %370 : vector<16x64xf32>
    %cst_144 = arith.constant 0.254829586 : f32
    %382 = vector.broadcast %cst_144 : f32 to vector<16x64xf32>
    %383 = arith.addf %381, %382 : vector<16x64xf32>
    %384 = arith.mulf %383, %370 : vector<16x64xf32>
    %cst_145 = arith.constant 0.000000e+00 : f32
    %385 = vector.broadcast %cst_145 : f32 to vector<16x64xf32>
    %386 = arith.subf %385, %365 : vector<16x64xf32>
    %387 = arith.mulf %386, %365 : vector<16x64xf32>
    %388 = math.exp %387 : vector<16x64xf32>
    %389 = arith.mulf %384, %388 : vector<16x64xf32>
    %cst_146 = arith.constant 1.000000e+00 : f32
    %390 = vector.broadcast %cst_146 : f32 to vector<16x64xf32>
    %391 = arith.subf %390, %389 : vector<16x64xf32>
    %cst_147 = arith.constant 0.000000e+00 : f32
    %392 = vector.broadcast %cst_147 : f32 to vector<16x64xf32>
    %393 = arith.cmpf oge, %364, %392 : vector<16x64xf32>
    %cst_148 = arith.constant 0.000000e+00 : f32
    %394 = vector.broadcast %cst_148 : f32 to vector<16x64xf32>
    %395 = arith.subf %394, %391 : vector<16x64xf32>
    %396 = arith.select %393, %391, %395 : vector<16x64xi1>, vector<16x64xf32>
    %cst_149 = arith.constant 5.000000e-01 : f32
    %397 = vector.broadcast %cst_149 : f32 to vector<16x64xf32>
    %398 = arith.mulf %397, %362 : vector<16x64xf32>
    %cst_150 = arith.constant 1.000000e+00 : f32
    %399 = vector.broadcast %cst_150 : f32 to vector<16x64xf32>
    %400 = arith.addf %399, %396 : vector<16x64xf32>
    %401 = arith.mulf %398, %400 : vector<16x64xf32>
    %c144 = arith.constant 144 : index
    %c0_151 = arith.constant 0 : index
    %402 = vector.load %arg4[%c144, %c0_151] : memref<752x32xf32, #tpu.memory_space<vmem>>, vector<64x32xf32>
    %cst_152 = arith.constant dense<0.000000e+00> : vector<16x32xf32>
    %403 = tpu.matmul %401, %402, %cst_152 {dimension_numbers = #tpu.dot_dimension_numbers<[1], [0], [0], [1], [0, 0, 1, 1], [], []>} : vector<16x64xf32>, vector<64x32xf32>, vector<16x32xf32> -> vector<16x32xf32>
    %c16_153 = arith.constant 16 : index
    %c0_154 = arith.constant 0 : index
    %404 = vector.load %arg1[%c16_153, %c0_154] : memref<80x128xf32, #tpu.memory_space<vmem>>, vector<1x32xf32>
    %405 = vector.broadcast %404 : vector<1x32xf32> to vector<16x32xf32>
    %406 = arith.addf %403, %405 : vector<16x32xf32>
    %407 = arith.addf %333, %406 : vector<16x32xf32>
    %c64_155 = arith.constant 64 : index
    %c0_156 = arith.constant 0 : index
    %408 = vector.load %arg5[%c64_155, %c0_156] : memref<96x96xf32, #tpu.memory_space<vmem>>, vector<32x96xf32>
    %cst_157 = arith.constant dense<0.000000e+00> : vector<16x96xf32>
    %409 = tpu.matmul %407, %408, %cst_157 {dimension_numbers = #tpu.dot_dimension_numbers<[1], [0], [0], [1], [0, 0, 1, 1], [], []>} : vector<16x32xf32>, vector<32x96xf32>, vector<16x96xf32> -> vector<16x96xf32>
    %c19 = arith.constant 19 : index
    %c0_158 = arith.constant 0 : index
    %410 = vector.load %arg1[%c19, %c0_158] : memref<80x128xf32, #tpu.memory_space<vmem>>, vector<1x96xf32>
    %411 = vector.broadcast %410 : vector<1x96xf32> to vector<16x96xf32>
    %412 = arith.addf %409, %411 : vector<16x96xf32>
    %c216 = arith.constant 216 : index
    %c0_159 = arith.constant 0 : index
    %413 = vector.load %arg2[%c216, %c0_159] : memref<320x64xf32, #tpu.memory_space<vmem>>, vector<8x16xf32>
    %414 = vector.extract_strided_slice %412 {offsets = [0, 0], sizes = [16, 32], strides = [1, 1]} : vector<16x96xf32> to vector<16x32xf32>
    %cst_160 = arith.constant dense<0.000000e+00> : vector<8x32xf32>
    %415 = tpu.matmul %413, %414, %cst_160 {dimension_numbers = #tpu.dot_dimension_numbers<[1], [0], [0], [1], [0, 0, 1, 1], [], []>} : vector<8x16xf32>, vector<16x32xf32>, vector<8x32xf32> -> vector<8x32xf32>
    %416 = vector.extract_strided_slice %412 {offsets = [0, 32], sizes = [16, 64], strides = [1, 1]} : vector<16x96xf32> to vector<16x64xf32>
    %c208 = arith.constant 208 : index
    %c0_161 = arith.constant 0 : index
    %417 = vector.load %arg2[%c208, %c0_161] : memref<320x64xf32, #tpu.memory_space<vmem>>, vector<8x64xf32>
    %c0_162 = arith.constant 0 : index
    %c0_163 = arith.constant 0 : index
    %418 = vector.load %arg2[%c0_162, %c0_163] : memref<320x64xf32, #tpu.memory_space<vmem>>, vector<64x16xf32>
    %c64_164 = arith.constant 64 : index
    %c0_165 = arith.constant 0 : index
    %419 = vector.load %arg2[%c64_164, %c0_165] : memref<320x64xf32, #tpu.memory_space<vmem>>, vector<64x64xf32>
    %c128_166 = arith.constant 128 : index
    %c0_167 = arith.constant 0 : index
    %420 = vector.load %arg2[%c128_166, %c0_167] : memref<320x64xf32, #tpu.memory_space<vmem>>, vector<64x64xf32>
    %cst_168 = arith.constant dense<0.000000e+00> : vector<64x64xf32>
    %421 = tpu.matmul %418, %416, %cst_168 {dimension_numbers = #tpu.dot_dimension_numbers<[1], [0], [0], [1], [0, 0, 1, 1], [], []>} : vector<64x16xf32>, vector<16x64xf32>, vector<64x64xf32> -> vector<64x64xf32>
    %422 = arith.mulf %421, %419 : vector<64x64xf32>
    %423 = vector.extract_strided_slice %422 {offsets = [0, 0], sizes = [64, 32], strides = [1, 1]} : vector<64x64xf32> to vector<64x32xf32>
    %424 = vector.extract_strided_slice %422 {offsets = [0, 32], sizes = [64, 32], strides = [1, 1]} : vector<64x64xf32> to vector<64x32xf32>
    %cst_169 = arith.constant dense<0.000000e+00> : vector<8x64xf32>
    %425 = tpu.matmul %415, %423, %cst_169 {dimension_numbers = #tpu.dot_dimension_numbers<[1], [1], [0], [0], [0, 0, 1, 0], [], []>} : vector<8x32xf32>, vector<64x32xf32>, vector<8x64xf32> -> vector<8x64xf32>
    %cst_170 = arith.constant 0.353553385 : f32
    %426 = vector.broadcast %cst_170 : f32 to vector<8x64xf32>
    %427 = arith.mulf %425, %426 : vector<8x64xf32>
    %cst_171 = arith.constant 0.000000e+00 : f32
    %428 = vector.broadcast %cst_171 : f32 to vector<8x64xf32>
    %429 = arith.addf %427, %428 : vector<8x64xf32>
    %430 = arith.addf %429, %417 : vector<8x64xf32>
    %431 = vector.extract_strided_slice %420 {offsets = [0, 0], sizes = [1, 64], strides = [1, 1]} : vector<64x64xf32> to vector<1x64xf32>
    %cst_172 = arith.constant 0.000000e+00 : f32
    %432 = vector.broadcast %cst_172 : f32 to vector<1x64xf32>
    %433 = arith.cmpf ogt, %431, %432 : vector<1x64xf32>
    %cst_173 = arith.constant -1.000000e+09 : f32
    %434 = vector.shape_cast %433 : vector<1x64xi1> to vector<1x64xi1>
    %435 = vector.broadcast %434 : vector<1x64xi1> to vector<8x64xi1>
    %436 = vector.broadcast %cst_173 : f32 to vector<8x64xf32>
    %437 = arith.select %435, %430, %436 : vector<8x64xi1>, vector<8x64xf32>
    %cst_174 = arith.constant dense<0xFF800000> : vector<8xf32>
    %438 = vector.multi_reduction <maximumf>, %437, %cst_174 [1] : vector<8x64xf32> to vector<8xf32>
    %439 = vector.shape_cast %438 : vector<8xf32> to vector<8x1xf32>
    %440 = vector.broadcast %439 : vector<8x1xf32> to vector<8x64xf32>
    %441 = vector.broadcast %431 : vector<1x64xf32> to vector<8x64xf32>
    %442 = arith.mulf %440, %441 : vector<8x64xf32>
    %cst_175 = arith.constant 0.000000e+00 : f32
    %443 = vector.broadcast %cst_175 : f32 to vector<8x64xf32>
    %444 = arith.addf %443, %442 : vector<8x64xf32>
    %445 = vector.extract_strided_slice %420 {offsets = [16, 0], sizes = [1, 64], strides = [1, 1]} : vector<64x64xf32> to vector<1x64xf32>
    %cst_176 = arith.constant 0.000000e+00 : f32
    %446 = vector.broadcast %cst_176 : f32 to vector<1x64xf32>
    %447 = arith.cmpf ogt, %445, %446 : vector<1x64xf32>
    %cst_177 = arith.constant -1.000000e+09 : f32
    %448 = vector.shape_cast %447 : vector<1x64xi1> to vector<1x64xi1>
    %449 = vector.broadcast %448 : vector<1x64xi1> to vector<8x64xi1>
    %450 = vector.broadcast %cst_177 : f32 to vector<8x64xf32>
    %451 = arith.select %449, %430, %450 : vector<8x64xi1>, vector<8x64xf32>
    %cst_178 = arith.constant dense<0xFF800000> : vector<8xf32>
    %452 = vector.multi_reduction <maximumf>, %451, %cst_178 [1] : vector<8x64xf32> to vector<8xf32>
    %453 = vector.shape_cast %452 : vector<8xf32> to vector<8x1xf32>
    %454 = vector.broadcast %453 : vector<8x1xf32> to vector<8x64xf32>
    %455 = vector.broadcast %445 : vector<1x64xf32> to vector<8x64xf32>
    %456 = arith.mulf %454, %455 : vector<8x64xf32>
    %457 = arith.addf %444, %456 : vector<8x64xf32>
    %458 = vector.extract_strided_slice %420 {offsets = [32, 0], sizes = [1, 64], strides = [1, 1]} : vector<64x64xf32> to vector<1x64xf32>
    %cst_179 = arith.constant 0.000000e+00 : f32
    %459 = vector.broadcast %cst_179 : f32 to vector<1x64xf32>
    %460 = arith.cmpf ogt, %458, %459 : vector<1x64xf32>
    %cst_180 = arith.constant -1.000000e+09 : f32
    %461 = vector.shape_cast %460 : vector<1x64xi1> to vector<1x64xi1>
    %462 = vector.broadcast %461 : vector<1x64xi1> to vector<8x64xi1>
    %463 = vector.broadcast %cst_180 : f32 to vector<8x64xf32>
    %464 = arith.select %462, %430, %463 : vector<8x64xi1>, vector<8x64xf32>
    %cst_181 = arith.constant dense<0xFF800000> : vector<8xf32>
    %465 = vector.multi_reduction <maximumf>, %464, %cst_181 [1] : vector<8x64xf32> to vector<8xf32>
    %466 = vector.shape_cast %465 : vector<8xf32> to vector<8x1xf32>
    %467 = vector.broadcast %466 : vector<8x1xf32> to vector<8x64xf32>
    %468 = vector.broadcast %458 : vector<1x64xf32> to vector<8x64xf32>
    %469 = arith.mulf %467, %468 : vector<8x64xf32>
    %470 = arith.addf %457, %469 : vector<8x64xf32>
    %471 = vector.extract_strided_slice %420 {offsets = [48, 0], sizes = [1, 64], strides = [1, 1]} : vector<64x64xf32> to vector<1x64xf32>
    %cst_182 = arith.constant 0.000000e+00 : f32
    %472 = vector.broadcast %cst_182 : f32 to vector<1x64xf32>
    %473 = arith.cmpf ogt, %471, %472 : vector<1x64xf32>
    %cst_183 = arith.constant -1.000000e+09 : f32
    %474 = vector.shape_cast %473 : vector<1x64xi1> to vector<1x64xi1>
    %475 = vector.broadcast %474 : vector<1x64xi1> to vector<8x64xi1>
    %476 = vector.broadcast %cst_183 : f32 to vector<8x64xf32>
    %477 = arith.select %475, %430, %476 : vector<8x64xi1>, vector<8x64xf32>
    %cst_184 = arith.constant dense<0xFF800000> : vector<8xf32>
    %478 = vector.multi_reduction <maximumf>, %477, %cst_184 [1] : vector<8x64xf32> to vector<8xf32>
    %479 = vector.shape_cast %478 : vector<8xf32> to vector<8x1xf32>
    %480 = vector.broadcast %479 : vector<8x1xf32> to vector<8x64xf32>
    %481 = vector.broadcast %471 : vector<1x64xf32> to vector<8x64xf32>
    %482 = arith.mulf %480, %481 : vector<8x64xf32>
    %483 = arith.addf %470, %482 : vector<8x64xf32>
    %484 = arith.subf %430, %483 : vector<8x64xf32>
    %485 = math.exp %484 : vector<8x64xf32>
    %cst_185 = arith.constant dense<0.000000e+00> : vector<8x64xf32>
    %486 = tpu.matmul %485, %420, %cst_185 {dimension_numbers = #tpu.dot_dimension_numbers<[1], [0], [0], [1], [0, 0, 1, 1], [], []>} : vector<8x64xf32>, vector<64x64xf32>, vector<8x64xf32> -> vector<8x64xf32>
    %487 = arith.divf %485, %486 : vector<8x64xf32>
    %cst_186 = arith.constant dense<0.000000e+00> : vector<8x32xf32>
    %488 = tpu.matmul %487, %424, %cst_186 {dimension_numbers = #tpu.dot_dimension_numbers<[1], [0], [0], [1], [0, 0, 1, 1], [], []>} : vector<8x64xf32>, vector<64x32xf32>, vector<8x32xf32> -> vector<8x32xf32>
    %c208_187 = arith.constant 208 : index
    %c0_188 = arith.constant 0 : index
    %489 = vector.load %arg4[%c208_187, %c0_188] : memref<752x32xf32, #tpu.memory_space<vmem>>, vector<32x32xf32>
    %cst_189 = arith.constant dense<0.000000e+00> : vector<8x32xf32>
    %490 = tpu.matmul %488, %489, %cst_189 {dimension_numbers = #tpu.dot_dimension_numbers<[1], [0], [0], [1], [0, 0, 1, 1], [], []>} : vector<8x32xf32>, vector<32x32xf32>, vector<8x32xf32> -> vector<8x32xf32>
    %c20 = arith.constant 20 : index
    %c0_190 = arith.constant 0 : index
    %491 = vector.load %arg1[%c20, %c0_190] : memref<80x128xf32, #tpu.memory_space<vmem>>, vector<1x32xf32>
    %492 = vector.broadcast %491 : vector<1x32xf32> to vector<8x32xf32>
    %493 = arith.addf %490, %492 : vector<8x32xf32>
    %c64_191 = arith.constant 64 : index
    %c0_192 = arith.constant 0 : index
    %494 = vector.load %arg6[%c64_191, %c0_192] : memref<96x64xf32, #tpu.memory_space<vmem>>, vector<32x48xf32>
    %cst_193 = arith.constant dense<0.000000e+00> : vector<8x48xf32>
    %495 = tpu.matmul %493, %494, %cst_193 {dimension_numbers = #tpu.dot_dimension_numbers<[1], [0], [0], [1], [0, 0, 1, 1], [], []>} : vector<8x32xf32>, vector<32x48xf32>, vector<8x48xf32> -> vector<8x48xf32>
    %c21 = arith.constant 21 : index
    %c0_194 = arith.constant 0 : index
    %496 = vector.load %arg1[%c21, %c0_194] : memref<80x128xf32, #tpu.memory_space<vmem>>, vector<1x48xf32>
    %497 = vector.broadcast %496 : vector<1x48xf32> to vector<8x48xf32>
    %498 = arith.addf %495, %497 : vector<8x48xf32>
    %c224 = arith.constant 224 : index
    %c0_195 = arith.constant 0 : index
    %499 = vector.load %arg2[%c224, %c0_195] : memref<320x64xf32, #tpu.memory_space<vmem>>, vector<48x48xf32>
    %cst_196 = arith.constant dense<0.000000e+00> : vector<8x48xf32>
    %500 = tpu.matmul %498, %499, %cst_196 {dimension_numbers = #tpu.dot_dimension_numbers<[1], [0], [0], [1], [0, 0, 1, 1], [], []>} : vector<8x48xf32>, vector<48x48xf32>, vector<8x48xf32> -> vector<8x48xf32>
    %cst_197 = arith.constant 6.250000e-02 : f32
    %501 = vector.broadcast %cst_197 : f32 to vector<8x48xf32>
    %502 = arith.mulf %500, %501 : vector<8x48xf32>
    %503 = arith.subf %498, %502 : vector<8x48xf32>
    %504 = arith.mulf %503, %503 : vector<8x48xf32>
    %cst_198 = arith.constant dense<0.000000e+00> : vector<8x48xf32>
    %505 = tpu.matmul %504, %499, %cst_198 {dimension_numbers = #tpu.dot_dimension_numbers<[1], [0], [0], [1], [0, 0, 1, 1], [], []>} : vector<8x48xf32>, vector<48x48xf32>, vector<8x48xf32> -> vector<8x48xf32>
    %cst_199 = arith.constant 6.250000e-02 : f32
    %506 = vector.broadcast %cst_199 : f32 to vector<8x48xf32>
    %507 = arith.mulf %505, %506 : vector<8x48xf32>
    %cst_200 = arith.constant 9.99999974E-6 : f32
    %508 = vector.broadcast %cst_200 : f32 to vector<8x48xf32>
    %509 = arith.addf %507, %508 : vector<8x48xf32>
    %510 = math.rsqrt %509 : vector<8x48xf32>
    %511 = arith.mulf %503, %510 : vector<8x48xf32>
    %c22 = arith.constant 22 : index
    %c0_201 = arith.constant 0 : index
    %512 = vector.load %arg1[%c22, %c0_201] : memref<80x128xf32, #tpu.memory_space<vmem>>, vector<1x48xf32>
    %513 = vector.broadcast %512 : vector<1x48xf32> to vector<8x48xf32>
    %514 = arith.mulf %511, %513 : vector<8x48xf32>
    %c23 = arith.constant 23 : index
    %c0_202 = arith.constant 0 : index
    %515 = vector.load %arg1[%c23, %c0_202] : memref<80x128xf32, #tpu.memory_space<vmem>>, vector<1x48xf32>
    %516 = vector.broadcast %515 : vector<1x48xf32> to vector<8x48xf32>
    %517 = arith.addf %514, %516 : vector<8x48xf32>
    %cst_203 = arith.constant 0.000000e+00 : f32
    %518 = vector.broadcast %cst_203 : f32 to vector<8x48xf32>
    %519 = arith.maximumf %517, %518 : vector<8x48xf32>
    %c32_204 = arith.constant 32 : index
    %c0_205 = arith.constant 0 : index
    %520 = vector.load %arg1[%c32_204, %c0_205] : memref<80x128xf32, #tpu.memory_space<vmem>>, vector<48x128xf32>
    %cst_206 = arith.constant dense<0.000000e+00> : vector<8x128xf32>
    %521 = tpu.matmul %519, %520, %cst_206 {dimension_numbers = #tpu.dot_dimension_numbers<[1], [0], [0], [1], [0, 0, 1, 1], [], []>} : vector<8x48xf32>, vector<48x128xf32>, vector<8x128xf32> -> vector<8x128xf32>
    %c24 = arith.constant 24 : index
    %c0_207 = arith.constant 0 : index
    %522 = vector.load %arg1[%c24, %c0_207] : memref<80x128xf32, #tpu.memory_space<vmem>>, vector<1x128xf32>
    %523 = vector.broadcast %522 : vector<1x128xf32> to vector<8x128xf32>
    %524 = arith.addf %521, %523 : vector<8x128xf32>
    %c0_208 = arith.constant 0 : index
    %c0_209 = arith.constant 0 : index
    %525 = vector.load %arg7[%c0_208, %c0_209] : memref<8x128xf32, #tpu.memory_space<vmem>>, vector<8x128xf32>
    tpu.vector_store %arg7[%c0_208, %c0_209], %524 {strides = array<i32>} : memref<8x128xf32, #tpu.memory_space<vmem>>, vector<8x128xf32>,
    return
  }
}

</mosaic_0001>

<llo_original>
// kernel: forward.1
$region0: #{forward.1}
  #allocation0 [shape = 'u32[]', space=smem, size = 0x4, offset = 0x4, fixed_abs, tag = 'smem constant byte address 0x4 - core index']
  #allocation1 [shape = 'u32[72,128]{1,0:T(1,128)}', space=vmem, size = 0x9000, scoped, tag = 'internal scratch']
  %s0 = inlined_call_operand.vmem [shape: f32[16,16], index: 0, kind: input, shape index: {}]
  %s1 = inlined_call_operand.vmem [shape: f32[80,128], index: 1, kind: input, shape index: {}]
  %s2 = inlined_call_operand.vmem [shape: f32[320,64], index: 2, kind: input, shape index: {}]
  %s3 = inlined_call_operand.vmem [shape: f32[16,256], index: 3, kind: input, shape index: {}]
  %s4 = inlined_call_operand.vmem [shape: f32[752,32], index: 4, kind: input, shape index: {}]
  %s5 = inlined_call_operand.vmem [shape: f32[96,96], index: 5, kind: input, shape index: {}]
  %s6 = inlined_call_operand.vmem [shape: f32[96,64], index: 6, kind: input, shape index: {}]
  %s7 = inlined_call_operand.vmem [shape: f32[8,128], index: 7, kind: output, shape index: {}]
  %s8 = sld [smem:[#allocation0]]
  $region38: #{forward.1} parent=0
    _
  %s10 = ssub.s32 1, %s8
  %s11 = scalar_select 0, %s10, %s8
  // Predicated region
  $region2: #{forward.1} parent=0 // pred_check
    _
  $region3: #{forward.1} parent=0 // pred_check_branch
    %13 = sbr.rel (0) target = $region5
  $region4: #{forward.1} parent=0 // pred_region
    _
  $region5: #{forward.1} parent=0 // pred_fallthru
    _
  // Predicated region
  $region6: #{forward.1} parent=0 // pred_check
    _
  $region7: #{forward.1} parent=0 // pred_check_branch
    %15 = sbr.rel (0) target = $region9
  $region8: #{forward.1} parent=0 // pred_region
    _
  $region9: #{forward.1} parent=0 // pred_fallthru
    _
  // Predicated region
  $region10: #{forward.1} parent=0 // pred_check
    _
  $region11: #{forward.1} parent=0 // pred_check_branch
    %17 = sbr.rel (0) target = $region13
  $region12: #{forward.1} parent=0 // pred_region
    _
  $region13: #{forward.1} parent=0 // pred_fallthru
    _
  // Predicated region
  $region14: #{forward.1} parent=0 // pred_check
    _
  $region15: #{forward.1} parent=0 // pred_check_branch
    %19 = sbr.rel (0) target = $region17
  $region16: #{forward.1} parent=0 // pred_region
    _
  $region17: #{forward.1} parent=0 // pred_fallthru
    _
  // Predicated region
  $region18: #{forward.1} parent=0 // pred_check
    _
  $region19: #{forward.1} parent=0 // pred_check_branch
    %21 = sbr.rel (0) target = $region21
  $region20: #{forward.1} parent=0 // pred_region
    _
  $region21: #{forward.1} parent=0 // pred_fallthru
    _
  // Predicated region
  $region22: #{forward.1} parent=0 // pred_check
    _
  $region23: #{forward.1} parent=0 // pred_check_branch
    %23 = sbr.rel (0) target = $region25
  $region24: #{forward.1} parent=0 // pred_region
    _
  $region25: #{forward.1} parent=0 // pred_fallthru
    _
  // Predicated region
  $region26: #{forward.1} parent=0 // pred_check
    _
  $region27: #{forward.1} parent=0 // pred_check_branch
    %25 = sbr.rel (0) target = $region29
  $region28: #{forward.1} parent=0 // pred_region
    _
  $region29: #{forward.1} parent=0 // pred_fallthru
    _
  %v26 = vld [vmem:[%s0] sm:$0xff]
  %v27 = vld [vmem:[%s0 + $0x8] sm:$0xff]
  %v28 = vld [vmem:[%s4] sm:$0xff]
  %v29 = vld [vmem:[%s4 + $0x8] sm:$0xff]
  %v30 = vld [vmem:[%s1] sm:$0x1]
  %v31 = vperm.slane %v30, 0
  %vm32 = vcmask 130048
  %v34 = vsel %vm32, %v26, 0
  %v37 = vsel %vm32, %v27, 0
  %39 = vmatpush.msra.mxu0 0.0
  %40 = vmatpush.msra.mxu0 0.0
  %41 = vmatpush.msra.mxu0 0.0
  %42 = vmatpush.msra.mxu0 0.0
  %43 = vmatpush.msra.mxu0 0.0
  %44 = vmatpush.msra.mxu0 0.0
  %45 = vmatpush.msra.mxu0 0.0
  %46 = vmatpush.msra.mxu0 0.0
  %47 = vmatpush.msra.mxu0 0.0
  %48 = vmatpush.msra.mxu0 0.0
  %49 = vmatpush.msra.mxu0 0.0
  %50 = vmatpush.msra.mxu0 0.0
  %51 = vmatpush.msra.mxu0 0.0
  %52 = vmatpush.msra.mxu0 0.0
  %53 = vmatpush.msra.mxu0 %v29
  %54 = vmatpush.msra.mxu0 %v28
  %55 = vmatmul.f32.gmra.mxu0 %v34
  %v56 = vpop.f32.mrf.mxu0
  %v57 = vadd.f32 %v31, %v56
  %58 = vmatmul.f32.gmra.mxu0 %v37
  %v59 = vpop.f32.mrf.mxu0
  %v60 = vadd.f32 %v31, %v59
  %61 = vdwg.mxu0
  %v62 = vld [vmem:[%s1 + $0x1] sm:$0x1]
  %v63 = vld [vmem:[%s1 + $0x2] sm:$0x1]
  %vm64 = vcmask 261120
  %v65 = vsel %vm64, %v57, 0.0
  %66 = vadd.xlane.f32.xlu0 %v65
  %v67 = vpop.xlane.xlu0 %66
  %v68 = vsel %vm64, %v60, 0.0
  %69 = vadd.xlane.f32.xlu0 %v68
  %v70 = vpop.xlane.xlu0 %69
  %v71 = vrcp.pop 32.0
  %v72 = vmul.f32 32.0, %v71
  %v73 = vsub.f32 1.0, %v72
  %v74 = vmul.f32 %v71, %v73
  %v75 = vadd.f32 %v71, %v74
  %vm76 = vweird.f32 %v71
  %v77 = vsel %vm76, %v71, %v75
  %v78 = vmul.f32 %v67, %v77
  %v79 = vmul.f32 %v70, %v77
  %v80 = vsub.f32 %v57, %v78
  %v81 = vsub.f32 %v60, %v79
  %v82 = vmul.f32 %v80, %v80
  %v83 = vmul.f32 %v81, %v81
  %v84 = vsel %vm64, %v82, 0.0
  %85 = vadd.xlane.f32.xlu0 %v84
  %v86 = vpop.xlane.xlu0 %85
  %v87 = vsel %vm64, %v83, 0.0
  %88 = vadd.xlane.f32.xlu0 %v87
  %v89 = vpop.xlane.xlu0 %88
  %v90 = vmul.f32 %v86, %v77
  %v91 = vmul.f32 %v89, %v77
  %v92 = vadd.f32 %v90, 1e-05
  %v93 = vadd.f32 %v91, 1e-05
  %v94 = vrsqrt.pop %v92
  %v95 = vmul.f32 %v94, %v92
  %v96 = vmul.f32 %v95, %v94
  %v97 = vmul.f32 0.5, %v96
  %v98 = vsub.f32 1.5, %v97
  %v99 = vmul.f32 %v94, %v98
  %vm100 = vweird.f32 %v92
  %vm101 = vweird.f32 %v94
  %vm102 = vmor %vm100, %vm101
  %v103 = vsel %vm102, %v94, %v99
  %v104 = vrsqrt.pop %v93
  %v105 = vmul.f32 %v104, %v93
  %v106 = vmul.f32 %v105, %v104
  %v107 = vmul.f32 0.5, %v106
  %v108 = vsub.f32 1.5, %v107
  %v109 = vmul.f32 %v104, %v108
  %vm110 = vweird.f32 %v93
  %vm111 = vweird.f32 %v104
  %vm112 = vmor %vm110, %vm111
  %v113 = vsel %vm112, %v104, %v109
  %v114 = vmul.f32 %v80, %v103
  %v115 = vmul.f32 %v81, %v113
  %v116 = vperm.slane %v62, 0
  %v117 = vmul.f32 %v114, %v116
  %v118 = vmul.f32 %v115, %v116
  %v119 = vperm.slane %v63, 0
  %v120 = vadd.f32 %v117, %v119
  %v121 = vadd.f32 %v118, %v119
  %v122 = vld [vmem:[%s2 + $0x130] sm:$0xff]
  %v123 = vld [vmem:[%s2 + $0x138] sm:$0xff]
  %v124 = vadd.f32 %v120, %v122
  %v125 = vadd.f32 %v121, %v123
  %v126 = vld [vmem:[%s3] sm:$0xff]
  %v127 = vld [vmem:[%s3 + $0x8] sm:$0xff]
  %v128 = vld [vmem:[%s3 + $0x10] sm:$0xff]
  %v129 = vld [vmem:[%s3 + $0x18] sm:$0xff]
  %v130 = vld [vmem:[%s2 + $0x110] sm:$0xff]
  %v131 = vld [vmem:[%s2 + $0x118] sm:$0xff]
  %v132 = vld [vmem:[%s2 + $0x120] sm:$0xff]
  %v133 = vld [vmem:[%s2 + $0x128] sm:$0xff]
  %v134 = vld [vmem:[%s1 + $0x5] sm:$0x1]
  %v135 = vld [vmem:[%s1 + $0x6] sm:$0x1]
  %v136 = vsel %vm64, %v124, 0.0
  %137 = vadd.xlane.f32.xlu0 %v136
  %v138 = vpop.xlane.xlu0 %137
  %v139 = vsel %vm64, %v125, 0.0
  %140 = vadd.xlane.f32.xlu0 %v139
  %v141 = vpop.xlane.xlu0 %140
  %v142 = vmul.f32 %v138, %v77
  %v143 = vmul.f32 %v141, %v77
  %v144 = vsub.f32 %v124, %v142
  %v145 = vsub.f32 %v125, %v143
  %v146 = vmul.f32 %v144, %v144
  %v147 = vmul.f32 %v145, %v145
  %v148 = vsel %vm64, %v146, 0.0
  %149 = vadd.xlane.f32.xlu0 %v148
  %v150 = vpop.xlane.xlu0 %149
  %v151 = vsel %vm64, %v147, 0.0
  %152 = vadd.xlane.f32.xlu0 %v151
  %v153 = vpop.xlane.xlu0 %152
  %v154 = vmul.f32 %v150, %v77
  %v155 = vmul.f32 %v153, %v77
  %v156 = vadd.f32 %v154, 1e-05
  %v157 = vadd.f32 %v155, 1e-05
  %v158 = vrsqrt.pop %v156
  %v159 = vmul.f32 %v158, %v156
  %v160 = vmul.f32 %v159, %v158
  %v161 = vmul.f32 0.5, %v160
  %v162 = vsub.f32 1.5, %v161
  %v163 = vmul.f32 %v158, %v162
  %vm164 = vweird.f32 %v156
  %vm165 = vweird.f32 %v158
  %vm166 = vmor %vm164, %vm165
  %v167 = vsel %vm166, %v158, %v163
  %v168 = vrsqrt.pop %v157
  %v169 = vmul.f32 %v168, %v157
  %v170 = vmul.f32 %v169, %v168
  %v171 = vmul.f32 0.5, %v170
  %v172 = vsub.f32 1.5, %v171
  %v173 = vmul.f32 %v168, %v172
  %vm174 = vweird.f32 %v157
  %vm175 = vweird.f32 %v168
  %vm176 = vmor %vm174, %vm175
  %v177 = vsel %vm176, %v168, %v173
  %v178 = vmul.f32 %v144, %v167
  %v179 = vmul.f32 %v145, %v177
  %v180 = vperm.slane %v134, 0
  %v181 = vmul.f32 %v178, %v180
  %v182 = vmul.f32 %v179, %v180
  %v183 = vperm.slane %v135, 0
  %v184 = vadd.f32 %v181, %v183
  %v185 = vadd.f32 %v182, %v183
  %v186 = vld [vmem:[%s5] sm:$0xff]
  %v187 = vld [vmem:[%s5 + $0x8] sm:$0xff]
  %v188 = vld [vmem:[%s5 + $0x10] sm:$0xff]
  %v189 = vld [vmem:[%s5 + $0x18] sm:$0xff]
  %v190 = vld [vmem:[%s1 + $0x3] sm:$0x1]
  %v191 = vperm.slane %v190, 0
  %v193 = vsel %vm64, %v184, 0
  %v196 = vsel %vm64, %v185, 0
  %198 = vmatpush.msra.mxu0 0.0
  %199 = vmatpush.msra.mxu0 0.0
  %200 = vmatpush.msra.mxu0 0.0
  %201 = vmatpush.msra.mxu0 0.0
  %202 = vmatpush.msra.mxu0 0.0
  %203 = vmatpush.msra.mxu0 0.0
  %204 = vmatpush.msra.mxu0 0.0
  %205 = vmatpush.msra.mxu0 0.0
  %206 = vmatpush.msra.mxu0 0.0
  %207 = vmatpush.msra.mxu0 0.0
  %208 = vmatpush.msra.mxu0 0.0
  %209 = vmatpush.msra.mxu0 0.0
  %210 = vmatpush.msra.mxu0 %v189
  %211 = vmatpush.msra.mxu0 %v188
  %212 = vmatpush.msra.mxu0 %v187
  %213 = vmatpush.msra.mxu0 %v186
  %214 = vmatmul.f32.gmra.mxu0 %v193
  %v215 = vpop.f32.mrf.mxu0
  %v216 = vadd.f32 %v191, %v215
  %217 = vmatmul.f32.gmra.mxu0 %v196
  %v218 = vpop.f32.mrf.mxu0
  %v219 = vadd.f32 %v191, %v218
  %220 = vdwg.mxu0
  %223 = vrot.lane.b32.xlu0 %v216, 32
  %v224 = vpop.permute.xlu0 %223
  %225 = vrot.lane.b32.xlu0 %v219, 32
  %v226 = vpop.permute.xlu0 %225
  %229 = vrot.lane.b32.xlu0 %v216, 64
  %v230 = vpop.permute.xlu0 %229
  %231 = vrot.lane.b32.xlu0 %v219, 64
  %v232 = vpop.permute.xlu0 %231
  %235 = vrot.lane.b32.xlu0 %v216, 96
  %v236 = vpop.permute.xlu0 %235
  %237 = vrot.lane.b32.xlu0 %v219, 96
  %v238 = vpop.permute.xlu0 %237
  %v241 = vsel %vm64, %v216, %v224
  %v242 = vsel %vm64, %v219, %v226
  %vm243 = vcmask 523264
  %v244 = vsel %vm243, %v241, %v230
  %v245 = vsel %vm243, %v242, %v232
  %vm246 = vcmask 785408
  %v247 = vsel %vm246, %v244, %v236
  %v248 = vsel %vm246, %v245, %v238
  %v249 = vmul.f32 %v247, %v126
  %v250 = vmul.f32 %v247, %v127
  %v251 = vmul.f32 %v248, %v128
  %v252 = vmul.f32 %v248, %v129
  %v253 = vld [vmem:[%s4 + $0xf0] sm:$0xff]
  %v254 = vld [vmem:[%s4 + $0xf8] sm:$0xff]
  %v255 = vld [vmem:[%s4 + $0x100] sm:$0xff]
  %v256 = vld [vmem:[%s4 + $0x108] sm:$0xff]
  %v257 = vld [vmem:[%s4 + $0x110] sm:$0xff]
  %v258 = vld [vmem:[%s4 + $0x118] sm:$0xff]
  %v259 = vld [vmem:[%s4 + $0x120] sm:$0xff]
  %v260 = vld [vmem:[%s4 + $0x128] sm:$0xff]
  %v261 = vld [vmem:[%s4 + $0x130] sm:$0xff]
  %v262 = vld [vmem:[%s4 + $0x138] sm:$0xff]
  %v263 = vld [vmem:[%s4 + $0x140] sm:$0xff]
  %v264 = vld [vmem:[%s4 + $0x148] sm:$0xff]
  %v265 = vld [vmem:[%s4 + $0x150] sm:$0xff]
  %v266 = vld [vmem:[%s4 + $0x158] sm:$0xff]
  %v267 = vld [vmem:[%s4 + $0x160] sm:$0xff]
  %v268 = vld [vmem:[%s4 + $0x168] sm:$0xff]
  %v269 = vld [vmem:[%s4 + $0x170] sm:$0xff]
  %v270 = vld [vmem:[%s4 + $0x178] sm:$0xff]
  %v271 = vld [vmem:[%s4 + $0x180] sm:$0xff]
  %v272 = vld [vmem:[%s4 + $0x188] sm:$0xff]
  %v273 = vld [vmem:[%s4 + $0x190] sm:$0xff]
  %v274 = vld [vmem:[%s4 + $0x198] sm:$0xff]
  %v275 = vld [vmem:[%s4 + $0x1a0] sm:$0xff]
  %v276 = vld [vmem:[%s4 + $0x1a8] sm:$0xff]
  %v277 = vld [vmem:[%s4 + $0x1b0] sm:$0xff]
  %v278 = vld [vmem:[%s4 + $0x1b8] sm:$0xff]
  %v279 = vld [vmem:[%s4 + $0x1c0] sm:$0xff]
  %v280 = vld [vmem:[%s4 + $0x1c8] sm:$0xff]
  %v281 = vld [vmem:[%s4 + $0x1d0] sm:$0xff]
  %v282 = vld [vmem:[%s4 + $0x1d8] sm:$0xff]
  %v283 = vld [vmem:[%s4 + $0x1e0] sm:$0xff]
  %v284 = vld [vmem:[%s4 + $0x1e8] sm:$0xff]
  %285 = vmatpush.msra.mxu0 %v268
  %286 = vmatpush.msra.mxu0 %v267
  %287 = vmatpush.msra.mxu0 %v266
  %288 = vmatpush.msra.mxu0 %v265
  %289 = vmatpush.msra.mxu0 %v264
  %290 = vmatpush.msra.mxu0 %v263
  %291 = vmatpush.msra.mxu0 %v262
  %292 = vmatpush.msra.mxu0 %v261
  %293 = vmatpush.msra.mxu0 %v260
  %294 = vmatpush.msra.mxu0 %v259
  %295 = vmatpush.msra.mxu0 %v258
  %296 = vmatpush.msra.mxu0 %v257
  %297 = vmatpush.msra.mxu0 %v256
  %298 = vmatpush.msra.mxu0 %v255
  %299 = vmatpush.msra.mxu0 %v254
  %300 = vmatpush.msra.mxu0 %v253
  %301 = vmatmul.f32.gmra.mxu0 %v249
  %v302 = vpop.f32.mrf.mxu0
  %v303 = vadd.f32 0.0, %v302
  %304 = vmatmul.f32.gmra.mxu0 %v251
  %v305 = vpop.f32.mrf.mxu0
  %v306 = vadd.f32 0.0, %v305
  %307 = vdwg.mxu0
  %308 = vmatpush.msra.mxu0 %v284
  %309 = vmatpush.msra.mxu0 %v283
  %310 = vmatpush.msra.mxu0 %v282
  %311 = vmatpush.msra.mxu0 %v281
  %312 = vmatpush.msra.mxu0 %v280
  %313 = vmatpush.msra.mxu0 %v279
  %314 = vmatpush.msra.mxu0 %v278
  %315 = vmatpush.msra.mxu0 %v277
  %316 = vmatpush.msra.mxu0 %v276
  %317 = vmatpush.msra.mxu0 %v275
  %318 = vmatpush.msra.mxu0 %v274
  %319 = vmatpush.msra.mxu0 %v273
  %320 = vmatpush.msra.mxu0 %v272
  %321 = vmatpush.msra.mxu0 %v271
  %322 = vmatpush.msra.mxu0 %v270
  %323 = vmatpush.msra.mxu0 %v269
  %324 = vmatmul.f32.gmra.mxu0 %v250
  %v325 = vpop.f32.mrf.mxu0
  %v326 = vadd.f32 %v303, %v325
  %327 = vmatmul.f32.gmra.mxu0 %v252
  %v328 = vpop.f32.mrf.mxu0
  %v329 = vadd.f32 %v306, %v328
  %330 = vdwg.mxu0
  %v332 = vsel %vm64, %v326, 0
  %v335 = vsel %vm64, %v329, 0
  %337 = vmatpush.msra.mxu0 0.0
  %338 = vmatpush.msra.mxu0 0.0
  %339 = vmatpush.msra.mxu0 0.0
  %340 = vmatpush.msra.mxu0 0.0
  %341 = vmatpush.msra.mxu0 0.0
  %342 = vmatpush.msra.mxu0 0.0
  %343 = vmatpush.msra.mxu0 0.0
  %344 = vmatpush.msra.mxu0 0.0
  %345 = vmatpush.msra.mxu0 0.0
  %346 = vmatpush.msra.mxu0 0.0
  %347 = vmatpush.msra.mxu0 0.0
  %348 = vmatpush.msra.mxu0 0.0
  %349 = vmatpush.msra.mxu0 %v133
  %350 = vmatpush.msra.mxu0 %v132
  %351 = vmatpush.msra.mxu0 %v131
  %352 = vmatpush.msra.mxu0 %v130
  %353 = vmatmul.f32.gmra.mxu0 %v332
  %v354 = vpop.f32.mrf.mxu0
  %v355 = vadd.f32 0.0, %v354
  %356 = vmatmul.f32.gmra.mxu0 %v335
  %v357 = vpop.f32.mrf.mxu0
  %v358 = vadd.f32 0.0, %v357
  %359 = vdwg.mxu0
  %v360 = vld [vmem:[%s2 + $0xc0] sm:$0xff]
  %v361 = vld [vmem:[%s2 + $0xc8] sm:$0xff]
  %v362 = vld [vmem:[%s2] sm:$0xff]
  %v363 = vld [vmem:[%s2 + $0x8] sm:$0xff]
  %v364 = vld [vmem:[%s2 + $0x10] sm:$0xff]
  %v365 = vld [vmem:[%s2 + $0x18] sm:$0xff]
  %v366 = vld [vmem:[%s2 + $0x20] sm:$0xff]
  %v367 = vld [vmem:[%s2 + $0x28] sm:$0xff]
  %v368 = vld [vmem:[%s2 + $0x30] sm:$0xff]
  %v369 = vld [vmem:[%s2 + $0x38] sm:$0xff]
  %v370 = vld [vmem:[%s2 + $0x40] sm:$0xff]
  %v371 = vld [vmem:[%s2 + $0x48] sm:$0xff]
  %v372 = vld [vmem:[%s2 + $0x50] sm:$0xff]
  %v373 = vld [vmem:[%s2 + $0x58] sm:$0xff]
  %v374 = vld [vmem:[%s2 + $0x60] sm:$0xff]
  %v375 = vld [vmem:[%s2 + $0x68] sm:$0xff]
  %v376 = vld [vmem:[%s2 + $0x70] sm:$0xff]
  %v377 = vld [vmem:[%s2 + $0x78] sm:$0xff]
  %v378 = vld [vmem:[%s2 + $0x80] sm:$0xff]
  %v379 = vld [vmem:[%s2 + $0x88] sm:$0xff]
  %v380 = vld [vmem:[%s2 + $0x90] sm:$0xff]
  %v381 = vld [vmem:[%s2 + $0x98] sm:$0xff]
  %v382 = vld [vmem:[%s2 + $0xa0] sm:$0xff]
  %v383 = vld [vmem:[%s2 + $0xa8] sm:$0xff]
  %v384 = vld [vmem:[%s2 + $0xb0] sm:$0xff]
  %v385 = vld [vmem:[%s2 + $0xb8] sm:$0xff]
  %v387 = vsel %vm32, %v362, 0
  %v390 = vsel %vm32, %v363, 0
  %v393 = vsel %vm32, %v364, 0
  %v396 = vsel %vm32, %v365, 0
  %v399 = vsel %vm32, %v366, 0
  %v402 = vsel %vm32, %v367, 0
  %v405 = vsel %vm32, %v368, 0
  %v408 = vsel %vm32, %v369, 0
  %410 = vmatpush.msra.mxu0 0.0
  %411 = vmatpush.msra.mxu0 0.0
  %412 = vmatpush.msra.mxu0 0.0
  %413 = vmatpush.msra.mxu0 0.0
  %414 = vmatpush.msra.mxu0 0.0
  %415 = vmatpush.msra.mxu0 0.0
  %416 = vmatpush.msra.mxu0 0.0
  %417 = vmatpush.msra.mxu0 0.0
  %418 = vmatpush.msra.mxu0 0.0
  %419 = vmatpush.msra.mxu0 0.0
  %420 = vmatpush.msra.mxu0 0.0
  %421 = vmatpush.msra.mxu0 0.0
  %422 = vmatpush.msra.mxu0 0.0
  %423 = vmatpush.msra.mxu0 0.0
  %424 = vmatpush.msra.mxu0 %v238
  %425 = vmatpush.msra.mxu0 %v236
  %426 = vmatmul.f32.gmra.mxu0 %v387
  %v427 = vpop.f32.mrf.mxu0
  %v428 = vadd.f32 0.0, %v427
  %429 = vmatmul.f32.gmra.mxu0 %v390
  %v430 = vpop.f32.mrf.mxu0
  %v431 = vadd.f32 0.0, %v430
  %432 = vmatmul.f32.gmra.mxu0 %v393
  %v433 = vpop.f32.mrf.mxu0
  %v434 = vadd.f32 0.0, %v433
  %435 = vmatmul.f32.gmra.mxu0 %v396
  %v436 = vpop.f32.mrf.mxu0
  %v437 = vadd.f32 0.0, %v436
  %438 = vmatmul.f32.gmra.mxu0 %v399
  %v439 = vpop.f32.mrf.mxu0
  %v440 = vadd.f32 0.0, %v439
  %441 = vmatmul.f32.gmra.mxu0 %v402
  %v442 = vpop.f32.mrf.mxu0
  %v443 = vadd.f32 0.0, %v442
  %444 = vmatmul.f32.gmra.mxu0 %v405
  %v445 = vpop.f32.mrf.mxu0
  %v446 = vadd.f32 0.0, %v445
  %447 = vmatmul.f32.gmra.mxu0 %v408
  %v448 = vpop.f32.mrf.mxu0
  %v449 = vadd.f32 0.0, %v448
  %450 = vdwg.mxu0
  %v451 = vmul.f32 %v428, %v370
  %v452 = vmul.f32 %v431, %v371
  %v453 = vmul.f32 %v434, %v372
  %v454 = vmul.f32 %v437, %v373
  %v455 = vmul.f32 %v440, %v374
  %v456 = vmul.f32 %v443, %v375
  %v457 = vmul.f32 %v446, %v376
  %v458 = vmul.f32 %v449, %v377
  %v459 = vsel %vm64, %v216, 0
  %v461 = vsel %vm64, %v219, 0
  %v464 = vsel %vm64, %v451, 0
  %v467 = vsel %vm64, %v452, 0
  %v470 = vsel %vm64, %v453, 0
  %v473 = vsel %vm64, %v454, 0
  %v476 = vsel %vm64, %v455, 0
  %v479 = vsel %vm64, %v456, 0
  %v482 = vsel %vm64, %v457, 0
  %v485 = vsel %vm64, %v458, 0
  %487 = vmatpush.xpose.msra.mxu0 0.0
  %488 = vmatpush.xpose.msra.mxu0 0.0
  %489 = vmatpush.xpose.msra.mxu0 0.0
  %490 = vmatpush.xpose.msra.mxu0 0.0
  %491 = vmatpush.xpose.msra.mxu0 0.0
  %492 = vmatpush.xpose.msra.mxu0 0.0
  %493 = vmatpush.xpose.msra.mxu0 0.0
  %494 = vmatpush.xpose.msra.mxu0 0.0
  %495 = vmatpush.xpose.msra.mxu0 %v485
  %496 = vmatpush.xpose.msra.mxu0 %v482
  %497 = vmatpush.xpose.msra.mxu0 %v479
  %498 = vmatpush.xpose.msra.mxu0 %v476
  %499 = vmatpush.xpose.msra.mxu0 %v473
  %500 = vmatpush.xpose.msra.mxu0 %v470
  %501 = vmatpush.xpose.msra.mxu0 %v467
  %502 = vmatpush.xpose.msra.mxu0 %v464
  %503 = vmatmul.f32.gmra.mxu0 %v459
  %v504 = vpop.f32.mrf.mxu0
  %v505 = vadd.f32 0.0, %v504
  %506 = vmatmul.f32.gmra.mxu0 %v461
  %v507 = vpop.f32.mrf.mxu0
  %v508 = vadd.f32 0.0, %v507
  %509 = vdwg.mxu0
  %v510 = vmul.f32 %v505, 0.35355338
  %v511 = vmul.f32 %v508, 0.35355338
  %v512 = vadd.f32 %v510, %v355
  %v513 = vadd.f32 %v511, %v358
  %v514 = vadd.f32 %v512, %v360
  %v515 = vadd.f32 %v513, %v361
  %vm516 = vcmp.gt.f32.partialorder %v378, 0.0
  %v517 = vsel %vm516, 1, 0
  %v518 = vperm.slane %v517, 0
  %vm519 = vcmp.eq.s32.totalorder %v518, 1
  %v520 = vsel %vm519, %v514, -1e+09
  %v521 = vsel %vm519, %v515, -1e+09
  %v522 = vsel %vm243, %v520, -inf
  %523 = vmax.xlane.f32.xlu0 %v522
  %v524 = vpop.xlane.xlu0 %523
  %v525 = vsel %vm243, %v521, -inf
  %526 = vmax.xlane.f32.xlu0 %v525
  %v527 = vpop.xlane.xlu0 %526
  %v528 = vperm.slane %v378, 0
  %v529 = vmul.f32 %v524, %v528
  %v530 = vmul.f32 %v527, %v528
  %v531 = vadd.f32 %v529, 0.0
  %v532 = vadd.f32 %v530, 0.0
  %vm533 = vcmp.gt.f32.partialorder %v380, 0.0
  %v534 = vsel %vm533, 1, 0
  %v535 = vperm.slane %v534, 0
  %vm536 = vcmp.eq.s32.totalorder %v535, 1
  %v537 = vsel %vm536, %v514, -1e+09
  %v538 = vsel %vm536, %v515, -1e+09
  %v539 = vsel %vm243, %v537, -inf
  %540 = vmax.xlane.f32.xlu0 %v539
  %v541 = vpop.xlane.xlu0 %540
  %v542 = vsel %vm243, %v538, -inf
  %543 = vmax.xlane.f32.xlu0 %v542
  %v544 = vpop.xlane.xlu0 %543
  %v545 = vperm.slane %v380, 0
  %v546 = vmul.f32 %v541, %v545
  %v547 = vmul.f32 %v544, %v545
  %v548 = vadd.f32 %v531, %v546
  %v549 = vadd.f32 %v532, %v547
  %vm550 = vcmp.gt.f32.partialorder %v382, 0.0
  %v551 = vsel %vm550, 1, 0
  %v552 = vperm.slane %v551, 0
  %vm553 = vcmp.eq.s32.totalorder %v552, 1
  %v554 = vsel %vm553, %v514, -1e+09
  %v555 = vsel %vm553, %v515, -1e+09
  %v556 = vsel %vm243, %v554, -inf
  %557 = vmax.xlane.f32.xlu0 %v556
  %v558 = vpop.xlane.xlu0 %557
  %v559 = vsel %vm243, %v555, -inf
  %560 = vmax.xlane.f32.xlu0 %v559
  %v561 = vpop.xlane.xlu0 %560
  %v562 = vperm.slane %v382, 0
  %v563 = vmul.f32 %v558, %v562
  %v564 = vmul.f32 %v561, %v562
  %v565 = vadd.f32 %v548, %v563
  %v566 = vadd.f32 %v549, %v564
  %vm567 = vcmp.gt.f32.partialorder %v384, 0.0
  %v568 = vsel %vm567, 1, 0
  %v569 = vperm.slane %v568, 0
  %vm570 = vcmp.eq.s32.totalorder %v569, 1
  %v571 = vsel %vm570, %v514, -1e+09
  %v572 = vsel %vm570, %v515, -1e+09
  %v573 = vsel %vm243, %v571, -inf
  %574 = vmax.xlane.f32.xlu0 %v573
  %v575 = vpop.xlane.xlu0 %574
  %v576 = vsel %vm243, %v572, -inf
  %577 = vmax.xlane.f32.xlu0 %v576
  %v578 = vpop.xlane.xlu0 %577
  %v579 = vperm.slane %v384, 0
  %v580 = vmul.f32 %v575, %v579
  %v581 = vmul.f32 %v578, %v579
  %v582 = vadd.f32 %v565, %v580
  %v583 = vadd.f32 %v566, %v581
  %v584 = vsub.f32 %v514, %v582
  %v585 = vsub.f32 %v515, %v583
  %v586 = vmul.f32 %v584, 1.442695
  %v587 = vpow.pop %v586
  %v588 = vmul.f32 %v585, 1.442695
  %v589 = vpow.pop %v588
  %v591 = vsel %vm243, %v587, 0
  %v594 = vsel %vm243, %v589, 0
  %596 = vmatpush.msra.mxu0 0.0
  %597 = vmatpush.msra.mxu0 0.0
  %598 = vmatpush.msra.mxu0 0.0
  %599 = vmatpush.msra.mxu0 0.0
  %600 = vmatpush.msra.mxu0 0.0
  %601 = vmatpush.msra.mxu0 0.0
  %602 = vmatpush.msra.mxu0 0.0
  %603 = vmatpush.msra.mxu0 0.0
  %604 = vmatpush.msra.mxu0 %v385
  %605 = vmatpush.msra.mxu0 %v384
  %606 = vmatpush.msra.mxu0 %v383
  %607 = vmatpush.msra.mxu0 %v382
  %608 = vmatpush.msra.mxu0 %v381
  %609 = vmatpush.msra.mxu0 %v380
  %610 = vmatpush.msra.mxu0 %v379
  %611 = vmatpush.msra.mxu0 %v378
  %612 = vmatmul.f32.gmra.mxu0 %v591
  %v613 = vpop.f32.mrf.mxu0
  %v614 = vadd.f32 0.0, %v613
  %615 = vmatmul.f32.gmra.mxu0 %v594
  %v616 = vpop.f32.mrf.mxu0
  %v617 = vadd.f32 0.0, %v616
  %618 = vdwg.mxu0
  %v619 = vrcp.pop %v614
  %v620 = vmul.f32 %v614, %v619
  %v621 = vsub.f32 1.0, %v620
  %v622 = vmul.f32 %v619, %v621
  %v623 = vadd.f32 %v619, %v622
  %vm624 = vweird.f32 %v614
  %vm625 = vweird.f32 %v619
  %vm626 = vmor %vm624, %vm625
  %v627 = vsel %vm626, %v619, %v623
  %v628 = vand.u32 2147483647, %v614
  %vm629 = vcmp.eq.f32.partialorder %v628, 8.507059e+37
  %v630 = vand.u32 %v614, 2147483648
  %v631 = vor.u32 1.1754944e-38, %v630
  %v632 = vsel %vm629, %v631, %v627
  %v633 = vmul.f32 %v587, %v632
  %v634 = vrcp.pop %v617
  %v635 = vmul.f32 %v617, %v634
  %v636 = vsub.f32 1.0, %v635
  %v637 = vmul.f32 %v634, %v636
  %v638 = vadd.f32 %v634, %v637
  %vm639 = vweird.f32 %v617
  %vm640 = vweird.f32 %v634
  %vm641 = vmor %vm639, %vm640
  %v642 = vsel %vm641, %v634, %v638
  %v643 = vand.u32 2147483647, %v617
  %vm644 = vcmp.eq.f32.partialorder %v643, 8.507059e+37
  %v645 = vand.u32 %v617, 2147483648
  %v646 = vor.u32 1.1754944e-38, %v645
  %v647 = vsel %vm644, %v646, %v642
  %v648 = vmul.f32 %v589, %v647
  %649 = vrot.lane.b32.xlu0 %v451, 96
  %v650 = vpop.permute.xlu0 %649
  %651 = vrot.lane.b32.xlu0 %v452, 96
  %v652 = vpop.permute.xlu0 %651
  %653 = vrot.lane.b32.xlu0 %v453, 96
  %v654 = vpop.permute.xlu0 %653
  %655 = vrot.lane.b32.xlu0 %v454, 96
  %v656 = vpop.permute.xlu0 %655
  %657 = vrot.lane.b32.xlu0 %v455, 96
  %v658 = vpop.permute.xlu0 %657
  %659 = vrot.lane.b32.xlu0 %v456, 96
  %v660 = vpop.permute.xlu0 %659
  %661 = vrot.lane.b32.xlu0 %v457, 96
  %v662 = vpop.permute.xlu0 %661
  %663 = vrot.lane.b32.xlu0 %v458, 96
  %v664 = vpop.permute.xlu0 %663
  %v674 = vsel %vm243, %v633, 0
  %v677 = vsel %vm243, %v648, 0
  %679 = vmatpush.msra.mxu0 0.0
  %680 = vmatpush.msra.mxu0 0.0
  %681 = vmatpush.msra.mxu0 0.0
  %682 = vmatpush.msra.mxu0 0.0
  %683 = vmatpush.msra.mxu0 0.0
  %684 = vmatpush.msra.mxu0 0.0
  %685 = vmatpush.msra.mxu0 0.0
  %686 = vmatpush.msra.mxu0 0.0
  %687 = vmatpush.msra.mxu0 %v664
  %688 = vmatpush.msra.mxu0 %v662
  %689 = vmatpush.msra.mxu0 %v660
  %690 = vmatpush.msra.mxu0 %v658
  %691 = vmatpush.msra.mxu0 %v656
  %692 = vmatpush.msra.mxu0 %v654
  %693 = vmatpush.msra.mxu0 %v652
  %694 = vmatpush.msra.mxu0 %v650
  %695 = vmatmul.f32.gmra.mxu0 %v674
  %v696 = vpop.f32.mrf.mxu0
  %v697 = vadd.f32 0.0, %v696
  %698 = vmatmul.f32.gmra.mxu0 %v677
  %v699 = vpop.f32.mrf.mxu0
  %v700 = vadd.f32 0.0, %v699
  %701 = vdwg.mxu0
  %v702 = vld [vmem:[%s4 + $0x10] sm:$0xff]
  %v703 = vld [vmem:[%s4 + $0x18] sm:$0xff]
  %v704 = vld [vmem:[%s4 + $0x20] sm:$0xff]
  %v705 = vld [vmem:[%s4 + $0x28] sm:$0xff]
  %v706 = vld [vmem:[%s1 + $0x7] sm:$0x1]
  %v707 = vperm.slane %v706, 0
  %v709 = vsel %vm64, %v697, 0
  %v712 = vsel %vm64, %v700, 0
  %714 = vmatpush.msra.mxu0 0.0
  %715 = vmatpush.msra.mxu0 0.0
  %716 = vmatpush.msra.mxu0 0.0
  %717 = vmatpush.msra.mxu0 0.0
  %718 = vmatpush.msra.mxu0 0.0
  %719 = vmatpush.msra.mxu0 0.0
  %720 = vmatpush.msra.mxu0 0.0
  %721 = vmatpush.msra.mxu0 0.0
  %722 = vmatpush.msra.mxu0 0.0
  %723 = vmatpush.msra.mxu0 0.0
  %724 = vmatpush.msra.mxu0 0.0
  %725 = vmatpush.msra.mxu0 0.0
  %726 = vmatpush.msra.mxu0 %v705
  %727 = vmatpush.msra.mxu0 %v704
  %728 = vmatpush.msra.mxu0 %v703
  %729 = vmatpush.msra.mxu0 %v702
  %730 = vmatmul.f32.gmra.mxu0 %v709
  %v731 = vpop.f32.mrf.mxu0
  %v732 = vadd.f32 %v707, %v731
  %733 = vmatmul.f32.gmra.mxu0 %v712
  %v734 = vpop.f32.mrf.mxu0
  %v735 = vadd.f32 %v707, %v734
  %736 = vdwg.mxu0
  %v737 = vadd.f32 %v124, %v732
  %v738 = vadd.f32 %v125, %v735
  %v739 = vld [vmem:[%s1 + $0x8] sm:$0x1]
  %v740 = vld [vmem:[%s1 + $0x9] sm:$0x1]
  %v741 = vsel %vm64, %v737, 0.0
  %742 = vadd.xlane.f32.xlu0 %v741
  %v743 = vpop.xlane.xlu0 %742
  %v744 = vsel %vm64, %v738, 0.0
  %745 = vadd.xlane.f32.xlu0 %v744
  %v746 = vpop.xlane.xlu0 %745
  %v747 = vmul.f32 %v743, %v77
  %v748 = vmul.f32 %v746, %v77
  %v749 = vsub.f32 %v737, %v747
  %v750 = vsub.f32 %v738, %v748
  %v751 = vmul.f32 %v749, %v749
  %v752 = vmul.f32 %v750, %v750
  %v753 = vsel %vm64, %v751, 0.0
  %754 = vadd.xlane.f32.xlu0 %v753
  %v755 = vpop.xlane.xlu0 %754
  %v756 = vsel %vm64, %v752, 0.0
  %757 = vadd.xlane.f32.xlu0 %v756
  %v758 = vpop.xlane.xlu0 %757
  %v759 = vmul.f32 %v755, %v77
  %v760 = vmul.f32 %v758, %v77
  %v761 = vadd.f32 %v759, 1e-05
  %v762 = vadd.f32 %v760, 1e-05
  %v763 = vrsqrt.pop %v761
  %v764 = vmul.f32 %v763, %v761
  %v765 = vmul.f32 %v764, %v763
  %v766 = vmul.f32 0.5, %v765
  %v767 = vsub.f32 1.5, %v766
  %v768 = vmul.f32 %v763, %v767
  %vm769 = vweird.f32 %v761
  %vm770 = vweird.f32 %v763
  %vm771 = vmor %vm769, %vm770
  %v772 = vsel %vm771, %v763, %v768
  %v773 = vrsqrt.pop %v762
  %v774 = vmul.f32 %v773, %v762
  %v775 = vmul.f32 %v774, %v773
  %v776 = vmul.f32 0.5, %v775
  %v777 = vsub.f32 1.5, %v776
  %v778 = vmul.f32 %v773, %v777
  %vm779 = vweird.f32 %v762
  %vm780 = vweird.f32 %v773
  %vm781 = vmor %vm779, %vm780
  %v782 = vsel %vm781, %v773, %v778
  %v783 = vmul.f32 %v749, %v772
  %v784 = vmul.f32 %v750, %v782
  %v785 = vperm.slane %v739, 0
  %v786 = vmul.f32 %v783, %v785
  %v787 = vmul.f32 %v784, %v785
  %v788 = vperm.slane %v740, 0
  %v789 = vadd.f32 %v786, %v788
  %v790 = vadd.f32 %v787, %v788
  %v791 = vld [vmem:[%s6] sm:$0xff]
  %v792 = vld [vmem:[%s6 + $0x8] sm:$0xff]
  %v793 = vld [vmem:[%s6 + $0x10] sm:$0xff]
  %v794 = vld [vmem:[%s6 + $0x18] sm:$0xff]
  %v795 = vld [vmem:[%s1 + $0x11] sm:$0x1]
  %v796 = vperm.slane %v795, 0
  %v798 = vsel %vm64, %v789, 0
  %v801 = vsel %vm64, %v790, 0
  %803 = vmatpush.msra.mxu0 0.0
  %804 = vmatpush.msra.mxu0 0.0
  %805 = vmatpush.msra.mxu0 0.0
  %806 = vmatpush.msra.mxu0 0.0
  %807 = vmatpush.msra.mxu0 0.0
  %808 = vmatpush.msra.mxu0 0.0
  %809 = vmatpush.msra.mxu0 0.0
  %810 = vmatpush.msra.mxu0 0.0
  %811 = vmatpush.msra.mxu0 0.0
  %812 = vmatpush.msra.mxu0 0.0
  %813 = vmatpush.msra.mxu0 0.0
  %814 = vmatpush.msra.mxu0 0.0
  %815 = vmatpush.msra.mxu0 %v794
  %816 = vmatpush.msra.mxu0 %v793
  %817 = vmatpush.msra.mxu0 %v792
  %818 = vmatpush.msra.mxu0 %v791
  %819 = vmatmul.f32.gmra.mxu0 %v798
  %v820 = vpop.f32.mrf.mxu0
  %v821 = vadd.f32 %v796, %v820
  %822 = vmatmul.f32.gmra.mxu0 %v801
  %v823 = vpop.f32.mrf.mxu0
  %v824 = vadd.f32 %v796, %v823
  %825 = vdwg.mxu0
  %v826 = vmul.f32 %v821, 0.70710677
  %v827 = vmul.f32 %v824, 0.70710677
  %v828 = vand.u32 2147483647, %v826
  %v829 = vand.u32 2147483647, %v827
  %v830 = vmul.f32 %v828, 0.3275911
  %v831 = vmul.f32 %v829, 0.3275911
  %v832 = vadd.f32 %v830, 1.0
  %v833 = vadd.f32 %v831, 1.0
  %v834 = vrcp.pop %v832
  %v835 = vrcp.pop %v833
  %v836 = vmul.f32 %v834, 1.0614054
  %v837 = vmul.f32 %v835, 1.0614054
  %v838 = vadd.f32 %v836, -1.4531521
  %v839 = vadd.f32 %v837, -1.4531521
  %v840 = vmul.f32 %v838, %v834
  %v841 = vmul.f32 %v839, %v835
  %v842 = vadd.f32 %v840, 1.4214138
  %v843 = vadd.f32 %v841, 1.4214138
  %v844 = vmul.f32 %v842, %v834
  %v845 = vmul.f32 %v843, %v835
  %v846 = vadd.f32 %v844, -0.28449672
  %v847 = vadd.f32 %v845, -0.28449672
  %v848 = vmul.f32 %v846, %v834
  %v849 = vmul.f32 %v847, %v835
  %v850 = vadd.f32 %v848, 0.2548296
  %v851 = vadd.f32 %v849, 0.2548296
  %v852 = vmul.f32 %v850, %v834
  %v853 = vmul.f32 %v851, %v835
  %v854 = vsub.f32 0.0, %v828
  %v855 = vsub.f32 0.0, %v829
  %v856 = vmul.f32 %v854, %v828
  %v857 = vmul.f32 %v855, %v829
  %v858 = vmul.f32 %v856, 1.442695
  %v859 = vpow.pop %v858
  %v860 = vmul.f32 %v857, 1.442695
  %v861 = vpow.pop %v860
  %v862 = vmul.f32 %v852, %v859
  %v863 = vmul.f32 %v853, %v861
  %v864 = vsub.f32 1.0, %v862
  %v865 = vsub.f32 1.0, %v863
  %vm866 = vcmp.ge.f32.partialorder %v826, 0.0
  %vm867 = vcmp.ge.f32.partialorder %v827, 0.0
  %v868 = vsub.f32 0.0, %v864
  %v869 = vsub.f32 0.0, %v865
  %v870 = vsel %vm866, %v864, %v868
  %v871 = vsel %vm867, %v865, %v869
  %v872 = vmul.f32 %v821, 0.5
  %v873 = vmul.f32 %v824, 0.5
  %v874 = vadd.f32 %v870, 1.0
  %v875 = vadd.f32 %v871, 1.0
  %v876 = vmul.f32 %v872, %v874
  %v877 = vmul.f32 %v873, %v875
  %v878 = vld [vmem:[%s4 + $0x50] sm:$0xff]
  %v879 = vld [vmem:[%s4 + $0x58] sm:$0xff]
  %v880 = vld [vmem:[%s4 + $0x60] sm:$0xff]
  %v881 = vld [vmem:[%s4 + $0x68] sm:$0xff]
  %v882 = vld [vmem:[%s4 + $0x70] sm:$0xff]
  %v883 = vld [vmem:[%s4 + $0x78] sm:$0xff]
  %v884 = vld [vmem:[%s4 + $0x80] sm:$0xff]
  %v885 = vld [vmem:[%s4 + $0x88] sm:$0xff]
  %v886 = vld [vmem:[%s1 + $0xa] sm:$0x1]
  %v887 = vperm.slane %v886, 0
  %v889 = vsel %vm243, %v876, 0
  %v892 = vsel %vm243, %v877, 0
  %894 = vmatpush.msra.mxu0 0.0
  %895 = vmatpush.msra.mxu0 0.0
  %896 = vmatpush.msra.mxu0 0.0
  %897 = vmatpush.msra.mxu0 0.0
  %898 = vmatpush.msra.mxu0 0.0
  %899 = vmatpush.msra.mxu0 0.0
  %900 = vmatpush.msra.mxu0 0.0
  %901 = vmatpush.msra.mxu0 0.0
  %902 = vmatpush.msra.mxu0 %v885
  %903 = vmatpush.msra.mxu0 %v884
  %904 = vmatpush.msra.mxu0 %v883
  %905 = vmatpush.msra.mxu0 %v882
  %906 = vmatpush.msra.mxu0 %v881
  %907 = vmatpush.msra.mxu0 %v880
  %908 = vmatpush.msra.mxu0 %v879
  %909 = vmatpush.msra.mxu0 %v878
  %910 = vmatmul.f32.gmra.mxu0 %v889
  %v911 = vpop.f32.mrf.mxu0
  %v912 = vadd.f32 %v887, %v911
  %913 = vmatmul.f32.gmra.mxu0 %v892
  %v914 = vpop.f32.mrf.mxu0
  %v915 = vadd.f32 %v887, %v914
  %916 = vdwg.mxu0
  %v917 = vadd.f32 %v737, %v912
  %v918 = vadd.f32 %v738, %v915
  %v919 = vld [vmem:[%s1 + $0xb] sm:$0x1]
  %v920 = vld [vmem:[%s1 + $0xc] sm:$0x1]
  %v921 = vsel %vm64, %v917, 0.0
  %922 = vadd.xlane.f32.xlu0 %v921
  %v923 = vpop.xlane.xlu0 %922
  %v924 = vsel %vm64, %v918, 0.0
  %925 = vadd.xlane.f32.xlu0 %v924
  %v926 = vpop.xlane.xlu0 %925
  %v927 = vmul.f32 %v923, %v77
  %v928 = vmul.f32 %v926, %v77
  %v929 = vsub.f32 %v917, %v927
  %v930 = vsub.f32 %v918, %v928
  %v931 = vmul.f32 %v929, %v929
  %v932 = vmul.f32 %v930, %v930
  %v933 = vsel %vm64, %v931, 0.0
  %934 = vadd.xlane.f32.xlu0 %v933
  %v935 = vpop.xlane.xlu0 %934
  %v936 = vsel %vm64, %v932, 0.0
  %937 = vadd.xlane.f32.xlu0 %v936
  %v938 = vpop.xlane.xlu0 %937
  %v939 = vmul.f32 %v935, %v77
  %v940 = vmul.f32 %v938, %v77
  %v941 = vadd.f32 %v939, 1e-05
  %v942 = vadd.f32 %v940, 1e-05
  %v943 = vrsqrt.pop %v941
  %v944 = vmul.f32 %v943, %v941
  %v945 = vmul.f32 %v944, %v943
  %v946 = vmul.f32 0.5, %v945
  %v947 = vsub.f32 1.5, %v946
  %v948 = vmul.f32 %v943, %v947
  %vm949 = vweird.f32 %v941
  %vm950 = vweird.f32 %v943
  %vm951 = vmor %vm949, %vm950
  %v952 = vsel %vm951, %v943, %v948
  %v953 = vrsqrt.pop %v942
  %v954 = vmul.f32 %v953, %v942
  %v955 = vmul.f32 %v954, %v953
  %v956 = vmul.f32 0.5, %v955
  %v957 = vsub.f32 1.5, %v956
  %v958 = vmul.f32 %v953, %v957
  %vm959 = vweird.f32 %v942
  %vm960 = vweird.f32 %v953
  %vm961 = vmor %vm959, %vm960
  %v962 = vsel %vm961, %v953, %v958
  %v963 = vmul.f32 %v929, %v952
  %v964 = vmul.f32 %v930, %v962
  %v965 = vperm.slane %v919, 0
  %v966 = vmul.f32 %v963, %v965
  %v967 = vmul.f32 %v964, %v965
  %v968 = vperm.slane %v920, 0
  %v969 = vadd.f32 %v966, %v968
  %v970 = vadd.f32 %v967, %v968
  %v971 = vld [vmem:[%s5 + $0x20] sm:$0xff]
  %v972 = vld [vmem:[%s5 + $0x28] sm:$0xff]
  %v973 = vld [vmem:[%s5 + $0x30] sm:$0xff]
  %v974 = vld [vmem:[%s5 + $0x38] sm:$0xff]
  %v975 = vld [vmem:[%s1 + $0x4] sm:$0x1]
  %v976 = vperm.slane %v975, 0
  %v978 = vsel %vm64, %v969, 0
  %v981 = vsel %vm64, %v970, 0
  %983 = vmatpush.msra.mxu0 0.0
  %984 = vmatpush.msra.mxu0 0.0
  %985 = vmatpush.msra.mxu0 0.0
  %986 = vmatpush.msra.mxu0 0.0
  %987 = vmatpush.msra.mxu0 0.0
  %988 = vmatpush.msra.mxu0 0.0
  %989 = vmatpush.msra.mxu0 0.0
  %990 = vmatpush.msra.mxu0 0.0
  %991 = vmatpush.msra.mxu0 0.0
  %992 = vmatpush.msra.mxu0 0.0
  %993 = vmatpush.msra.mxu0 0.0
  %994 = vmatpush.msra.mxu0 0.0
  %995 = vmatpush.msra.mxu0 %v974
  %996 = vmatpush.msra.mxu0 %v973
  %997 = vmatpush.msra.mxu0 %v972
  %998 = vmatpush.msra.mxu0 %v971
  %999 = vmatmul.f32.gmra.mxu0 %v978
  %v1000 = vpop.f32.mrf.mxu0
  %v1001 = vadd.f32 %v976, %v1000
  %1002 = vmatmul.f32.gmra.mxu0 %v981
  %v1003 = vpop.f32.mrf.mxu0
  %v1004 = vadd.f32 %v976, %v1003
  %1005 = vdwg.mxu0
  %1008 = vrot.lane.b32.xlu0 %v1001, 32
  %v1009 = vpop.permute.xlu0 %1008
  %1010 = vrot.lane.b32.xlu0 %v1004, 32
  %v1011 = vpop.permute.xlu0 %1010
  %1014 = vrot.lane.b32.xlu0 %v1001, 64
  %v1015 = vpop.permute.xlu0 %1014
  %1016 = vrot.lane.b32.xlu0 %v1004, 64
  %v1017 = vpop.permute.xlu0 %1016
  %1020 = vrot.lane.b32.xlu0 %v1001, 96
  %v1021 = vpop.permute.xlu0 %1020
  %1022 = vrot.lane.b32.xlu0 %v1004, 96
  %v1023 = vpop.permute.xlu0 %1022
  %v1026 = vsel %vm64, %v1001, %v1009
  %v1027 = vsel %vm64, %v1004, %v1011
  %v1028 = vsel %vm243, %v1026, %v1015
  %v1029 = vsel %vm243, %v1027, %v1017
  %v1030 = vsel %vm246, %v1028, %v1021
  %v1031 = vsel %vm246, %v1029, %v1023
  %v1032 = vmul.f32 %v1030, %v126
  %v1033 = vmul.f32 %v1030, %v127
  %v1034 = vmul.f32 %v1031, %v128
  %v1035 = vmul.f32 %v1031, %v129
  %v1036 = vld [vmem:[%s4 + $0x1f0] sm:$0xff]
  %v1037 = vld [vmem:[%s4 + $0x1f8] sm:$0xff]
  %v1038 = vld [vmem:[%s4 + $0x200] sm:$0xff]
  %v1039 = vld [vmem:[%s4 + $0x208] sm:$0xff]
  %v1040 = vld [vmem:[%s4 + $0x210] sm:$0xff]
  %v1041 = vld [vmem:[%s4 + $0x218] sm:$0xff]
  %v1042 = vld [vmem:[%s4 + $0x220] sm:$0xff]
  %v1043 = vld [vmem:[%s4 + $0x228] sm:$0xff]
  %v1044 = vld [vmem:[%s4 + $0x230] sm:$0xff]
  %v1045 = vld [vmem:[%s4 + $0x238] sm:$0xff]
  %v1046 = vld [vmem:[%s4 + $0x240] sm:$0xff]
  %v1047 = vld [vmem:[%s4 + $0x248] sm:$0xff]
  %v1048 = vld [vmem:[%s4 + $0x250] sm:$0xff]
  %v1049 = vld [vmem:[%s4 + $0x258] sm:$0xff]
  %v1050 = vld [vmem:[%s4 + $0x260] sm:$0xff]
  %v1051 = vld [vmem:[%s4 + $0x268] sm:$0xff]
  %v1052 = vld [vmem:[%s4 + $0x270] sm:$0xff]
  %v1053 = vld [vmem:[%s4 + $0x278] sm:$0xff]
  %v1054 = vld [vmem:[%s4 + $0x280] sm:$0xff]
  %v1055 = vld [vmem:[%s4 + $0x288] sm:$0xff]
  %v1056 = vld [vmem:[%s4 + $0x290] sm:$0xff]
  %v1057 = vld [vmem:[%s4 + $0x298] sm:$0xff]
  %v1058 = vld [vmem:[%s4 + $0x2a0] sm:$0xff]
  %v1059 = vld [vmem:[%s4 + $0x2a8] sm:$0xff]
  %v1060 = vld [vmem:[%s4 + $0x2b0] sm:$0xff]
  %v1061 = vld [vmem:[%s4 + $0x2b8] sm:$0xff]
  %v1062 = vld [vmem:[%s4 + $0x2c0] sm:$0xff]
  %v1063 = vld [vmem:[%s4 + $0x2c8] sm:$0xff]
  %v1064 = vld [vmem:[%s4 + $0x2d0] sm:$0xff]
  %v1065 = vld [vmem:[%s4 + $0x2d8] sm:$0xff]
  %v1066 = vld [vmem:[%s4 + $0x2e0] sm:$0xff]
  %v1067 = vld [vmem:[%s4 + $0x2e8] sm:$0xff]
  %1068 = vmatpush.msra.mxu0 %v1051
  %1069 = vmatpush.msra.mxu0 %v1050
  %1070 = vmatpush.msra.mxu0 %v1049
  %1071 = vmatpush.msra.mxu0 %v1048
  %1072 = vmatpush.msra.mxu0 %v1047
  %1073 = vmatpush.msra.mxu0 %v1046
  %1074 = vmatpush.msra.mxu0 %v1045
  %1075 = vmatpush.msra.mxu0 %v1044
  %1076 = vmatpush.msra.mxu0 %v1043
  %1077 = vmatpush.msra.mxu0 %v1042
  %1078 = vmatpush.msra.mxu0 %v1041
  %1079 = vmatpush.msra.mxu0 %v1040
  %1080 = vmatpush.msra.mxu0 %v1039
  %1081 = vmatpush.msra.mxu0 %v1038
  %1082 = vmatpush.msra.mxu0 %v1037
  %1083 = vmatpush.msra.mxu0 %v1036
  %1084 = vmatmul.f32.gmra.mxu0 %v1032
  %v1085 = vpop.f32.mrf.mxu0
  %v1086 = vadd.f32 0.0, %v1085
  %1087 = vmatmul.f32.gmra.mxu0 %v1034
  %v1088 = vpop.f32.mrf.mxu0
  %v1089 = vadd.f32 0.0, %v1088
  %1090 = vdwg.mxu0
  %1091 = vmatpush.msra.mxu0 %v1067
  %1092 = vmatpush.msra.mxu0 %v1066
  %1093 = vmatpush.msra.mxu0 %v1065
  %1094 = vmatpush.msra.mxu0 %v1064
  %1095 = vmatpush.msra.mxu0 %v1063
  %1096 = vmatpush.msra.mxu0 %v1062
  %1097 = vmatpush.msra.mxu0 %v1061
  %1098 = vmatpush.msra.mxu0 %v1060
  %1099 = vmatpush.msra.mxu0 %v1059
  %1100 = vmatpush.msra.mxu0 %v1058
  %1101 = vmatpush.msra.mxu0 %v1057
  %1102 = vmatpush.msra.mxu0 %v1056
  %1103 = vmatpush.msra.mxu0 %v1055
  %1104 = vmatpush.msra.mxu0 %v1054
  %1105 = vmatpush.msra.mxu0 %v1053
  %1106 = vmatpush.msra.mxu0 %v1052
  %1107 = vmatmul.f32.gmra.mxu0 %v1033
  %v1108 = vpop.f32.mrf.mxu0
  %v1109 = vadd.f32 %v1086, %v1108
  %1110 = vmatmul.f32.gmra.mxu0 %v1035
  %v1111 = vpop.f32.mrf.mxu0
  %v1112 = vadd.f32 %v1089, %v1111
  %1113 = vdwg.mxu0
  %v1115 = vsel %vm64, %v1109, 0
  %v1118 = vsel %vm64, %v1112, 0
  %1120 = vmatpush.msra.mxu0 0.0
  %1121 = vmatpush.msra.mxu0 0.0
  %1122 = vmatpush.msra.mxu0 0.0
  %1123 = vmatpush.msra.mxu0 0.0
  %1124 = vmatpush.msra.mxu0 0.0
  %1125 = vmatpush.msra.mxu0 0.0
  %1126 = vmatpush.msra.mxu0 0.0
  %1127 = vmatpush.msra.mxu0 0.0
  %1128 = vmatpush.msra.mxu0 0.0
  %1129 = vmatpush.msra.mxu0 0.0
  %1130 = vmatpush.msra.mxu0 0.0
  %1131 = vmatpush.msra.mxu0 0.0
  %1132 = vmatpush.msra.mxu0 %v133
  %1133 = vmatpush.msra.mxu0 %v132
  %1134 = vmatpush.msra.mxu0 %v131
  %1135 = vmatpush.msra.mxu0 %v130
  %1136 = vmatmul.f32.gmra.mxu0 %v1115
  %v1137 = vpop.f32.mrf.mxu0
  %v1138 = vadd.f32 0.0, %v1137
  %1139 = vmatmul.f32.gmra.mxu0 %v1118
  %v1140 = vpop.f32.mrf.mxu0
  %v1141 = vadd.f32 0.0, %v1140
  %1142 = vdwg.mxu0
  %1143 = vmatpush.msra.mxu0 0.0
  %1144 = vmatpush.msra.mxu0 0.0
  %1145 = vmatpush.msra.mxu0 0.0
  %1146 = vmatpush.msra.mxu0 0.0
  %1147 = vmatpush.msra.mxu0 0.0
  %1148 = vmatpush.msra.mxu0 0.0
  %1149 = vmatpush.msra.mxu0 0.0
  %1150 = vmatpush.msra.mxu0 0.0
  %1151 = vmatpush.msra.mxu0 0.0
  %1152 = vmatpush.msra.mxu0 0.0
  %1153 = vmatpush.msra.mxu0 0.0
  %1154 = vmatpush.msra.mxu0 0.0
  %1155 = vmatpush.msra.mxu0 0.0
  %1156 = vmatpush.msra.mxu0 0.0
  %1157 = vmatpush.msra.mxu0 %v1023
  %1158 = vmatpush.msra.mxu0 %v1021
  %1159 = vmatmul.f32.gmra.mxu0 %v387
  %v1160 = vpop.f32.mrf.mxu0
  %v1161 = vadd.f32 0.0, %v1160
  %1162 = vmatmul.f32.gmra.mxu0 %v390
  %v1163 = vpop.f32.mrf.mxu0
  %v1164 = vadd.f32 0.0, %v1163
  %1165 = vmatmul.f32.gmra.mxu0 %v393
  %v1166 = vpop.f32.mrf.mxu0
  %v1167 = vadd.f32 0.0, %v1166
  %1168 = vmatmul.f32.gmra.mxu0 %v396
  %v1169 = vpop.f32.mrf.mxu0
  %v1170 = vadd.f32 0.0, %v1169
  %1171 = vmatmul.f32.gmra.mxu0 %v399
  %v1172 = vpop.f32.mrf.mxu0
  %v1173 = vadd.f32 0.0, %v1172
  %1174 = vmatmul.f32.gmra.mxu0 %v402
  %v1175 = vpop.f32.mrf.mxu0
  %v1176 = vadd.f32 0.0, %v1175
  %1177 = vmatmul.f32.gmra.mxu0 %v405
  %v1178 = vpop.f32.mrf.mxu0
  %v1179 = vadd.f32 0.0, %v1178
  %1180 = vmatmul.f32.gmra.mxu0 %v408
  %v1181 = vpop.f32.mrf.mxu0
  %v1182 = vadd.f32 0.0, %v1181
  %1183 = vdwg.mxu0
  %v1184 = vmul.f32 %v1161, %v370
  %v1185 = vmul.f32 %v1164, %v371
  %v1186 = vmul.f32 %v1167, %v372
  %v1187 = vmul.f32 %v1170, %v373
  %v1188 = vmul.f32 %v1173, %v374
  %v1189 = vmul.f32 %v1176, %v375
  %v1190 = vmul.f32 %v1179, %v376
  %v1191 = vmul.f32 %v1182, %v377
  %v1192 = vsel %vm64, %v1001, 0
  %v1194 = vsel %vm64, %v1004, 0
  %v1197 = vsel %vm64, %v1184, 0
  %v1200 = vsel %vm64, %v1185, 0
  %v1203 = vsel %vm64, %v1186, 0
  %v1206 = vsel %vm64, %v1187, 0
  %v1209 = vsel %vm64, %v1188, 0
  %v1212 = vsel %vm64, %v1189, 0
  %v1215 = vsel %vm64, %v1190, 0
  %v1218 = vsel %vm64, %v1191, 0
  %1220 = vmatpush.xpose.msra.mxu0 0.0
  %1221 = vmatpush.xpose.msra.mxu0 0.0
  %1222 = vmatpush.xpose.msra.mxu0 0.0
  %1223 = vmatpush.xpose.msra.mxu0 0.0
  %1224 = vmatpush.xpose.msra.mxu0 0.0
  %1225 = vmatpush.xpose.msra.mxu0 0.0
  %1226 = vmatpush.xpose.msra.mxu0 0.0
  %1227 = vmatpush.xpose.msra.mxu0 0.0
  %1228 = vmatpush.xpose.msra.mxu0 %v1218
  %1229 = vmatpush.xpose.msra.mxu0 %v1215
  %1230 = vmatpush.xpose.msra.mxu0 %v1212
  %1231 = vmatpush.xpose.msra.mxu0 %v1209
  %1232 = vmatpush.xpose.msra.mxu0 %v1206
  %1233 = vmatpush.xpose.msra.mxu0 %v1203
  %1234 = vmatpush.xpose.msra.mxu0 %v1200
  %1235 = vmatpush.xpose.msra.mxu0 %v1197
  %1236 = vmatmul.f32.gmra.mxu0 %v1192
  %v1237 = vpop.f32.mrf.mxu0
  %v1238 = vadd.f32 0.0, %v1237
  %1239 = vmatmul.f32.gmra.mxu0 %v1194
  %v1240 = vpop.f32.mrf.mxu0
  %v1241 = vadd.f32 0.0, %v1240
  %1242 = vdwg.mxu0
  %v1243 = vmul.f32 %v1238, 0.35355338
  %v1244 = vmul.f32 %v1241, 0.35355338
  %v1245 = vadd.f32 %v1243, %v1138
  %v1246 = vadd.f32 %v1244, %v1141
  %v1247 = vadd.f32 %v1245, %v360
  %v1248 = vadd.f32 %v1246, %v361
  %v1249 = vsel %vm519, %v1247, -1e+09
  %v1250 = vsel %vm519, %v1248, -1e+09
  %v1251 = vsel %vm243, %v1249, -inf
  %1252 = vmax.xlane.f32.xlu0 %v1251
  %v1253 = vpop.xlane.xlu0 %1252
  %v1254 = vsel %vm243, %v1250, -inf
  %1255 = vmax.xlane.f32.xlu0 %v1254
  %v1256 = vpop.xlane.xlu0 %1255
  %v1257 = vmul.f32 %v1253, %v528
  %v1258 = vmul.f32 %v1256, %v528
  %v1259 = vadd.f32 %v1257, 0.0
  %v1260 = vadd.f32 %v1258, 0.0
  %v1261 = vsel %vm536, %v1247, -1e+09
  %v1262 = vsel %vm536, %v1248, -1e+09
  %v1263 = vsel %vm243, %v1261, -inf
  %1264 = vmax.xlane.f32.xlu0 %v1263
  %v1265 = vpop.xlane.xlu0 %1264
  %v1266 = vsel %vm243, %v1262, -inf
  %1267 = vmax.xlane.f32.xlu0 %v1266
  %v1268 = vpop.xlane.xlu0 %1267
  %v1269 = vmul.f32 %v1265, %v545
  %v1270 = vmul.f32 %v1268, %v545
  %v1271 = vadd.f32 %v1259, %v1269
  %v1272 = vadd.f32 %v1260, %v1270
  %v1273 = vsel %vm553, %v1247, -1e+09
  %v1274 = vsel %vm553, %v1248, -1e+09
  %v1275 = vsel %vm243, %v1273, -inf
  %1276 = vmax.xlane.f32.xlu0 %v1275
  %v1277 = vpop.xlane.xlu0 %1276
  %v1278 = vsel %vm243, %v1274, -inf
  %1279 = vmax.xlane.f32.xlu0 %v1278
  %v1280 = vpop.xlane.xlu0 %1279
  %v1281 = vmul.f32 %v1277, %v562
  %v1282 = vmul.f32 %v1280, %v562
  %v1283 = vadd.f32 %v1271, %v1281
  %v1284 = vadd.f32 %v1272, %v1282
  %v1285 = vsel %vm570, %v1247, -1e+09
  %v1286 = vsel %vm570, %v1248, -1e+09
  %v1287 = vsel %vm243, %v1285, -inf
  %1288 = vmax.xlane.f32.xlu0 %v1287
  %v1289 = vpop.xlane.xlu0 %1288
  %v1290 = vsel %vm243, %v1286, -inf
  %1291 = vmax.xlane.f32.xlu0 %v1290
  %v1292 = vpop.xlane.xlu0 %1291
  %v1293 = vmul.f32 %v1289, %v579
  %v1294 = vmul.f32 %v1292, %v579
  %v1295 = vadd.f32 %v1283, %v1293
  %v1296 = vadd.f32 %v1284, %v1294
  %v1297 = vsub.f32 %v1247, %v1295
  %v1298 = vsub.f32 %v1248, %v1296
  %v1299 = vmul.f32 %v1297, 1.442695
  %v1300 = vpow.pop %v1299
  %v1301 = vmul.f32 %v1298, 1.442695
  %v1302 = vpow.pop %v1301
  %v1304 = vsel %vm243, %v1300, 0
  %v1307 = vsel %vm243, %v1302, 0
  %1309 = vmatpush.msra.mxu0 0.0
  %1310 = vmatpush.msra.mxu0 0.0
  %1311 = vmatpush.msra.mxu0 0.0
  %1312 = vmatpush.msra.mxu0 0.0
  %1313 = vmatpush.msra.mxu0 0.0
  %1314 = vmatpush.msra.mxu0 0.0
  %1315 = vmatpush.msra.mxu0 0.0
  %1316 = vmatpush.msra.mxu0 0.0
  %1317 = vmatpush.msra.mxu0 %v385
  %1318 = vmatpush.msra.mxu0 %v384
  %1319 = vmatpush.msra.mxu0 %v383
  %1320 = vmatpush.msra.mxu0 %v382
  %1321 = vmatpush.msra.mxu0 %v381
  %1322 = vmatpush.msra.mxu0 %v380
  %1323 = vmatpush.msra.mxu0 %v379
  %1324 = vmatpush.msra.mxu0 %v378
  %1325 = vmatmul.f32.gmra.mxu0 %v1304
  %v1326 = vpop.f32.mrf.mxu0
  %v1327 = vadd.f32 0.0, %v1326
  %1328 = vmatmul.f32.gmra.mxu0 %v1307
  %v1329 = vpop.f32.mrf.mxu0
  %v1330 = vadd.f32 0.0, %v1329
  %1331 = vdwg.mxu0
  %v1332 = vrcp.pop %v1327
  %v1333 = vmul.f32 %v1327, %v1332
  %v1334 = vsub.f32 1.0, %v1333
  %v1335 = vmul.f32 %v1332, %v1334
  %v1336 = vadd.f32 %v1332, %v1335
  %vm1337 = vweird.f32 %v1327
  %vm1338 = vweird.f32 %v1332
  %vm1339 = vmor %vm1337, %vm1338
  %v1340 = vsel %vm1339, %v1332, %v1336
  %v1341 = vand.u32 2147483647, %v1327
  %vm1342 = vcmp.eq.f32.partialorder %v1341, 8.507059e+37
  %v1343 = vand.u32 %v1327, 2147483648
  %v1344 = vor.u32 1.1754944e-38, %v1343
  %v1345 = vsel %vm1342, %v1344, %v1340
  %v1346 = vmul.f32 %v1300, %v1345
  %v1347 = vrcp.pop %v1330
  %v1348 = vmul.f32 %v1330, %v1347
  %v1349 = vsub.f32 1.0, %v1348
  %v1350 = vmul.f32 %v1347, %v1349
  %v1351 = vadd.f32 %v1347, %v1350
  %vm1352 = vweird.f32 %v1330
  %vm1353 = vweird.f32 %v1347
  %vm1354 = vmor %vm1352, %vm1353
  %v1355 = vsel %vm1354, %v1347, %v1351
  %v1356 = vand.u32 2147483647, %v1330
  %vm1357 = vcmp.eq.f32.partialorder %v1356, 8.507059e+37
  %v1358 = vand.u32 %v1330, 2147483648
  %v1359 = vor.u32 1.1754944e-38, %v1358
  %v1360 = vsel %vm1357, %v1359, %v1355
  %v1361 = vmul.f32 %v1302, %v1360
  %1362 = vrot.lane.b32.xlu0 %v1184, 96
  %v1363 = vpop.permute.xlu0 %1362
  %1364 = vrot.lane.b32.xlu0 %v1185, 96
  %v1365 = vpop.permute.xlu0 %1364
  %1366 = vrot.lane.b32.xlu0 %v1186, 96
  %v1367 = vpop.permute.xlu0 %1366
  %1368 = vrot.lane.b32.xlu0 %v1187, 96
  %v1369 = vpop.permute.xlu0 %1368
  %1370 = vrot.lane.b32.xlu0 %v1188, 96
  %v1371 = vpop.permute.xlu0 %1370
  %1372 = vrot.lane.b32.xlu0 %v1189, 96
  %v1373 = vpop.permute.xlu0 %1372
  %1374 = vrot.lane.b32.xlu0 %v1190, 96
  %v1375 = vpop.permute.xlu0 %1374
  %1376 = vrot.lane.b32.xlu0 %v1191, 96
  %v1377 = vpop.permute.xlu0 %1376
  %v1387 = vsel %vm243, %v1346, 0
  %v1390 = vsel %vm243, %v1361, 0
  %1392 = vmatpush.msra.mxu0 0.0
  %1393 = vmatpush.msra.mxu0 0.0
  %1394 = vmatpush.msra.mxu0 0.0
  %1395 = vmatpush.msra.mxu0 0.0
  %1396 = vmatpush.msra.mxu0 0.0
  %1397 = vmatpush.msra.mxu0 0.0
  %1398 = vmatpush.msra.mxu0 0.0
  %1399 = vmatpush.msra.mxu0 0.0
  %1400 = vmatpush.msra.mxu0 %v1377
  %1401 = vmatpush.msra.mxu0 %v1375
  %1402 = vmatpush.msra.mxu0 %v1373
  %1403 = vmatpush.msra.mxu0 %v1371
  %1404 = vmatpush.msra.mxu0 %v1369
  %1405 = vmatpush.msra.mxu0 %v1367
  %1406 = vmatpush.msra.mxu0 %v1365
  %1407 = vmatpush.msra.mxu0 %v1363
  %1408 = vmatmul.f32.gmra.mxu0 %v1387
  %v1409 = vpop.f32.mrf.mxu0
  %v1410 = vadd.f32 0.0, %v1409
  %1411 = vmatmul.f32.gmra.mxu0 %v1390
  %v1412 = vpop.f32.mrf.mxu0
  %v1413 = vadd.f32 0.0, %v1412
  %1414 = vdwg.mxu0
  %v1415 = vld [vmem:[%s4 + $0x30] sm:$0xff]
  %v1416 = vld [vmem:[%s4 + $0x38] sm:$0xff]
  %v1417 = vld [vmem:[%s4 + $0x40] sm:$0xff]
  %v1418 = vld [vmem:[%s4 + $0x48] sm:$0xff]
  %v1419 = vld [vmem:[%s1 + $0xd] sm:$0x1]
  %v1420 = vperm.slane %v1419, 0
  %v1422 = vsel %vm64, %v1410, 0
  %v1425 = vsel %vm64, %v1413, 0
  %1427 = vmatpush.msra.mxu0 0.0
  %1428 = vmatpush.msra.mxu0 0.0
  %1429 = vmatpush.msra.mxu0 0.0
  %1430 = vmatpush.msra.mxu0 0.0
  %1431 = vmatpush.msra.mxu0 0.0
  %1432 = vmatpush.msra.mxu0 0.0
  %1433 = vmatpush.msra.mxu0 0.0
  %1434 = vmatpush.msra.mxu0 0.0
  %1435 = vmatpush.msra.mxu0 0.0
  %1436 = vmatpush.msra.mxu0 0.0
  %1437 = vmatpush.msra.mxu0 0.0
  %1438 = vmatpush.msra.mxu0 0.0
  %1439 = vmatpush.msra.mxu0 %v1418
  %1440 = vmatpush.msra.mxu0 %v1417
  %1441 = vmatpush.msra.mxu0 %v1416
  %1442 = vmatpush.msra.mxu0 %v1415
  %1443 = vmatmul.f32.gmra.mxu0 %v1422
  %v1444 = vpop.f32.mrf.mxu0
  %v1445 = vadd.f32 %v1420, %v1444
  %1446 = vmatmul.f32.gmra.mxu0 %v1425
  %v1447 = vpop.f32.mrf.mxu0
  %v1448 = vadd.f32 %v1420, %v1447
  %1449 = vdwg.mxu0
  %v1450 = vadd.f32 %v917, %v1445
  %v1451 = vadd.f32 %v918, %v1448
  %v1452 = vld [vmem:[%s1 + $0xe] sm:$0x1]
  %v1453 = vld [vmem:[%s1 + $0xf] sm:$0x1]
  %v1454 = vsel %vm64, %v1450, 0.0
  %1455 = vadd.xlane.f32.xlu0 %v1454
  %v1456 = vpop.xlane.xlu0 %1455
  %v1457 = vsel %vm64, %v1451, 0.0
  %1458 = vadd.xlane.f32.xlu0 %v1457
  %v1459 = vpop.xlane.xlu0 %1458
  %v1460 = vmul.f32 %v1456, %v77
  %v1461 = vmul.f32 %v1459, %v77
  %v1462 = vsub.f32 %v1450, %v1460
  %v1463 = vsub.f32 %v1451, %v1461
  %v1464 = vmul.f32 %v1462, %v1462
  %v1465 = vmul.f32 %v1463, %v1463
  %v1466 = vsel %vm64, %v1464, 0.0
  %1467 = vadd.xlane.f32.xlu0 %v1466
  %v1468 = vpop.xlane.xlu0 %1467
  %v1469 = vsel %vm64, %v1465, 0.0
  %1470 = vadd.xlane.f32.xlu0 %v1469
  %v1471 = vpop.xlane.xlu0 %1470
  %v1472 = vmul.f32 %v1468, %v77
  %v1473 = vmul.f32 %v1471, %v77
  %v1474 = vadd.f32 %v1472, 1e-05
  %v1475 = vadd.f32 %v1473, 1e-05
  %v1476 = vrsqrt.pop %v1474
  %v1477 = vmul.f32 %v1476, %v1474
  %v1478 = vmul.f32 %v1477, %v1476
  %v1479 = vmul.f32 0.5, %v1478
  %v1480 = vsub.f32 1.5, %v1479
  %v1481 = vmul.f32 %v1476, %v1480
  %vm1482 = vweird.f32 %v1474
  %vm1483 = vweird.f32 %v1476
  %vm1484 = vmor %vm1482, %vm1483
  %v1485 = vsel %vm1484, %v1476, %v1481
  %v1486 = vrsqrt.pop %v1475
  %v1487 = vmul.f32 %v1486, %v1475
  %v1488 = vmul.f32 %v1487, %v1486
  %v1489 = vmul.f32 0.5, %v1488
  %v1490 = vsub.f32 1.5, %v1489
  %v1491 = vmul.f32 %v1486, %v1490
  %vm1492 = vweird.f32 %v1475
  %vm1493 = vweird.f32 %v1486
  %vm1494 = vmor %vm1492, %vm1493
  %v1495 = vsel %vm1494, %v1486, %v1491
  %v1496 = vmul.f32 %v1462, %v1485
  %v1497 = vmul.f32 %v1463, %v1495
  %v1498 = vperm.slane %v1452, 0
  %v1499 = vmul.f32 %v1496, %v1498
  %v1500 = vmul.f32 %v1497, %v1498
  %v1501 = vperm.slane %v1453, 0
  %v1502 = vadd.f32 %v1499, %v1501
  %v1503 = vadd.f32 %v1500, %v1501
  %v1504 = vld [vmem:[%s6 + $0x20] sm:$0xff]
  %v1505 = vld [vmem:[%s6 + $0x28] sm:$0xff]
  %v1506 = vld [vmem:[%s6 + $0x30] sm:$0xff]
  %v1507 = vld [vmem:[%s6 + $0x38] sm:$0xff]
  %v1508 = vld [vmem:[%s1 + $0x12] sm:$0x1]
  %v1509 = vperm.slane %v1508, 0
  %v1511 = vsel %vm64, %v1502, 0
  %v1514 = vsel %vm64, %v1503, 0
  %1516 = vmatpush.msra.mxu0 0.0
  %1517 = vmatpush.msra.mxu0 0.0
  %1518 = vmatpush.msra.mxu0 0.0
  %1519 = vmatpush.msra.mxu0 0.0
  %1520 = vmatpush.msra.mxu0 0.0
  %1521 = vmatpush.msra.mxu0 0.0
  %1522 = vmatpush.msra.mxu0 0.0
  %1523 = vmatpush.msra.mxu0 0.0
  %1524 = vmatpush.msra.mxu0 0.0
  %1525 = vmatpush.msra.mxu0 0.0
  %1526 = vmatpush.msra.mxu0 0.0
  %1527 = vmatpush.msra.mxu0 0.0
  %1528 = vmatpush.msra.mxu0 %v1507
  %1529 = vmatpush.msra.mxu0 %v1506
  %1530 = vmatpush.msra.mxu0 %v1505
  %1531 = vmatpush.msra.mxu0 %v1504
  %1532 = vmatmul.f32.gmra.mxu0 %v1511
  %v1533 = vpop.f32.mrf.mxu0
  %v1534 = vadd.f32 %v1509, %v1533
  %1535 = vmatmul.f32.gmra.mxu0 %v1514
  %v1536 = vpop.f32.mrf.mxu0
  %v1537 = vadd.f32 %v1509, %v1536
  %1538 = vdwg.mxu0
  %v1539 = vmul.f32 %v1534, 0.70710677
  %v1540 = vmul.f32 %v1537, 0.70710677
  %v1541 = vand.u32 2147483647, %v1539
  %v1542 = vand.u32 2147483647, %v1540
  %v1543 = vmul.f32 %v1541, 0.3275911
  %v1544 = vmul.f32 %v1542, 0.3275911
  %v1545 = vadd.f32 %v1543, 1.0
  %v1546 = vadd.f32 %v1544, 1.0
  %v1547 = vrcp.pop %v1545
  %v1548 = vrcp.pop %v1546
  %v1549 = vmul.f32 %v1547, 1.0614054
  %v1550 = vmul.f32 %v1548, 1.0614054
  %v1551 = vadd.f32 %v1549, -1.4531521
  %v1552 = vadd.f32 %v1550, -1.4531521
  %v1553 = vmul.f32 %v1551, %v1547
  %v1554 = vmul.f32 %v1552, %v1548
  %v1555 = vadd.f32 %v1553, 1.4214138
  %v1556 = vadd.f32 %v1554, 1.4214138
  %v1557 = vmul.f32 %v1555, %v1547
  %v1558 = vmul.f32 %v1556, %v1548
  %v1559 = vadd.f32 %v1557, -0.28449672
  %v1560 = vadd.f32 %v1558, -0.28449672
  %v1561 = vmul.f32 %v1559, %v1547
  %v1562 = vmul.f32 %v1560, %v1548
  %v1563 = vadd.f32 %v1561, 0.2548296
  %v1564 = vadd.f32 %v1562, 0.2548296
  %v1565 = vmul.f32 %v1563, %v1547
  %v1566 = vmul.f32 %v1564, %v1548
  %v1567 = vsub.f32 0.0, %v1541
  %v1568 = vsub.f32 0.0, %v1542
  %v1569 = vmul.f32 %v1567, %v1541
  %v1570 = vmul.f32 %v1568, %v1542
  %v1571 = vmul.f32 %v1569, 1.442695
  %v1572 = vpow.pop %v1571
  %v1573 = vmul.f32 %v1570, 1.442695
  %v1574 = vpow.pop %v1573
  %v1575 = vmul.f32 %v1565, %v1572
  %v1576 = vmul.f32 %v1566, %v1574
  %v1577 = vsub.f32 1.0, %v1575
  %v1578 = vsub.f32 1.0, %v1576
  %vm1579 = vcmp.ge.f32.partialorder %v1539, 0.0
  %vm1580 = vcmp.ge.f32.partialorder %v1540, 0.0
  %v1581 = vsub.f32 0.0, %v1577
  %v1582 = vsub.f32 0.0, %v1578
  %v1583 = vsel %vm1579, %v1577, %v1581
  %v1584 = vsel %vm1580, %v1578, %v1582
  %v1585 = vmul.f32 %v1534, 0.5
  %v1586 = vmul.f32 %v1537, 0.5
  %v1587 = vadd.f32 %v1583, 1.0
  %v1588 = vadd.f32 %v1584, 1.0
  %v1589 = vmul.f32 %v1585, %v1587
  %v1590 = vmul.f32 %v1586, %v1588
  %v1591 = vld [vmem:[%s4 + $0x90] sm:$0xff]
  %v1592 = vld [vmem:[%s4 + $0x98] sm:$0xff]
  %v1593 = vld [vmem:[%s4 + $0xa0] sm:$0xff]
  %v1594 = vld [vmem:[%s4 + $0xa8] sm:$0xff]
  %v1595 = vld [vmem:[%s4 + $0xb0] sm:$0xff]
  %v1596 = vld [vmem:[%s4 + $0xb8] sm:$0xff]
  %v1597 = vld [vmem:[%s4 + $0xc0] sm:$0xff]
  %v1598 = vld [vmem:[%s4 + $0xc8] sm:$0xff]
  %v1599 = vld [vmem:[%s1 + $0x10] sm:$0x1]
  %v1600 = vperm.slane %v1599, 0
  %v1602 = vsel %vm243, %v1589, 0
  %v1605 = vsel %vm243, %v1590, 0
  %1607 = vmatpush.msra.mxu0 0.0
  %1608 = vmatpush.msra.mxu0 0.0
  %1609 = vmatpush.msra.mxu0 0.0
  %1610 = vmatpush.msra.mxu0 0.0
  %1611 = vmatpush.msra.mxu0 0.0
  %1612 = vmatpush.msra.mxu0 0.0
  %1613 = vmatpush.msra.mxu0 0.0
  %1614 = vmatpush.msra.mxu0 0.0
  %1615 = vmatpush.msra.mxu0 %v1598
  %1616 = vmatpush.msra.mxu0 %v1597
  %1617 = vmatpush.msra.mxu0 %v1596
  %1618 = vmatpush.msra.mxu0 %v1595
  %1619 = vmatpush.msra.mxu0 %v1594
  %1620 = vmatpush.msra.mxu0 %v1593
  %1621 = vmatpush.msra.mxu0 %v1592
  %1622 = vmatpush.msra.mxu0 %v1591
  %1623 = vmatmul.f32.gmra.mxu0 %v1602
  %v1624 = vpop.f32.mrf.mxu0
  %v1625 = vadd.f32 %v1600, %v1624
  %1626 = vmatmul.f32.gmra.mxu0 %v1605
  %v1627 = vpop.f32.mrf.mxu0
  %v1628 = vadd.f32 %v1600, %v1627
  %1629 = vdwg.mxu0
  %v1630 = vadd.f32 %v1450, %v1625
  %v1631 = vadd.f32 %v1451, %v1628
  %v1632 = vld [vmem:[%s5 + $0x40] sm:$0xff]
  %v1633 = vld [vmem:[%s5 + $0x48] sm:$0xff]
  %v1634 = vld [vmem:[%s5 + $0x50] sm:$0xff]
  %v1635 = vld [vmem:[%s5 + $0x58] sm:$0xff]
  %v1636 = vld [vmem:[%s1 + $0x13] sm:$0x1]
  %v1637 = vperm.slane %v1636, 0
  %v1639 = vsel %vm64, %v1630, 0
  %v1642 = vsel %vm64, %v1631, 0
  %1644 = vmatpush.msra.mxu0 0.0
  %1645 = vmatpush.msra.mxu0 0.0
  %1646 = vmatpush.msra.mxu0 0.0
  %1647 = vmatpush.msra.mxu0 0.0
  %1648 = vmatpush.msra.mxu0 0.0
  %1649 = vmatpush.msra.mxu0 0.0
  %1650 = vmatpush.msra.mxu0 0.0
  %1651 = vmatpush.msra.mxu0 0.0
  %1652 = vmatpush.msra.mxu0 0.0
  %1653 = vmatpush.msra.mxu0 0.0
  %1654 = vmatpush.msra.mxu0 0.0
  %1655 = vmatpush.msra.mxu0 0.0
  %1656 = vmatpush.msra.mxu0 %v1635
  %1657 = vmatpush.msra.mxu0 %v1634
  %1658 = vmatpush.msra.mxu0 %v1633
  %1659 = vmatpush.msra.mxu0 %v1632
  %1660 = vmatmul.f32.gmra.mxu0 %v1639
  %v1661 = vpop.f32.mrf.mxu0
  %v1662 = vadd.f32 %v1637, %v1661
  %1663 = vmatmul.f32.gmra.mxu0 %v1642
  %v1664 = vpop.f32.mrf.mxu0
  %v1665 = vadd.f32 %v1637, %v1664
  %1666 = vdwg.mxu0
  %v1667 = vld [vmem:[%s2 + $0xd8] sm:$0xff]
  %v1669 = vsel %vm32, %v1667, 0
  %1671 = vmatpush.msra.mxu0 0.0
  %1672 = vmatpush.msra.mxu0 0.0
  %1673 = vmatpush.msra.mxu0 0.0
  %1674 = vmatpush.msra.mxu0 0.0
  %1675 = vmatpush.msra.mxu0 0.0
  %1676 = vmatpush.msra.mxu0 0.0
  %1677 = vmatpush.msra.mxu0 0.0
  %1678 = vmatpush.msra.mxu0 0.0
  %1679 = vmatpush.msra.mxu0 0.0
  %1680 = vmatpush.msra.mxu0 0.0
  %1681 = vmatpush.msra.mxu0 0.0
  %1682 = vmatpush.msra.mxu0 0.0
  %1683 = vmatpush.msra.mxu0 0.0
  %1684 = vmatpush.msra.mxu0 0.0
  %1685 = vmatpush.msra.mxu0 %v1665
  %1686 = vmatpush.msra.mxu0 %v1662
  %1687 = vmatmul.f32.gmra.mxu0 %v1669
  %v1688 = vpop.f32.mrf.mxu0
  %v1689 = vadd.f32 0.0, %v1688
  %1690 = vdwg.mxu0
  %v1691 = vld [vmem:[%s2 + $0xd0] sm:$0xff]
  %1694 = vrot.lane.b32.xlu0 %v1662, 96
  %v1695 = vpop.permute.xlu0 %1694
  %1696 = vrot.lane.b32.xlu0 %v1665, 96
  %v1697 = vpop.permute.xlu0 %1696
  %1700 = vmatpush.msra.mxu0 0.0
  %1701 = vmatpush.msra.mxu0 0.0
  %1702 = vmatpush.msra.mxu0 0.0
  %1703 = vmatpush.msra.mxu0 0.0
  %1704 = vmatpush.msra.mxu0 0.0
  %1705 = vmatpush.msra.mxu0 0.0
  %1706 = vmatpush.msra.mxu0 0.0
  %1707 = vmatpush.msra.mxu0 0.0
  %1708 = vmatpush.msra.mxu0 0.0
  %1709 = vmatpush.msra.mxu0 0.0
  %1710 = vmatpush.msra.mxu0 0.0
  %1711 = vmatpush.msra.mxu0 0.0
  %1712 = vmatpush.msra.mxu0 0.0
  %1713 = vmatpush.msra.mxu0 0.0
  %1714 = vmatpush.msra.mxu0 %v1697
  %1715 = vmatpush.msra.mxu0 %v1695
  %1716 = vmatmul.f32.gmra.mxu0 %v387
  %v1717 = vpop.f32.mrf.mxu0
  %v1718 = vadd.f32 0.0, %v1717
  %1719 = vmatmul.f32.gmra.mxu0 %v390
  %v1720 = vpop.f32.mrf.mxu0
  %v1721 = vadd.f32 0.0, %v1720
  %1722 = vmatmul.f32.gmra.mxu0 %v393
  %v1723 = vpop.f32.mrf.mxu0
  %v1724 = vadd.f32 0.0, %v1723
  %1725 = vmatmul.f32.gmra.mxu0 %v396
  %v1726 = vpop.f32.mrf.mxu0
  %v1727 = vadd.f32 0.0, %v1726
  %1728 = vmatmul.f32.gmra.mxu0 %v399
  %v1729 = vpop.f32.mrf.mxu0
  %v1730 = vadd.f32 0.0, %v1729
  %1731 = vmatmul.f32.gmra.mxu0 %v402
  %v1732 = vpop.f32.mrf.mxu0
  %v1733 = vadd.f32 0.0, %v1732
  %1734 = vmatmul.f32.gmra.mxu0 %v405
  %v1735 = vpop.f32.mrf.mxu0
  %v1736 = vadd.f32 0.0, %v1735
  %1737 = vmatmul.f32.gmra.mxu0 %v408
  %v1738 = vpop.f32.mrf.mxu0
  %v1739 = vadd.f32 0.0, %v1738
  %1740 = vdwg.mxu0
  %v1741 = vmul.f32 %v1718, %v370
  %v1742 = vmul.f32 %v1721, %v371
  %v1743 = vmul.f32 %v1724, %v372
  %v1744 = vmul.f32 %v1727, %v373
  %v1745 = vmul.f32 %v1730, %v374
  %v1746 = vmul.f32 %v1733, %v375
  %v1747 = vmul.f32 %v1736, %v376
  %v1748 = vmul.f32 %v1739, %v377
  %v1750 = vsel %vm64, %v1689, 0
  %v1753 = vsel %vm64, %v1741, 0
  %v1756 = vsel %vm64, %v1742, 0
  %v1759 = vsel %vm64, %v1743, 0
  %v1762 = vsel %vm64, %v1744, 0
  %v1765 = vsel %vm64, %v1745, 0
  %v1768 = vsel %vm64, %v1746, 0
  %v1771 = vsel %vm64, %v1747, 0
  %v1774 = vsel %vm64, %v1748, 0
  %1776 = vmatpush.xpose.msra.mxu0 0.0
  %1777 = vmatpush.xpose.msra.mxu0 0.0
  %1778 = vmatpush.xpose.msra.mxu0 0.0
  %1779 = vmatpush.xpose.msra.mxu0 0.0
  %1780 = vmatpush.xpose.msra.mxu0 0.0
  %1781 = vmatpush.xpose.msra.mxu0 0.0
  %1782 = vmatpush.xpose.msra.mxu0 0.0
  %1783 = vmatpush.xpose.msra.mxu0 0.0
  %1784 = vmatpush.xpose.msra.mxu0 %v1774
  %1785 = vmatpush.xpose.msra.mxu0 %v1771
  %1786 = vmatpush.xpose.msra.mxu0 %v1768
  %1787 = vmatpush.xpose.msra.mxu0 %v1765
  %1788 = vmatpush.xpose.msra.mxu0 %v1762
  %1789 = vmatpush.xpose.msra.mxu0 %v1759
  %1790 = vmatpush.xpose.msra.mxu0 %v1756
  %1791 = vmatpush.xpose.msra.mxu0 %v1753
  %1792 = vmatmul.f32.gmra.mxu0 %v1750
  %v1793 = vpop.f32.mrf.mxu0
  %v1794 = vadd.f32 0.0, %v1793
  %1795 = vdwg.mxu0
  %v1796 = vmul.f32 %v1794, 0.35355338
  %v1797 = vadd.f32 %v1796, 0.0
  %v1798 = vadd.f32 %v1797, %v1691
  %v1799 = vsel %vm519, %v1798, -1e+09
  %v1800 = vsel %vm243, %v1799, -inf
  %1801 = vmax.xlane.f32.xlu0 %v1800
  %v1802 = vpop.xlane.xlu0 %1801
  %v1803 = vmul.f32 %v1802, %v528
  %v1804 = vadd.f32 %v1803, 0.0
  %v1805 = vsel %vm536, %v1798, -1e+09
  %v1806 = vsel %vm243, %v1805, -inf
  %1807 = vmax.xlane.f32.xlu0 %v1806
  %v1808 = vpop.xlane.xlu0 %1807
  %v1809 = vmul.f32 %v1808, %v545
  %v1810 = vadd.f32 %v1804, %v1809
  %v1811 = vsel %vm553, %v1798, -1e+09
  %v1812 = vsel %vm243, %v1811, -inf
  %1813 = vmax.xlane.f32.xlu0 %v1812
  %v1814 = vpop.xlane.xlu0 %1813
  %v1815 = vmul.f32 %v1814, %v562
  %v1816 = vadd.f32 %v1810, %v1815
  %v1817 = vsel %vm570, %v1798, -1e+09
  %v1818 = vsel %vm243, %v1817, -inf
  %1819 = vmax.xlane.f32.xlu0 %v1818
  %v1820 = vpop.xlane.xlu0 %1819
  %v1821 = vmul.f32 %v1820, %v579
  %v1822 = vadd.f32 %v1816, %v1821
  %v1823 = vsub.f32 %v1798, %v1822
  %v1824 = vmul.f32 %v1823, 1.442695
  %v1825 = vpow.pop %v1824
  %v1827 = vsel %vm243, %v1825, 0
  %1829 = vmatpush.msra.mxu0 0.0
  %1830 = vmatpush.msra.mxu0 0.0
  %1831 = vmatpush.msra.mxu0 0.0
  %1832 = vmatpush.msra.mxu0 0.0
  %1833 = vmatpush.msra.mxu0 0.0
  %1834 = vmatpush.msra.mxu0 0.0
  %1835 = vmatpush.msra.mxu0 0.0
  %1836 = vmatpush.msra.mxu0 0.0
  %1837 = vmatpush.msra.mxu0 %v385
  %1838 = vmatpush.msra.mxu0 %v384
  %1839 = vmatpush.msra.mxu0 %v383
  %1840 = vmatpush.msra.mxu0 %v382
  %1841 = vmatpush.msra.mxu0 %v381
  %1842 = vmatpush.msra.mxu0 %v380
  %1843 = vmatpush.msra.mxu0 %v379
  %1844 = vmatpush.msra.mxu0 %v378
  %1845 = vmatmul.f32.gmra.mxu0 %v1827
  %v1846 = vpop.f32.mrf.mxu0
  %v1847 = vadd.f32 0.0, %v1846
  %1848 = vdwg.mxu0
  %v1849 = vrcp.pop %v1847
  %v1850 = vmul.f32 %v1847, %v1849
  %v1851 = vsub.f32 1.0, %v1850
  %v1852 = vmul.f32 %v1849, %v1851
  %v1853 = vadd.f32 %v1849, %v1852
  %vm1854 = vweird.f32 %v1847
  %vm1855 = vweird.f32 %v1849
  %vm1856 = vmor %vm1854, %vm1855
  %v1857 = vsel %vm1856, %v1849, %v1853
  %v1858 = vand.u32 2147483647, %v1847
  %vm1859 = vcmp.eq.f32.partialorder %v1858, 8.507059e+37
  %v1860 = vand.u32 %v1847, 2147483648
  %v1861 = vor.u32 1.1754944e-38, %v1860
  %v1862 = vsel %vm1859, %v1861, %v1857
  %v1863 = vmul.f32 %v1825, %v1862
  %1864 = vrot.lane.b32.xlu0 %v1741, 96
  %v1865 = vpop.permute.xlu0 %1864
  %1866 = vrot.lane.b32.xlu0 %v1742, 96
  %v1867 = vpop.permute.xlu0 %1866
  %1868 = vrot.lane.b32.xlu0 %v1743, 96
  %v1869 = vpop.permute.xlu0 %1868
  %1870 = vrot.lane.b32.xlu0 %v1744, 96
  %v1871 = vpop.permute.xlu0 %1870
  %1872 = vrot.lane.b32.xlu0 %v1745, 96
  %v1873 = vpop.permute.xlu0 %1872
  %1874 = vrot.lane.b32.xlu0 %v1746, 96
  %v1875 = vpop.permute.xlu0 %1874
  %1876 = vrot.lane.b32.xlu0 %v1747, 96
  %v1877 = vpop.permute.xlu0 %1876
  %1878 = vrot.lane.b32.xlu0 %v1748, 96
  %v1879 = vpop.permute.xlu0 %1878
  %v1889 = vsel %vm243, %v1863, 0
  %1891 = vmatpush.msra.mxu0 0.0
  %1892 = vmatpush.msra.mxu0 0.0
  %1893 = vmatpush.msra.mxu0 0.0
  %1894 = vmatpush.msra.mxu0 0.0
  %1895 = vmatpush.msra.mxu0 0.0
  %1896 = vmatpush.msra.mxu0 0.0
  %1897 = vmatpush.msra.mxu0 0.0
  %1898 = vmatpush.msra.mxu0 0.0
  %1899 = vmatpush.msra.mxu0 %v1879
  %1900 = vmatpush.msra.mxu0 %v1877
  %1901 = vmatpush.msra.mxu0 %v1875
  %1902 = vmatpush.msra.mxu0 %v1873
  %1903 = vmatpush.msra.mxu0 %v1871
  %1904 = vmatpush.msra.mxu0 %v1869
  %1905 = vmatpush.msra.mxu0 %v1867
  %1906 = vmatpush.msra.mxu0 %v1865
  %1907 = vmatmul.f32.gmra.mxu0 %v1889
  %v1908 = vpop.f32.mrf.mxu0
  %v1909 = vadd.f32 0.0, %v1908
  %1910 = vdwg.mxu0
  %v1911 = vld [vmem:[%s4 + $0xd0] sm:$0xff]
  %v1912 = vld [vmem:[%s4 + $0xd8] sm:$0xff]
  %v1913 = vld [vmem:[%s4 + $0xe0] sm:$0xff]
  %v1914 = vld [vmem:[%s4 + $0xe8] sm:$0xff]
  %v1915 = vld [vmem:[%s1 + $0x14] sm:$0x1]
  %v1916 = vperm.slane %v1915, 0
  %v1918 = vsel %vm64, %v1909, 0
  %1920 = vmatpush.msra.mxu0 0.0
  %1921 = vmatpush.msra.mxu0 0.0
  %1922 = vmatpush.msra.mxu0 0.0
  %1923 = vmatpush.msra.mxu0 0.0
  %1924 = vmatpush.msra.mxu0 0.0
  %1925 = vmatpush.msra.mxu0 0.0
  %1926 = vmatpush.msra.mxu0 0.0
  %1927 = vmatpush.msra.mxu0 0.0
  %1928 = vmatpush.msra.mxu0 0.0
  %1929 = vmatpush.msra.mxu0 0.0
  %1930 = vmatpush.msra.mxu0 0.0
  %1931 = vmatpush.msra.mxu0 0.0
  %1932 = vmatpush.msra.mxu0 %v1914
  %1933 = vmatpush.msra.mxu0 %v1913
  %1934 = vmatpush.msra.mxu0 %v1912
  %1935 = vmatpush.msra.mxu0 %v1911
  %1936 = vmatmul.f32.gmra.mxu0 %v1918
  %v1937 = vpop.f32.mrf.mxu0
  %v1938 = vadd.f32 %v1916, %v1937
  %1939 = vdwg.mxu0
  %v1940 = vld [vmem:[%s6 + $0x40] sm:$0xff]
  %v1941 = vld [vmem:[%s6 + $0x48] sm:$0xff]
  %v1942 = vld [vmem:[%s6 + $0x50] sm:$0xff]
  %v1943 = vld [vmem:[%s6 + $0x58] sm:$0xff]
  %v1944 = vld [vmem:[%s1 + $0x15] sm:$0x1]
  %v1945 = vperm.slane %v1944, 0
  %v1947 = vsel %vm64, %v1938, 0
  %1949 = vmatpush.msra.mxu0 0.0
  %1950 = vmatpush.msra.mxu0 0.0
  %1951 = vmatpush.msra.mxu0 0.0
  %1952 = vmatpush.msra.mxu0 0.0
  %1953 = vmatpush.msra.mxu0 0.0
  %1954 = vmatpush.msra.mxu0 0.0
  %1955 = vmatpush.msra.mxu0 0.0
  %1956 = vmatpush.msra.mxu0 0.0
  %1957 = vmatpush.msra.mxu0 0.0
  %1958 = vmatpush.msra.mxu0 0.0
  %1959 = vmatpush.msra.mxu0 0.0
  %1960 = vmatpush.msra.mxu0 0.0
  %1961 = vmatpush.msra.mxu0 %v1943
  %1962 = vmatpush.msra.mxu0 %v1942
  %1963 = vmatpush.msra.mxu0 %v1941
  %1964 = vmatpush.msra.mxu0 %v1940
  %1965 = vmatmul.f32.gmra.mxu0 %v1947
  %v1966 = vpop.f32.mrf.mxu0
  %v1967 = vadd.f32 %v1945, %v1966
  %1968 = vdwg.mxu0
  %v1969 = vld [vmem:[%s2 + $0xe0] sm:$0xff]
  %v1970 = vld [vmem:[%s2 + $0xe8] sm:$0xff]
  %v1971 = vld [vmem:[%s2 + $0xf0] sm:$0xff]
  %v1972 = vld [vmem:[%s2 + $0xf8] sm:$0xff]
  %v1973 = vld [vmem:[%s2 + $0x100] sm:$0xff]
  %v1974 = vld [vmem:[%s2 + $0x108] sm:$0xff]
  %vm1975 = vcmask 392192
  %v1977 = vsel %vm1975, %v1967, 0
  %1979 = vmatpush.msra.mxu0 0.0
  %1980 = vmatpush.msra.mxu0 0.0
  %1981 = vmatpush.msra.mxu0 0.0
  %1982 = vmatpush.msra.mxu0 0.0
  %1983 = vmatpush.msra.mxu0 0.0
  %1984 = vmatpush.msra.mxu0 0.0
  %1985 = vmatpush.msra.mxu0 0.0
  %1986 = vmatpush.msra.mxu0 0.0
  %1987 = vmatpush.msra.mxu0 0.0
  %1988 = vmatpush.msra.mxu0 0.0
  %1989 = vmatpush.msra.mxu0 %v1974
  %1990 = vmatpush.msra.mxu0 %v1973
  %1991 = vmatpush.msra.mxu0 %v1972
  %1992 = vmatpush.msra.mxu0 %v1971
  %1993 = vmatpush.msra.mxu0 %v1970
  %1994 = vmatpush.msra.mxu0 %v1969
  %1995 = vmatmul.f32.gmra.mxu0 %v1977
  %v1996 = vpop.f32.mrf.mxu0
  %v1997 = vadd.f32 0.0, %v1996
  %1998 = vdwg.mxu0
  %v1999 = vmul.f32 %v1997, 0.0625
  %v2000 = vsub.f32 %v1967, %v1999
  %v2001 = vmul.f32 %v2000, %v2000
  %v2003 = vsel %vm1975, %v2001, 0
  %2005 = vmatpush.msra.mxu0 0.0
  %2006 = vmatpush.msra.mxu0 0.0
  %2007 = vmatpush.msra.mxu0 0.0
  %2008 = vmatpush.msra.mxu0 0.0
  %2009 = vmatpush.msra.mxu0 0.0
  %2010 = vmatpush.msra.mxu0 0.0
  %2011 = vmatpush.msra.mxu0 0.0
  %2012 = vmatpush.msra.mxu0 0.0
  %2013 = vmatpush.msra.mxu0 0.0
  %2014 = vmatpush.msra.mxu0 0.0
  %2015 = vmatpush.msra.mxu0 %v1974
  %2016 = vmatpush.msra.mxu0 %v1973
  %2017 = vmatpush.msra.mxu0 %v1972
  %2018 = vmatpush.msra.mxu0 %v1971
  %2019 = vmatpush.msra.mxu0 %v1970
  %2020 = vmatpush.msra.mxu0 %v1969
  %2021 = vmatmul.f32.gmra.mxu0 %v2003
  %v2022 = vpop.f32.mrf.mxu0
  %v2023 = vadd.f32 0.0, %v2022
  %2024 = vdwg.mxu0
  %v2025 = vmul.f32 %v2023, 0.0625
  %v2026 = vadd.f32 %v2025, 1e-05
  %v2027 = vrsqrt.pop %v2026
  %v2028 = vmul.f32 %v2027, %v2026
  %v2029 = vmul.f32 %v2028, %v2027
  %v2030 = vmul.f32 0.5, %v2029
  %v2031 = vsub.f32 1.5, %v2030
  %v2032 = vmul.f32 %v2027, %v2031
  %vm2033 = vweird.f32 %v2026
  %vm2034 = vweird.f32 %v2027
  %vm2035 = vmor %vm2033, %vm2034
  %v2036 = vsel %vm2035, %v2027, %v2032
  %v2037 = vmul.f32 %v2000, %v2036
  %v2038 = vld [vmem:[%s1 + $0x16] sm:$0x1]
  %v2039 = vperm.slane %v2038, 0
  %v2040 = vmul.f32 %v2037, %v2039
  %v2041 = vld [vmem:[%s1 + $0x17] sm:$0x1]
  %v2042 = vperm.slane %v2041, 0
  %v2043 = vadd.f32 %v2040, %v2042
  %v2044 = vmax.f32 %v2043, 0.0
  %v2045 = vld [vmem:[%s1 + $0x20] sm:$0xff]
  %v2046 = vld [vmem:[%s1 + $0x28] sm:$0xff]
  %v2047 = vld [vmem:[%s1 + $0x30] sm:$0xff]
  %v2048 = vld [vmem:[%s1 + $0x38] sm:$0xff]
  %v2049 = vld [vmem:[%s1 + $0x40] sm:$0xff]
  %v2050 = vld [vmem:[%s1 + $0x48] sm:$0xff]
  %v2051 = vld [vmem:[%s1 + $0x18] sm:$0x1]
  %v2052 = vperm.slane %v2051, 0
  %v2054 = vsel %vm1975, %v2044, 0
  %2056 = vmatpush.msra.mxu0 0.0
  %2057 = vmatpush.msra.mxu0 0.0
  %2058 = vmatpush.msra.mxu0 0.0
  %2059 = vmatpush.msra.mxu0 0.0
  %2060 = vmatpush.msra.mxu0 0.0
  %2061 = vmatpush.msra.mxu0 0.0
  %2062 = vmatpush.msra.mxu0 0.0
  %2063 = vmatpush.msra.mxu0 0.0
  %2064 = vmatpush.msra.mxu0 0.0
  %2065 = vmatpush.msra.mxu0 0.0
  %2066 = vmatpush.msra.mxu0 %v2050
  %2067 = vmatpush.msra.mxu0 %v2049
  %2068 = vmatpush.msra.mxu0 %v2048
  %2069 = vmatpush.msra.mxu0 %v2047
  %2070 = vmatpush.msra.mxu0 %v2046
  %2071 = vmatpush.msra.mxu0 %v2045
  %2072 = vmatmul.f32.gmra.mxu0 %v2054
  %v2073 = vpop.f32.mrf.mxu0
  %v2074 = vadd.f32 %v2052, %v2073
  %2075 = vdwg.mxu0
  %2076 = vst [vmem:[%s7] sm:$0xff] %v2074
  // Predicated region
  $region30: #{forward.1} parent=0 // pred_check
    _
  $region31: #{forward.1} parent=0 // pred_check_branch
    %2078 = sbr.rel (0) target = $region33
  $region32: #{forward.1} parent=0 // pred_region
    _
  $region33: #{forward.1} parent=0 // pred_fallthru
    _
  // Predicated region
  $region34: #{forward.1} parent=0 // pred_check
    _
  $region35: #{forward.1} parent=0 // pred_check_branch
    %2080 = sbr.rel (0) target = $region37
  $region36: #{forward.1} parent=0 // pred_region
    _
  $region37: #{forward.1} parent=0 // pred_fallthru
    _

</llo_original>
